<compile_context>
chip_gen: v7x
topology: tpu7x:2x2x1
jax: 0.10.0
libtpu: 0.0.40
codegen_flags: <defaults>
</compile_context>

<pallas_src>
import numpy as np
import jax
import jax.numpy as jnp
from jax import lax
from jax.experimental import pallas as pl
from jax.experimental.pallas import tpu as pltpu

EPS = 1e-5


def _round_up(x, m):
    return (x + m - 1) // m * m


# ----------------------------- fused Pallas kernel --------------------------- #
def _make_block_kernel(tap1, Hs, Ho, Wo, Cin_k, Cout_p, proj):
    """Fused Basicblock kernel; one batch image per grid step.

    tap1   : list of 9 (phase, row_off, col_off) for conv1 / projection conv
             on the phase-split input slab.
    Hs     : rows per phase slab (phases are concatenated along rows).
    Cin_k  : channel width of the x slab as seen by the kernel.
    Cout_p : lane-padded output channel width (multiple of 128).
    """
    M = Ho * Wo

    def kernel(xph_ref, w1_ref, b1_ref, w2_ref, b2_ref, *rest):
        if proj:
            ws_ref, bsc_ref, o_ref, y1pad_ref, acc_ref = rest
        else:
            o_ref, y1pad_ref, acc_ref = rest

        def x_tap(p, ah, aw):
            base = p * Hs + ah
            v = xph_ref[0, base:base + Ho, aw:aw + Wo, :]
            return v.reshape(M, Cin_k)

        # -------- conv1 (+BN1 scale folded into w1) + bias + ReLU -> y1 ------
        acc_ref[...] = jnp.zeros_like(acc_ref)
        for t, (p, ah, aw) in enumerate(tap1):
            acc_ref[...] += jnp.dot(x_tap(p, ah, aw).astype(jnp.bfloat16),
                                    w1_ref[t],
                                    preferred_element_type=jnp.float32)
        y1 = jnp.maximum(acc_ref[...] + b1_ref[...], 0.0)

        # y1 stays in VMEM with a 1-pixel zero border for conv2 (no HBM trip).
        y1pad_ref[...] = jnp.zeros_like(y1pad_ref)
        y1pad_ref[1:Ho + 1, 1:Wo + 1, :] = y1.reshape(Ho, Wo, Cout_p)

        # -------- shortcut -> accumulator ------------------------------------
        if proj:
            acc_ref[...] = jnp.zeros_like(acc_ref)
            for t, (p, ah, aw) in enumerate(tap1):
                acc_ref[...] += jnp.dot(x_tap(p, ah, aw).astype(jnp.bfloat16),
                                        ws_ref[t],
                                        preferred_element_type=jnp.float32)
            acc_ref[...] += bsc_ref[...]
        else:
            # identity shortcut (stride==1, Cin_k == Cout_p): residual is the
            # f32 conv1-input interior, already resident in VMEM.
            acc_ref[...] = xph_ref[0, 1:Ho + 1, 1:Wo + 1, :].reshape(M, Cout_p)

        # -------- conv2 (+BN2 scale folded into w2), on top of the shortcut --
        for kh in range(3):
            for kw in range(3):
                t = kh * 3 + kw
                yg = y1pad_ref[kh:kh + Ho, kw:kw + Wo, :].reshape(M, Cout_p)
                acc_ref[...] += jnp.dot(yg.astype(jnp.bfloat16), w2_ref[t],
                                        preferred_element_type=jnp.float32)

        out = jnp.maximum(acc_ref[...] + b2_ref[...], 0.0)
        o_ref[...] = out.reshape(1, Ho, Wo, Cout_p).astype(o_ref.dtype)

    return kernel


# --------------------------- parameters / BN folding ------------------------- #
def _bn_params(keys, c):
    return dict(gamma=1.0 + 0.1 * jax.random.normal(keys[0], (c,), jnp.float32),
                beta=0.1 * jax.random.normal(keys[1], (c,), jnp.float32),
                mean=0.1 * jax.random.normal(keys[2], (c,), jnp.float32),
                var=jax.random.uniform(keys[3], (c,), jnp.float32, 0.5, 1.5))


def init_basicblock_params(key, in_planes, planes, stride):
    ks = jax.random.split(key, 16)
    p = {'w1': 0.1 * jax.random.normal(ks[0], (planes, in_planes, 3, 3), jnp.float32),
         'w2': 0.1 * jax.random.normal(ks[1], (planes, planes, 3, 3), jnp.float32),
         'bn1': _bn_params(ks[2:6], planes),
         'bn2': _bn_params(ks[6:10], planes)}
    if stride != 1 or in_planes != planes:
        p['ws'] = 0.1 * jax.random.normal(ks[10], (planes, in_planes, 3, 3), jnp.float32)
        p['bs'] = 0.1 * jax.random.normal(ks[11], (planes,), jnp.float32)
        p['bns'] = _bn_params(ks[12:16], planes)
    return p


def _fold_conv_bn(w_oihw, bn, conv_bias=None):
    """Fold eval-mode BN into the conv: returns (9,Cin,Cout) scaled W and bias."""
    s = bn['gamma'] / jnp.sqrt(bn['var'] + EPS)
    b = bn['beta'] - bn['mean'] * s
    if conv_bias is not None:                 # conv bias passes through BN
        b = b + conv_bias * s
    cout, cin = w_oihw.shape[0], w_oihw.shape[1]
    w = jnp.transpose(w_oihw, (2, 3, 1, 0)).reshape(9, cin, cout)
    return w * s[None, None, :], b


# --------------------------------- wrapper ----------------------------------- #
def basicblock_forward(x_nchw, params, in_planes, planes, stride):
    assert stride in (1, 2)
    N, Cin, H, W = x_nchw.shape
    assert Cin == in_planes
    Cout = planes
    s = stride
    Ho = (H - 1) // s + 1
    Wo = (W - 1) // s + 1
    Cout_p = _round_up(Cout, 128)
    proj = (s != 1) or (in_planes != planes)
    # Identity case (Cin == Cout, stride 1): pad x channels to Cout_p so the
    # residual is added full-width in-kernel (no masked lane ops, no separate
    # residual pad/cast pass) and every contraction dim is 128-aligned.
    Cin_k = Cin if proj else Cout_p

    # ---- input prep: one fused XLA pass over x (NCHW->NHWC, zero pad=1,
    #      stride phase-split, channel pad).  Replaces the 9x im2col blow-up.
    x = jnp.transpose(x_nchw, (0, 2, 3, 1)).astype(jnp.float32)
    Hs = Ho + 2 // s                       # rows per phase slab
    Ws = Wo + 2 // s                       # cols per phase slab
    xpad = jnp.pad(x, ((0, 0),
                       (1, s * Hs - H - 1),
                       (1, s * Ws - W - 1),
                       (0, Cin_k - Cin)))
    phases = [xpad[:, ph::s, pw::s, :] for ph in range(s) for pw in range(s)]
    xph = jnp.concatenate(phases, axis=1)  # (N, s*s*Hs, Ws, Cin_k)
    n_ph = s * s
    tap1 = [((kh % s) * s + (kw % s), kh // s, kw // s)
            for kh in range(3) for kw in range(3)]

    # ---- weights: fold BN scale, pad channel dims, bf16 for the MXU.
    w1, b1 = _fold_conv_bn(params['w1'], params['bn1'])
    w2, b2 = _fold_conv_bn(params['w2'], params['bn2'])
    w1p = jnp.pad(w1, ((0, 0), (0, Cin_k - Cin), (0, Cout_p - Cout))).astype(jnp.bfloat16)
    w2p = jnp.pad(w2, ((0, 0), (0, Cout_p - Cout), (0, Cout_p - Cout))).astype(jnp.bfloat16)
    b1p = jnp.pad(b1, (0, Cout_p - Cout)).reshape(1, Cout_p).astype(jnp.float32)
    b2p = jnp.pad(b2, (0, Cout_p - Cout)).reshape(1, Cout_p).astype(jnp.float32)

    args = [xph, w1p, b1p, w2p, b2p]
    in_specs = [
        pl.BlockSpec((1, n_ph * Hs, Ws, Cin_k), lambda n: (n, 0, 0, 0)),  # streamed
        pl.BlockSpec((9, Cin_k, Cout_p), lambda n: (0, 0, 0)),            # resident
        pl.BlockSpec((1, Cout_p), lambda n: (0, 0)),                      # resident
        pl.BlockSpec((9, Cout_p, Cout_p), lambda n: (0, 0, 0)),           # resident
        pl.BlockSpec((1, Cout_p), lambda n: (0, 0)),                      # resident
    ]
    if proj:
        ws, bs = _fold_conv_bn(params['ws'], params['bns'], params['bs'])
        wsp = jnp.pad(ws, ((0, 0), (0, Cin_k - Cin), (0, Cout_p - Cout))).astype(jnp.bfloat16)
        bsp = jnp.pad(bs, (0, Cout_p - Cout)).reshape(1, Cout_p).astype(jnp.float32)
        args += [wsp, bsp]
        in_specs += [pl.BlockSpec((9, Cin_k, Cout_p), lambda n: (0, 0, 0)),
                     pl.BlockSpec((1, Cout_p), lambda n: (0, 0))]

    # ---- VMEM budget from the actual footprint (v7x only has 64 MiB / TC).
    F32, BF16 = 4, 2
    in_bytes = (n_ph * Hs * Ws * Cin_k * F32
                + 9 * Cin_k * Cout_p * BF16 + 9 * Cout_p * Cout_p * BF16
                + 2 * Cout_p * F32
                + ((9 * Cin_k * Cout_p * BF16 + Cout_p * F32) if proj else 0))
    out_bytes = Ho * Wo * Cout_p * F32
    scratch_bytes = ((Ho + 2) * (Wo + 2) + Ho * Wo) * Cout_p * F32
    footprint = 2 * (in_bytes + out_bytes) + scratch_bytes   # double-buffered blocks
    vmem_limit = int(min(max(3 * footprint, 16 << 20), 64 << 20))

    flops = 2 * N * Ho * Wo * 9 * (Cin_k * Cout_p * (2 if proj else 1)
                                   + Cout_p * Cout_p)
    bytes_accessed = (N * (n_ph * Hs * Ws * Cin_k * F32 + out_bytes)
                      + (in_bytes - n_ph * Hs * Ws * Cin_k * F32))

    kernel = _make_block_kernel(tap1, Hs, Ho, Wo, Cin_k, Cout_p, proj)

    out = pl.pallas_call(
        kernel,
        out_shape=jax.ShapeDtypeStruct((N, Ho, Wo, Cout_p), jnp.float32),
        grid=(N,),
        in_specs=in_specs,
        out_specs=pl.BlockSpec((1, Ho, Wo, Cout_p), lambda n: (n, 0, 0, 0)),
        scratch_shapes=[
            pltpu.VMEM((Ho + 2, Wo + 2, Cout_p), jnp.float32),   # y1 with zero border
            pltpu.VMEM((Ho * Wo, Cout_p), jnp.float32),          # f32 accumulator
        ],
        compiler_params=pltpu.CompilerParams(
            dimension_semantics=("parallel",),
            vmem_limit_bytes=vmem_limit),
        cost_estimate=pl.CostEstimate(flops=flops, transcendentals=0,
                                      bytes_accessed=bytes_accessed),
    )(*args)

    out = out[..., :Cout]                      # drop lane padding
    return jnp.transpose(out, (0, 3, 1, 2))    # NHWC -> NCHW


# ------------------------------ pure-JAX reference ---------------------------- #
def _ref_block(x, params, in_planes, planes, stride):
    def conv(x, w, s, b=None):
        y = lax.conv_general_dilated(x, w, (s, s), ((1, 1), (1, 1)),
                                     dimension_numbers=('NCHW', 'OIHW', 'NCHW'))
        return y if b is None else y + b[None, :, None, None]

    def bn(x, p):
        return ((x - p['mean'][None, :, None, None])
                / jnp.sqrt(p['var'][None, :, None, None] + EPS)
                * p['gamma'][None, :, None, None] + p['beta'][None, :, None, None])

    out = jax.nn.relu(bn(conv(x, params['w1'], stride), params['bn1']))
    out = bn(conv(out, params['w2'], 1), params['bn2'])
    if stride != 1 or in_planes != planes:
        sc = bn(conv(x, params['ws'], stride, params['bs']), params['bns'])
    else:
        sc = x
    return jax.nn.relu(out + sc)


# ------------------------------------ main ------------------------------------ #
if __name__ == "__main__":
    key = jax.random.PRNGKey(0)
    kx, kp1, kp2 = jax.random.split(key, 3)
    x = jax.random.normal(kx, (2, 4, 16, 16), jnp.float32)

    # bf16 MXU feeds (f32 accumulate / f32 residual) -> modest tolerance.
    TOL = dict(rtol=2e-2, atol=2e-2)

    # Case 1: projection shortcut (stride=2, 4 -> 8 channels)
    p1 = init_basicblock_params(kp1, in_planes=4, planes=8, stride=2)
    out1 = jax.block_until_ready(basicblock_forward(x, p1, 4, 8, 2))
    ref1 = _ref_block(x, p1, 4, 8, 2)
    np.testing.assert_allclose(np.asarray(out1), np.asarray(ref1), **TOL)

    # Case 2: identity shortcut (stride=1, 4 -> 4 channels)
    p2 = init_basicblock_params(kp2, in_planes=4, planes=4, stride=1)
    out2 = jax.block_until_ready(basicblock_forward(x, p2, 4, 4, 1))
    ref2 = _ref_block(x, p2, 4, 4, 1)
    np.testing.assert_allclose(np.asarray(out2), np.asarray(ref2), **TOL)

    print("KERNEL_OK")
</pallas_src>

<mosaic_0001>
module attributes {stable_mosaic.version = 11 : i64} {
  func.func @kernel(%arg0: i32, %arg1: memref<1x36x9x4xf32, #tpu.memory_space<vmem>>, %arg2: memref<9x4x128xbf16, #tpu.memory_space<vmem>>, %arg3: memref<1x128xf32, #tpu.memory_space<vmem>>, %arg4: memref<9x128x128xbf16, #tpu.memory_space<vmem>>, %arg5: memref<1x128xf32, #tpu.memory_space<vmem>>, %arg6: memref<9x4x128xbf16, #tpu.memory_space<vmem>>, %arg7: memref<1x128xf32, #tpu.memory_space<vmem>>, %arg8: memref<1x8x8x128xf32, #tpu.memory_space<vmem>>, %arg9: memref<10x10x128xf32, #tpu.memory_space<vmem>>, %arg10: memref<64x128xf32, #tpu.memory_space<vmem>>) attributes {dimension_semantics = [#tpu.dimension_semantics<parallel>], iteration_bounds = array<i64: 2>, scalar_prefetch = 0 : i64, scratch_operands = 2 : i64, tpu.core_type = #tpu.core_type<tc>, window_params = [{transform_indices = @transform_0, window_bounds = array<i64: 1, 36, 9, 4>}, {pipeline_mode = #tpu.pipeline_mode<synchronous>, transform_indices = @transform_1, window_bounds = array<i64: 9, 4, 128>}, {pipeline_mode = #tpu.pipeline_mode<synchronous>, transform_indices = @transform_2, window_bounds = array<i64: 1, 128>}, {pipeline_mode = #tpu.pipeline_mode<synchronous>, transform_indices = @transform_3, window_bounds = array<i64: 9, 128, 128>}, {pipeline_mode = #tpu.pipeline_mode<synchronous>, transform_indices = @transform_4, window_bounds = array<i64: 1, 128>}, {pipeline_mode = #tpu.pipeline_mode<synchronous>, transform_indices = @transform_5, window_bounds = array<i64: 9, 4, 128>}, {pipeline_mode = #tpu.pipeline_mode<synchronous>, transform_indices = @transform_6, window_bounds = array<i64: 1, 128>}, {transform_indices = @transform_7, window_bounds = array<i64: 1, 8, 8, 128>}]} {
    %cst = arith.constant 0.000000e+00 : f32
    %0 = vector.broadcast %cst : f32 to vector<64x128xf32>
    %c0 = arith.constant 0 : index
    %c0_0 = arith.constant 0 : index
    %1 = vector.load %arg10[%c0, %c0_0] : memref<64x128xf32, #tpu.memory_space<vmem>>, vector<64x128xf32>
    tpu.vector_store %arg10[%c0, %c0_0], %0 {strides = array<i32>} : memref<64x128xf32, #tpu.memory_space<vmem>>, vector<64x128xf32>,
    %c0_1 = arith.constant 0 : index
    %c0_2 = arith.constant 0 : index
    %2 = vector.load %arg10[%c0_1, %c0_2] : memref<64x128xf32, #tpu.memory_space<vmem>>, vector<64x128xf32>
    %c0_3 = arith.constant 0 : index
    %c0_4 = arith.constant 0 : index
    %c0_5 = arith.constant 0 : index
    %c0_6 = arith.constant 0 : index
    %3 = vector.load %arg1[%c0_3, %c0_4, %c0_5, %c0_6] : memref<1x36x9x4xf32, #tpu.memory_space<vmem>>, vector<1x8x8x4xf32>
    %4 = vector.shape_cast %3 : vector<1x8x8x4xf32> to vector<8x8x4xf32>
    %5 = vector.shape_cast %4 : vector<8x8x4xf32> to vector<64x4xf32>
    %6 = arith.truncf %5 : vector<64x4xf32> to vector<64x4xbf16>
    %c0_7 = arith.constant 0 : index
    %c0_8 = arith.constant 0 : index
    %c0_9 = arith.constant 0 : index
    %7 = vector.load %arg2[%c0_7, %c0_8, %c0_9] : memref<9x4x128xbf16, #tpu.memory_space<vmem>>, vector<1x4x128xbf16>
    %8 = vector.shape_cast %7 : vector<1x4x128xbf16> to vector<4x128xbf16>
    %cst_10 = arith.constant dense<0.000000e+00> : vector<64x128xf32>
    %9 = tpu.matmul %6, %8, %cst_10 {dimension_numbers = #tpu.dot_dimension_numbers<[1], [0], [0], [1], [0, 0, 1, 1], [], []>} : vector<64x4xbf16>, vector<4x128xbf16>, vector<64x128xf32> -> vector<64x128xf32>
    %10 = arith.addf %2, %9 : vector<64x128xf32>
    %c0_11 = arith.constant 0 : index
    %c0_12 = arith.constant 0 : index
    %11 = vector.load %arg10[%c0_11, %c0_12] : memref<64x128xf32, #tpu.memory_space<vmem>>, vector<64x128xf32>
    tpu.vector_store %arg10[%c0_11, %c0_12], %10 {strides = array<i32>} : memref<64x128xf32, #tpu.memory_space<vmem>>, vector<64x128xf32>,
    %c0_13 = arith.constant 0 : index
    %c0_14 = arith.constant 0 : index
    %12 = vector.load %arg10[%c0_13, %c0_14] : memref<64x128xf32, #tpu.memory_space<vmem>>, vector<64x128xf32>
    %c0_15 = arith.constant 0 : index
    %c9 = arith.constant 9 : index
    %c0_16 = arith.constant 0 : index
    %c0_17 = arith.constant 0 : index
    %13 = vector.load %arg1[%c0_15, %c9, %c0_16, %c0_17] : memref<1x36x9x4xf32, #tpu.memory_space<vmem>>, vector<1x8x8x4xf32>
    %14 = vector.shape_cast %13 : vector<1x8x8x4xf32> to vector<8x8x4xf32>
    %15 = vector.shape_cast %14 : vector<8x8x4xf32> to vector<64x4xf32>
    %16 = arith.truncf %15 : vector<64x4xf32> to vector<64x4xbf16>
    %c1 = arith.constant 1 : index
    %c0_18 = arith.constant 0 : index
    %c0_19 = arith.constant 0 : index
    %17 = vector.load %arg2[%c1, %c0_18, %c0_19] : memref<9x4x128xbf16, #tpu.memory_space<vmem>>, vector<1x4x128xbf16>
    %18 = vector.shape_cast %17 : vector<1x4x128xbf16> to vector<4x128xbf16>
    %cst_20 = arith.constant dense<0.000000e+00> : vector<64x128xf32>
    %19 = tpu.matmul %16, %18, %cst_20 {dimension_numbers = #tpu.dot_dimension_numbers<[1], [0], [0], [1], [0, 0, 1, 1], [], []>} : vector<64x4xbf16>, vector<4x128xbf16>, vector<64x128xf32> -> vector<64x128xf32>
    %20 = arith.addf %12, %19 : vector<64x128xf32>
    %c0_21 = arith.constant 0 : index
    %c0_22 = arith.constant 0 : index
    %21 = vector.load %arg10[%c0_21, %c0_22] : memref<64x128xf32, #tpu.memory_space<vmem>>, vector<64x128xf32>
    tpu.vector_store %arg10[%c0_21, %c0_22], %20 {strides = array<i32>} : memref<64x128xf32, #tpu.memory_space<vmem>>, vector<64x128xf32>,
    %c0_23 = arith.constant 0 : index
    %c0_24 = arith.constant 0 : index
    %22 = vector.load %arg10[%c0_23, %c0_24] : memref<64x128xf32, #tpu.memory_space<vmem>>, vector<64x128xf32>
    %c0_25 = arith.constant 0 : index
    %c0_26 = arith.constant 0 : index
    %c1_27 = arith.constant 1 : index
    %c0_28 = arith.constant 0 : index
    %23 = vector.load %arg1[%c0_25, %c0_26, %c1_27, %c0_28] : memref<1x36x9x4xf32, #tpu.memory_space<vmem>>, vector<1x8x8x4xf32>
    %24 = vector.shape_cast %23 : vector<1x8x8x4xf32> to vector<8x8x4xf32>
    %25 = vector.shape_cast %24 : vector<8x8x4xf32> to vector<64x4xf32>
    %26 = arith.truncf %25 : vector<64x4xf32> to vector<64x4xbf16>
    %c2 = arith.constant 2 : index
    %c0_29 = arith.constant 0 : index
    %c0_30 = arith.constant 0 : index
    %27 = vector.load %arg2[%c2, %c0_29, %c0_30] : memref<9x4x128xbf16, #tpu.memory_space<vmem>>, vector<1x4x128xbf16>
    %28 = vector.shape_cast %27 : vector<1x4x128xbf16> to vector<4x128xbf16>
    %cst_31 = arith.constant dense<0.000000e+00> : vector<64x128xf32>
    %29 = tpu.matmul %26, %28, %cst_31 {dimension_numbers = #tpu.dot_dimension_numbers<[1], [0], [0], [1], [0, 0, 1, 1], [], []>} : vector<64x4xbf16>, vector<4x128xbf16>, vector<64x128xf32> -> vector<64x128xf32>
    %30 = arith.addf %22, %29 : vector<64x128xf32>
    %c0_32 = arith.constant 0 : index
    %c0_33 = arith.constant 0 : index
    %31 = vector.load %arg10[%c0_32, %c0_33] : memref<64x128xf32, #tpu.memory_space<vmem>>, vector<64x128xf32>
    tpu.vector_store %arg10[%c0_32, %c0_33], %30 {strides = array<i32>} : memref<64x128xf32, #tpu.memory_space<vmem>>, vector<64x128xf32>,
    %c0_34 = arith.constant 0 : index
    %c0_35 = arith.constant 0 : index
    %32 = vector.load %arg10[%c0_34, %c0_35] : memref<64x128xf32, #tpu.memory_space<vmem>>, vector<64x128xf32>
    %c0_36 = arith.constant 0 : index
    %c18 = arith.constant 18 : index
    %c0_37 = arith.constant 0 : index
    %c0_38 = arith.constant 0 : index
    %33 = vector.load %arg1[%c0_36, %c18, %c0_37, %c0_38] : memref<1x36x9x4xf32, #tpu.memory_space<vmem>>, vector<1x8x8x4xf32>
    %34 = vector.shape_cast %33 : vector<1x8x8x4xf32> to vector<8x8x4xf32>
    %35 = vector.shape_cast %34 : vector<8x8x4xf32> to vector<64x4xf32>
    %36 = arith.truncf %35 : vector<64x4xf32> to vector<64x4xbf16>
    %c3 = arith.constant 3 : index
    %c0_39 = arith.constant 0 : index
    %c0_40 = arith.constant 0 : index
    %37 = vector.load %arg2[%c3, %c0_39, %c0_40] : memref<9x4x128xbf16, #tpu.memory_space<vmem>>, vector<1x4x128xbf16>
    %38 = vector.shape_cast %37 : vector<1x4x128xbf16> to vector<4x128xbf16>
    %cst_41 = arith.constant dense<0.000000e+00> : vector<64x128xf32>
    %39 = tpu.matmul %36, %38, %cst_41 {dimension_numbers = #tpu.dot_dimension_numbers<[1], [0], [0], [1], [0, 0, 1, 1], [], []>} : vector<64x4xbf16>, vector<4x128xbf16>, vector<64x128xf32> -> vector<64x128xf32>
    %40 = arith.addf %32, %39 : vector<64x128xf32>
    %c0_42 = arith.constant 0 : index
    %c0_43 = arith.constant 0 : index
    %41 = vector.load %arg10[%c0_42, %c0_43] : memref<64x128xf32, #tpu.memory_space<vmem>>, vector<64x128xf32>
    tpu.vector_store %arg10[%c0_42, %c0_43], %40 {strides = array<i32>} : memref<64x128xf32, #tpu.memory_space<vmem>>, vector<64x128xf32>,
    %c0_44 = arith.constant 0 : index
    %c0_45 = arith.constant 0 : index
    %42 = vector.load %arg10[%c0_44, %c0_45] : memref<64x128xf32, #tpu.memory_space<vmem>>, vector<64x128xf32>
    %c0_46 = arith.constant 0 : index
    %c27 = arith.constant 27 : index
    %c0_47 = arith.constant 0 : index
    %c0_48 = arith.constant 0 : index
    %43 = vector.load %arg1[%c0_46, %c27, %c0_47, %c0_48] : memref<1x36x9x4xf32, #tpu.memory_space<vmem>>, vector<1x8x8x4xf32>
    %44 = vector.shape_cast %43 : vector<1x8x8x4xf32> to vector<8x8x4xf32>
    %45 = vector.shape_cast %44 : vector<8x8x4xf32> to vector<64x4xf32>
    %46 = arith.truncf %45 : vector<64x4xf32> to vector<64x4xbf16>
    %c4 = arith.constant 4 : index
    %c0_49 = arith.constant 0 : index
    %c0_50 = arith.constant 0 : index
    %47 = vector.load %arg2[%c4, %c0_49, %c0_50] : memref<9x4x128xbf16, #tpu.memory_space<vmem>>, vector<1x4x128xbf16>
    %48 = vector.shape_cast %47 : vector<1x4x128xbf16> to vector<4x128xbf16>
    %cst_51 = arith.constant dense<0.000000e+00> : vector<64x128xf32>
    %49 = tpu.matmul %46, %48, %cst_51 {dimension_numbers = #tpu.dot_dimension_numbers<[1], [0], [0], [1], [0, 0, 1, 1], [], []>} : vector<64x4xbf16>, vector<4x128xbf16>, vector<64x128xf32> -> vector<64x128xf32>
    %50 = arith.addf %42, %49 : vector<64x128xf32>
    %c0_52 = arith.constant 0 : index
    %c0_53 = arith.constant 0 : index
    %51 = vector.load %arg10[%c0_52, %c0_53] : memref<64x128xf32, #tpu.memory_space<vmem>>, vector<64x128xf32>
    tpu.vector_store %arg10[%c0_52, %c0_53], %50 {strides = array<i32>} : memref<64x128xf32, #tpu.memory_space<vmem>>, vector<64x128xf32>,
    %c0_54 = arith.constant 0 : index
    %c0_55 = arith.constant 0 : index
    %52 = vector.load %arg10[%c0_54, %c0_55] : memref<64x128xf32, #tpu.memory_space<vmem>>, vector<64x128xf32>
    %c0_56 = arith.constant 0 : index
    %c18_57 = arith.constant 18 : index
    %c1_58 = arith.constant 1 : index
    %c0_59 = arith.constant 0 : index
    %53 = vector.load %arg1[%c0_56, %c18_57, %c1_58, %c0_59] : memref<1x36x9x4xf32, #tpu.memory_space<vmem>>, vector<1x8x8x4xf32>
    %54 = vector.shape_cast %53 : vector<1x8x8x4xf32> to vector<8x8x4xf32>
    %55 = vector.shape_cast %54 : vector<8x8x4xf32> to vector<64x4xf32>
    %56 = arith.truncf %55 : vector<64x4xf32> to vector<64x4xbf16>
    %c5 = arith.constant 5 : index
    %c0_60 = arith.constant 0 : index
    %c0_61 = arith.constant 0 : index
    %57 = vector.load %arg2[%c5, %c0_60, %c0_61] : memref<9x4x128xbf16, #tpu.memory_space<vmem>>, vector<1x4x128xbf16>
    %58 = vector.shape_cast %57 : vector<1x4x128xbf16> to vector<4x128xbf16>
    %cst_62 = arith.constant dense<0.000000e+00> : vector<64x128xf32>
    %59 = tpu.matmul %56, %58, %cst_62 {dimension_numbers = #tpu.dot_dimension_numbers<[1], [0], [0], [1], [0, 0, 1, 1], [], []>} : vector<64x4xbf16>, vector<4x128xbf16>, vector<64x128xf32> -> vector<64x128xf32>
    %60 = arith.addf %52, %59 : vector<64x128xf32>
    %c0_63 = arith.constant 0 : index
    %c0_64 = arith.constant 0 : index
    %61 = vector.load %arg10[%c0_63, %c0_64] : memref<64x128xf32, #tpu.memory_space<vmem>>, vector<64x128xf32>
    tpu.vector_store %arg10[%c0_63, %c0_64], %60 {strides = array<i32>} : memref<64x128xf32, #tpu.memory_space<vmem>>, vector<64x128xf32>,
    %c0_65 = arith.constant 0 : index
    %c0_66 = arith.constant 0 : index
    %62 = vector.load %arg10[%c0_65, %c0_66] : memref<64x128xf32, #tpu.memory_space<vmem>>, vector<64x128xf32>
    %c0_67 = arith.constant 0 : index
    %c1_68 = arith.constant 1 : index
    %c0_69 = arith.constant 0 : index
    %c0_70 = arith.constant 0 : index
    %63 = vector.load %arg1[%c0_67, %c1_68, %c0_69, %c0_70] : memref<1x36x9x4xf32, #tpu.memory_space<vmem>>, vector<1x8x8x4xf32>
    %64 = vector.shape_cast %63 : vector<1x8x8x4xf32> to vector<8x8x4xf32>
    %65 = vector.shape_cast %64 : vector<8x8x4xf32> to vector<64x4xf32>
    %66 = arith.truncf %65 : vector<64x4xf32> to vector<64x4xbf16>
    %c6 = arith.constant 6 : index
    %c0_71 = arith.constant 0 : index
    %c0_72 = arith.constant 0 : index
    %67 = vector.load %arg2[%c6, %c0_71, %c0_72] : memref<9x4x128xbf16, #tpu.memory_space<vmem>>, vector<1x4x128xbf16>
    %68 = vector.shape_cast %67 : vector<1x4x128xbf16> to vector<4x128xbf16>
    %cst_73 = arith.constant dense<0.000000e+00> : vector<64x128xf32>
    %69 = tpu.matmul %66, %68, %cst_73 {dimension_numbers = #tpu.dot_dimension_numbers<[1], [0], [0], [1], [0, 0, 1, 1], [], []>} : vector<64x4xbf16>, vector<4x128xbf16>, vector<64x128xf32> -> vector<64x128xf32>
    %70 = arith.addf %62, %69 : vector<64x128xf32>
    %c0_74 = arith.constant 0 : index
    %c0_75 = arith.constant 0 : index
    %71 = vector.load %arg10[%c0_74, %c0_75] : memref<64x128xf32, #tpu.memory_space<vmem>>, vector<64x128xf32>
    tpu.vector_store %arg10[%c0_74, %c0_75], %70 {strides = array<i32>} : memref<64x128xf32, #tpu.memory_space<vmem>>, vector<64x128xf32>,
    %c0_76 = arith.constant 0 : index
    %c0_77 = arith.constant 0 : index
    %72 = vector.load %arg10[%c0_76, %c0_77] : memref<64x128xf32, #tpu.memory_space<vmem>>, vector<64x128xf32>
    %c0_78 = arith.constant 0 : index
    %c10 = arith.constant 10 : index
    %c0_79 = arith.constant 0 : index
    %c0_80 = arith.constant 0 : index
    %73 = vector.load %arg1[%c0_78, %c10, %c0_79, %c0_80] : memref<1x36x9x4xf32, #tpu.memory_space<vmem>>, vector<1x8x8x4xf32>
    %74 = vector.shape_cast %73 : vector<1x8x8x4xf32> to vector<8x8x4xf32>
    %75 = vector.shape_cast %74 : vector<8x8x4xf32> to vector<64x4xf32>
    %76 = arith.truncf %75 : vector<64x4xf32> to vector<64x4xbf16>
    %c7 = arith.constant 7 : index
    %c0_81 = arith.constant 0 : index
    %c0_82 = arith.constant 0 : index
    %77 = vector.load %arg2[%c7, %c0_81, %c0_82] : memref<9x4x128xbf16, #tpu.memory_space<vmem>>, vector<1x4x128xbf16>
    %78 = vector.shape_cast %77 : vector<1x4x128xbf16> to vector<4x128xbf16>
    %cst_83 = arith.constant dense<0.000000e+00> : vector<64x128xf32>
    %79 = tpu.matmul %76, %78, %cst_83 {dimension_numbers = #tpu.dot_dimension_numbers<[1], [0], [0], [1], [0, 0, 1, 1], [], []>} : vector<64x4xbf16>, vector<4x128xbf16>, vector<64x128xf32> -> vector<64x128xf32>
    %80 = arith.addf %72, %79 : vector<64x128xf32>
    %c0_84 = arith.constant 0 : index
    %c0_85 = arith.constant 0 : index
    %81 = vector.load %arg10[%c0_84, %c0_85] : memref<64x128xf32, #tpu.memory_space<vmem>>, vector<64x128xf32>
    tpu.vector_store %arg10[%c0_84, %c0_85], %80 {strides = array<i32>} : memref<64x128xf32, #tpu.memory_space<vmem>>, vector<64x128xf32>,
    %c0_86 = arith.constant 0 : index
    %c0_87 = arith.constant 0 : index
    %82 = vector.load %arg10[%c0_86, %c0_87] : memref<64x128xf32, #tpu.memory_space<vmem>>, vector<64x128xf32>
    %c0_88 = arith.constant 0 : index
    %c1_89 = arith.constant 1 : index
    %c1_90 = arith.constant 1 : index
    %c0_91 = arith.constant 0 : index
    %83 = vector.load %arg1[%c0_88, %c1_89, %c1_90, %c0_91] : memref<1x36x9x4xf32, #tpu.memory_space<vmem>>, vector<1x8x8x4xf32>
    %84 = vector.shape_cast %83 : vector<1x8x8x4xf32> to vector<8x8x4xf32>
    %85 = vector.shape_cast %84 : vector<8x8x4xf32> to vector<64x4xf32>
    %86 = arith.truncf %85 : vector<64x4xf32> to vector<64x4xbf16>
    %c8 = arith.constant 8 : index
    %c0_92 = arith.constant 0 : index
    %c0_93 = arith.constant 0 : index
    %87 = vector.load %arg2[%c8, %c0_92, %c0_93] : memref<9x4x128xbf16, #tpu.memory_space<vmem>>, vector<1x4x128xbf16>
    %88 = vector.shape_cast %87 : vector<1x4x128xbf16> to vector<4x128xbf16>
    %cst_94 = arith.constant dense<0.000000e+00> : vector<64x128xf32>
    %89 = tpu.matmul %86, %88, %cst_94 {dimension_numbers = #tpu.dot_dimension_numbers<[1], [0], [0], [1], [0, 0, 1, 1], [], []>} : vector<64x4xbf16>, vector<4x128xbf16>, vector<64x128xf32> -> vector<64x128xf32>
    %90 = arith.addf %82, %89 : vector<64x128xf32>
    %c0_95 = arith.constant 0 : index
    %c0_96 = arith.constant 0 : index
    %91 = vector.load %arg10[%c0_95, %c0_96] : memref<64x128xf32, #tpu.memory_space<vmem>>, vector<64x128xf32>
    tpu.vector_store %arg10[%c0_95, %c0_96], %90 {strides = array<i32>} : memref<64x128xf32, #tpu.memory_space<vmem>>, vector<64x128xf32>,
    %c0_97 = arith.constant 0 : index
    %c0_98 = arith.constant 0 : index
    %92 = vector.load %arg10[%c0_97, %c0_98] : memref<64x128xf32, #tpu.memory_space<vmem>>, vector<64x128xf32>
    %c0_99 = arith.constant 0 : index
    %c0_100 = arith.constant 0 : index
    %93 = vector.load %arg3[%c0_99, %c0_100] : memref<1x128xf32, #tpu.memory_space<vmem>>, vector<1x128xf32>
    %94 = vector.broadcast %93 : vector<1x128xf32> to vector<64x128xf32>
    %95 = arith.addf %92, %94 : vector<64x128xf32>
    %cst_101 = arith.constant 0.000000e+00 : f32
    %96 = vector.broadcast %cst_101 : f32 to vector<64x128xf32>
    %97 = arith.maximumf %95, %96 : vector<64x128xf32>
    %cst_102 = arith.constant 0.000000e+00 : f32
    %98 = vector.broadcast %cst_102 : f32 to vector<10x10x128xf32>
    %c0_103 = arith.constant 0 : index
    %c0_104 = arith.constant 0 : index
    %c0_105 = arith.constant 0 : index
    %99 = vector.load %arg9[%c0_103, %c0_104, %c0_105] : memref<10x10x128xf32, #tpu.memory_space<vmem>>, vector<10x10x128xf32>
    tpu.vector_store %arg9[%c0_103, %c0_104, %c0_105], %98 {strides = array<i32>} : memref<10x10x128xf32, #tpu.memory_space<vmem>>, vector<10x10x128xf32>,
    %100 = vector.shape_cast %97 : vector<64x128xf32> to vector<8x8x128xf32>
    %c1_106 = arith.constant 1 : index
    %c1_107 = arith.constant 1 : index
    %c0_108 = arith.constant 0 : index
    %101 = vector.load %arg9[%c1_106, %c1_107, %c0_108] : memref<10x10x128xf32, #tpu.memory_space<vmem>>, vector<8x8x128xf32>
    tpu.vector_store %arg9[%c1_106, %c1_107, %c0_108], %100 {strides = array<i32>} : memref<10x10x128xf32, #tpu.memory_space<vmem>>, vector<8x8x128xf32>,
    %cst_109 = arith.constant 0.000000e+00 : f32
    %102 = vector.broadcast %cst_109 : f32 to vector<64x128xf32>
    %c0_110 = arith.constant 0 : index
    %c0_111 = arith.constant 0 : index
    %103 = vector.load %arg10[%c0_110, %c0_111] : memref<64x128xf32, #tpu.memory_space<vmem>>, vector<64x128xf32>
    tpu.vector_store %arg10[%c0_110, %c0_111], %102 {strides = array<i32>} : memref<64x128xf32, #tpu.memory_space<vmem>>, vector<64x128xf32>,
    %c0_112 = arith.constant 0 : index
    %c0_113 = arith.constant 0 : index
    %104 = vector.load %arg10[%c0_112, %c0_113] : memref<64x128xf32, #tpu.memory_space<vmem>>, vector<64x128xf32>
    %c0_114 = arith.constant 0 : index
    %c0_115 = arith.constant 0 : index
    %c0_116 = arith.constant 0 : index
    %c0_117 = arith.constant 0 : index
    %105 = vector.load %arg1[%c0_114, %c0_115, %c0_116, %c0_117] : memref<1x36x9x4xf32, #tpu.memory_space<vmem>>, vector<1x8x8x4xf32>
    %106 = vector.shape_cast %105 : vector<1x8x8x4xf32> to vector<8x8x4xf32>
    %107 = vector.shape_cast %106 : vector<8x8x4xf32> to vector<64x4xf32>
    %108 = arith.truncf %107 : vector<64x4xf32> to vector<64x4xbf16>
    %c0_118 = arith.constant 0 : index
    %c0_119 = arith.constant 0 : index
    %c0_120 = arith.constant 0 : index
    %109 = vector.load %arg6[%c0_118, %c0_119, %c0_120] : memref<9x4x128xbf16, #tpu.memory_space<vmem>>, vector<1x4x128xbf16>
    %110 = vector.shape_cast %109 : vector<1x4x128xbf16> to vector<4x128xbf16>
    %cst_121 = arith.constant dense<0.000000e+00> : vector<64x128xf32>
    %111 = tpu.matmul %108, %110, %cst_121 {dimension_numbers = #tpu.dot_dimension_numbers<[1], [0], [0], [1], [0, 0, 1, 1], [], []>} : vector<64x4xbf16>, vector<4x128xbf16>, vector<64x128xf32> -> vector<64x128xf32>
    %112 = arith.addf %104, %111 : vector<64x128xf32>
    %c0_122 = arith.constant 0 : index
    %c0_123 = arith.constant 0 : index
    %113 = vector.load %arg10[%c0_122, %c0_123] : memref<64x128xf32, #tpu.memory_space<vmem>>, vector<64x128xf32>
    tpu.vector_store %arg10[%c0_122, %c0_123], %112 {strides = array<i32>} : memref<64x128xf32, #tpu.memory_space<vmem>>, vector<64x128xf32>,
    %c0_124 = arith.constant 0 : index
    %c0_125 = arith.constant 0 : index
    %114 = vector.load %arg10[%c0_124, %c0_125] : memref<64x128xf32, #tpu.memory_space<vmem>>, vector<64x128xf32>
    %c0_126 = arith.constant 0 : index
    %c9_127 = arith.constant 9 : index
    %c0_128 = arith.constant 0 : index
    %c0_129 = arith.constant 0 : index
    %115 = vector.load %arg1[%c0_126, %c9_127, %c0_128, %c0_129] : memref<1x36x9x4xf32, #tpu.memory_space<vmem>>, vector<1x8x8x4xf32>
    %116 = vector.shape_cast %115 : vector<1x8x8x4xf32> to vector<8x8x4xf32>
    %117 = vector.shape_cast %116 : vector<8x8x4xf32> to vector<64x4xf32>
    %118 = arith.truncf %117 : vector<64x4xf32> to vector<64x4xbf16>
    %c1_130 = arith.constant 1 : index
    %c0_131 = arith.constant 0 : index
    %c0_132 = arith.constant 0 : index
    %119 = vector.load %arg6[%c1_130, %c0_131, %c0_132] : memref<9x4x128xbf16, #tpu.memory_space<vmem>>, vector<1x4x128xbf16>
    %120 = vector.shape_cast %119 : vector<1x4x128xbf16> to vector<4x128xbf16>
    %cst_133 = arith.constant dense<0.000000e+00> : vector<64x128xf32>
    %121 = tpu.matmul %118, %120, %cst_133 {dimension_numbers = #tpu.dot_dimension_numbers<[1], [0], [0], [1], [0, 0, 1, 1], [], []>} : vector<64x4xbf16>, vector<4x128xbf16>, vector<64x128xf32> -> vector<64x128xf32>
    %122 = arith.addf %114, %121 : vector<64x128xf32>
    %c0_134 = arith.constant 0 : index
    %c0_135 = arith.constant 0 : index
    %123 = vector.load %arg10[%c0_134, %c0_135] : memref<64x128xf32, #tpu.memory_space<vmem>>, vector<64x128xf32>
    tpu.vector_store %arg10[%c0_134, %c0_135], %122 {strides = array<i32>} : memref<64x128xf32, #tpu.memory_space<vmem>>, vector<64x128xf32>,
    %c0_136 = arith.constant 0 : index
    %c0_137 = arith.constant 0 : index
    %124 = vector.load %arg10[%c0_136, %c0_137] : memref<64x128xf32, #tpu.memory_space<vmem>>, vector<64x128xf32>
    %c0_138 = arith.constant 0 : index
    %c0_139 = arith.constant 0 : index
    %c1_140 = arith.constant 1 : index
    %c0_141 = arith.constant 0 : index
    %125 = vector.load %arg1[%c0_138, %c0_139, %c1_140, %c0_141] : memref<1x36x9x4xf32, #tpu.memory_space<vmem>>, vector<1x8x8x4xf32>
    %126 = vector.shape_cast %125 : vector<1x8x8x4xf32> to vector<8x8x4xf32>
    %127 = vector.shape_cast %126 : vector<8x8x4xf32> to vector<64x4xf32>
    %128 = arith.truncf %127 : vector<64x4xf32> to vector<64x4xbf16>
    %c2_142 = arith.constant 2 : index
    %c0_143 = arith.constant 0 : index
    %c0_144 = arith.constant 0 : index
    %129 = vector.load %arg6[%c2_142, %c0_143, %c0_144] : memref<9x4x128xbf16, #tpu.memory_space<vmem>>, vector<1x4x128xbf16>
    %130 = vector.shape_cast %129 : vector<1x4x128xbf16> to vector<4x128xbf16>
    %cst_145 = arith.constant dense<0.000000e+00> : vector<64x128xf32>
    %131 = tpu.matmul %128, %130, %cst_145 {dimension_numbers = #tpu.dot_dimension_numbers<[1], [0], [0], [1], [0, 0, 1, 1], [], []>} : vector<64x4xbf16>, vector<4x128xbf16>, vector<64x128xf32> -> vector<64x128xf32>
    %132 = arith.addf %124, %131 : vector<64x128xf32>
    %c0_146 = arith.constant 0 : index
    %c0_147 = arith.constant 0 : index
    %133 = vector.load %arg10[%c0_146, %c0_147] : memref<64x128xf32, #tpu.memory_space<vmem>>, vector<64x128xf32>
    tpu.vector_store %arg10[%c0_146, %c0_147], %132 {strides = array<i32>} : memref<64x128xf32, #tpu.memory_space<vmem>>, vector<64x128xf32>,
    %c0_148 = arith.constant 0 : index
    %c0_149 = arith.constant 0 : index
    %134 = vector.load %arg10[%c0_148, %c0_149] : memref<64x128xf32, #tpu.memory_space<vmem>>, vector<64x128xf32>
    %c0_150 = arith.constant 0 : index
    %c18_151 = arith.constant 18 : index
    %c0_152 = arith.constant 0 : index
    %c0_153 = arith.constant 0 : index
    %135 = vector.load %arg1[%c0_150, %c18_151, %c0_152, %c0_153] : memref<1x36x9x4xf32, #tpu.memory_space<vmem>>, vector<1x8x8x4xf32>
    %136 = vector.shape_cast %135 : vector<1x8x8x4xf32> to vector<8x8x4xf32>
    %137 = vector.shape_cast %136 : vector<8x8x4xf32> to vector<64x4xf32>
    %138 = arith.truncf %137 : vector<64x4xf32> to vector<64x4xbf16>
    %c3_154 = arith.constant 3 : index
    %c0_155 = arith.constant 0 : index
    %c0_156 = arith.constant 0 : index
    %139 = vector.load %arg6[%c3_154, %c0_155, %c0_156] : memref<9x4x128xbf16, #tpu.memory_space<vmem>>, vector<1x4x128xbf16>
    %140 = vector.shape_cast %139 : vector<1x4x128xbf16> to vector<4x128xbf16>
    %cst_157 = arith.constant dense<0.000000e+00> : vector<64x128xf32>
    %141 = tpu.matmul %138, %140, %cst_157 {dimension_numbers = #tpu.dot_dimension_numbers<[1], [0], [0], [1], [0, 0, 1, 1], [], []>} : vector<64x4xbf16>, vector<4x128xbf16>, vector<64x128xf32> -> vector<64x128xf32>
    %142 = arith.addf %134, %141 : vector<64x128xf32>
    %c0_158 = arith.constant 0 : index
    %c0_159 = arith.constant 0 : index
    %143 = vector.load %arg10[%c0_158, %c0_159] : memref<64x128xf32, #tpu.memory_space<vmem>>, vector<64x128xf32>
    tpu.vector_store %arg10[%c0_158, %c0_159], %142 {strides = array<i32>} : memref<64x128xf32, #tpu.memory_space<vmem>>, vector<64x128xf32>,
    %c0_160 = arith.constant 0 : index
    %c0_161 = arith.constant 0 : index
    %144 = vector.load %arg10[%c0_160, %c0_161] : memref<64x128xf32, #tpu.memory_space<vmem>>, vector<64x128xf32>
    %c0_162 = arith.constant 0 : index
    %c27_163 = arith.constant 27 : index
    %c0_164 = arith.constant 0 : index
    %c0_165 = arith.constant 0 : index
    %145 = vector.load %arg1[%c0_162, %c27_163, %c0_164, %c0_165] : memref<1x36x9x4xf32, #tpu.memory_space<vmem>>, vector<1x8x8x4xf32>
    %146 = vector.shape_cast %145 : vector<1x8x8x4xf32> to vector<8x8x4xf32>
    %147 = vector.shape_cast %146 : vector<8x8x4xf32> to vector<64x4xf32>
    %148 = arith.truncf %147 : vector<64x4xf32> to vector<64x4xbf16>
    %c4_166 = arith.constant 4 : index
    %c0_167 = arith.constant 0 : index
    %c0_168 = arith.constant 0 : index
    %149 = vector.load %arg6[%c4_166, %c0_167, %c0_168] : memref<9x4x128xbf16, #tpu.memory_space<vmem>>, vector<1x4x128xbf16>
    %150 = vector.shape_cast %149 : vector<1x4x128xbf16> to vector<4x128xbf16>
    %cst_169 = arith.constant dense<0.000000e+00> : vector<64x128xf32>
    %151 = tpu.matmul %148, %150, %cst_169 {dimension_numbers = #tpu.dot_dimension_numbers<[1], [0], [0], [1], [0, 0, 1, 1], [], []>} : vector<64x4xbf16>, vector<4x128xbf16>, vector<64x128xf32> -> vector<64x128xf32>
    %152 = arith.addf %144, %151 : vector<64x128xf32>
    %c0_170 = arith.constant 0 : index
    %c0_171 = arith.constant 0 : index
    %153 = vector.load %arg10[%c0_170, %c0_171] : memref<64x128xf32, #tpu.memory_space<vmem>>, vector<64x128xf32>
    tpu.vector_store %arg10[%c0_170, %c0_171], %152 {strides = array<i32>} : memref<64x128xf32, #tpu.memory_space<vmem>>, vector<64x128xf32>,
    %c0_172 = arith.constant 0 : index
    %c0_173 = arith.constant 0 : index
    %154 = vector.load %arg10[%c0_172, %c0_173] : memref<64x128xf32, #tpu.memory_space<vmem>>, vector<64x128xf32>
    %c0_174 = arith.constant 0 : index
    %c18_175 = arith.constant 18 : index
    %c1_176 = arith.constant 1 : index
    %c0_177 = arith.constant 0 : index
    %155 = vector.load %arg1[%c0_174, %c18_175, %c1_176, %c0_177] : memref<1x36x9x4xf32, #tpu.memory_space<vmem>>, vector<1x8x8x4xf32>
    %156 = vector.shape_cast %155 : vector<1x8x8x4xf32> to vector<8x8x4xf32>
    %157 = vector.shape_cast %156 : vector<8x8x4xf32> to vector<64x4xf32>
    %158 = arith.truncf %157 : vector<64x4xf32> to vector<64x4xbf16>
    %c5_178 = arith.constant 5 : index
    %c0_179 = arith.constant 0 : index
    %c0_180 = arith.constant 0 : index
    %159 = vector.load %arg6[%c5_178, %c0_179, %c0_180] : memref<9x4x128xbf16, #tpu.memory_space<vmem>>, vector<1x4x128xbf16>
    %160 = vector.shape_cast %159 : vector<1x4x128xbf16> to vector<4x128xbf16>
    %cst_181 = arith.constant dense<0.000000e+00> : vector<64x128xf32>
    %161 = tpu.matmul %158, %160, %cst_181 {dimension_numbers = #tpu.dot_dimension_numbers<[1], [0], [0], [1], [0, 0, 1, 1], [], []>} : vector<64x4xbf16>, vector<4x128xbf16>, vector<64x128xf32> -> vector<64x128xf32>
    %162 = arith.addf %154, %161 : vector<64x128xf32>
    %c0_182 = arith.constant 0 : index
    %c0_183 = arith.constant 0 : index
    %163 = vector.load %arg10[%c0_182, %c0_183] : memref<64x128xf32, #tpu.memory_space<vmem>>, vector<64x128xf32>
    tpu.vector_store %arg10[%c0_182, %c0_183], %162 {strides = array<i32>} : memref<64x128xf32, #tpu.memory_space<vmem>>, vector<64x128xf32>,
    %c0_184 = arith.constant 0 : index
    %c0_185 = arith.constant 0 : index
    %164 = vector.load %arg10[%c0_184, %c0_185] : memref<64x128xf32, #tpu.memory_space<vmem>>, vector<64x128xf32>
    %c0_186 = arith.constant 0 : index
    %c1_187 = arith.constant 1 : index
    %c0_188 = arith.constant 0 : index
    %c0_189 = arith.constant 0 : index
    %165 = vector.load %arg1[%c0_186, %c1_187, %c0_188, %c0_189] : memref<1x36x9x4xf32, #tpu.memory_space<vmem>>, vector<1x8x8x4xf32>
    %166 = vector.shape_cast %165 : vector<1x8x8x4xf32> to vector<8x8x4xf32>
    %167 = vector.shape_cast %166 : vector<8x8x4xf32> to vector<64x4xf32>
    %168 = arith.truncf %167 : vector<64x4xf32> to vector<64x4xbf16>
    %c6_190 = arith.constant 6 : index
    %c0_191 = arith.constant 0 : index
    %c0_192 = arith.constant 0 : index
    %169 = vector.load %arg6[%c6_190, %c0_191, %c0_192] : memref<9x4x128xbf16, #tpu.memory_space<vmem>>, vector<1x4x128xbf16>
    %170 = vector.shape_cast %169 : vector<1x4x128xbf16> to vector<4x128xbf16>
    %cst_193 = arith.constant dense<0.000000e+00> : vector<64x128xf32>
    %171 = tpu.matmul %168, %170, %cst_193 {dimension_numbers = #tpu.dot_dimension_numbers<[1], [0], [0], [1], [0, 0, 1, 1], [], []>} : vector<64x4xbf16>, vector<4x128xbf16>, vector<64x128xf32> -> vector<64x128xf32>
    %172 = arith.addf %164, %171 : vector<64x128xf32>
    %c0_194 = arith.constant 0 : index
    %c0_195 = arith.constant 0 : index
    %173 = vector.load %arg10[%c0_194, %c0_195] : memref<64x128xf32, #tpu.memory_space<vmem>>, vector<64x128xf32>
    tpu.vector_store %arg10[%c0_194, %c0_195], %172 {strides = array<i32>} : memref<64x128xf32, #tpu.memory_space<vmem>>, vector<64x128xf32>,
    %c0_196 = arith.constant 0 : index
    %c0_197 = arith.constant 0 : index
    %174 = vector.load %arg10[%c0_196, %c0_197] : memref<64x128xf32, #tpu.memory_space<vmem>>, vector<64x128xf32>
    %c0_198 = arith.constant 0 : index
    %c10_199 = arith.constant 10 : index
    %c0_200 = arith.constant 0 : index
    %c0_201 = arith.constant 0 : index
    %175 = vector.load %arg1[%c0_198, %c10_199, %c0_200, %c0_201] : memref<1x36x9x4xf32, #tpu.memory_space<vmem>>, vector<1x8x8x4xf32>
    %176 = vector.shape_cast %175 : vector<1x8x8x4xf32> to vector<8x8x4xf32>
    %177 = vector.shape_cast %176 : vector<8x8x4xf32> to vector<64x4xf32>
    %178 = arith.truncf %177 : vector<64x4xf32> to vector<64x4xbf16>
    %c7_202 = arith.constant 7 : index
    %c0_203 = arith.constant 0 : index
    %c0_204 = arith.constant 0 : index
    %179 = vector.load %arg6[%c7_202, %c0_203, %c0_204] : memref<9x4x128xbf16, #tpu.memory_space<vmem>>, vector<1x4x128xbf16>
    %180 = vector.shape_cast %179 : vector<1x4x128xbf16> to vector<4x128xbf16>
    %cst_205 = arith.constant dense<0.000000e+00> : vector<64x128xf32>
    %181 = tpu.matmul %178, %180, %cst_205 {dimension_numbers = #tpu.dot_dimension_numbers<[1], [0], [0], [1], [0, 0, 1, 1], [], []>} : vector<64x4xbf16>, vector<4x128xbf16>, vector<64x128xf32> -> vector<64x128xf32>
    %182 = arith.addf %174, %181 : vector<64x128xf32>
    %c0_206 = arith.constant 0 : index
    %c0_207 = arith.constant 0 : index
    %183 = vector.load %arg10[%c0_206, %c0_207] : memref<64x128xf32, #tpu.memory_space<vmem>>, vector<64x128xf32>
    tpu.vector_store %arg10[%c0_206, %c0_207], %182 {strides = array<i32>} : memref<64x128xf32, #tpu.memory_space<vmem>>, vector<64x128xf32>,
    %c0_208 = arith.constant 0 : index
    %c0_209 = arith.constant 0 : index
    %184 = vector.load %arg10[%c0_208, %c0_209] : memref<64x128xf32, #tpu.memory_space<vmem>>, vector<64x128xf32>
    %c0_210 = arith.constant 0 : index
    %c1_211 = arith.constant 1 : index
    %c1_212 = arith.constant 1 : index
    %c0_213 = arith.constant 0 : index
    %185 = vector.load %arg1[%c0_210, %c1_211, %c1_212, %c0_213] : memref<1x36x9x4xf32, #tpu.memory_space<vmem>>, vector<1x8x8x4xf32>
    %186 = vector.shape_cast %185 : vector<1x8x8x4xf32> to vector<8x8x4xf32>
    %187 = vector.shape_cast %186 : vector<8x8x4xf32> to vector<64x4xf32>
    %188 = arith.truncf %187 : vector<64x4xf32> to vector<64x4xbf16>
    %c8_214 = arith.constant 8 : index
    %c0_215 = arith.constant 0 : index
    %c0_216 = arith.constant 0 : index
    %189 = vector.load %arg6[%c8_214, %c0_215, %c0_216] : memref<9x4x128xbf16, #tpu.memory_space<vmem>>, vector<1x4x128xbf16>
    %190 = vector.shape_cast %189 : vector<1x4x128xbf16> to vector<4x128xbf16>
    %cst_217 = arith.constant dense<0.000000e+00> : vector<64x128xf32>
    %191 = tpu.matmul %188, %190, %cst_217 {dimension_numbers = #tpu.dot_dimension_numbers<[1], [0], [0], [1], [0, 0, 1, 1], [], []>} : vector<64x4xbf16>, vector<4x128xbf16>, vector<64x128xf32> -> vector<64x128xf32>
    %192 = arith.addf %184, %191 : vector<64x128xf32>
    %c0_218 = arith.constant 0 : index
    %c0_219 = arith.constant 0 : index
    %193 = vector.load %arg10[%c0_218, %c0_219] : memref<64x128xf32, #tpu.memory_space<vmem>>, vector<64x128xf32>
    tpu.vector_store %arg10[%c0_218, %c0_219], %192 {strides = array<i32>} : memref<64x128xf32, #tpu.memory_space<vmem>>, vector<64x128xf32>,
    %c0_220 = arith.constant 0 : index
    %c0_221 = arith.constant 0 : index
    %194 = vector.load %arg10[%c0_220, %c0_221] : memref<64x128xf32, #tpu.memory_space<vmem>>, vector<64x128xf32>
    %c0_222 = arith.constant 0 : index
    %c0_223 = arith.constant 0 : index
    %195 = vector.load %arg7[%c0_222, %c0_223] : memref<1x128xf32, #tpu.memory_space<vmem>>, vector<1x128xf32>
    %196 = vector.broadcast %195 : vector<1x128xf32> to vector<64x128xf32>
    %197 = arith.addf %194, %196 : vector<64x128xf32>
    %c0_224 = arith.constant 0 : index
    %c0_225 = arith.constant 0 : index
    %198 = vector.load %arg10[%c0_224, %c0_225] : memref<64x128xf32, #tpu.memory_space<vmem>>, vector<64x128xf32>
    tpu.vector_store %arg10[%c0_224, %c0_225], %197 {strides = array<i32>} : memref<64x128xf32, #tpu.memory_space<vmem>>, vector<64x128xf32>,
    %c0_226 = arith.constant 0 : index
    %c0_227 = arith.constant 0 : index
    %c0_228 = arith.constant 0 : index
    %199 = vector.load %arg9[%c0_226, %c0_227, %c0_228] : memref<10x10x128xf32, #tpu.memory_space<vmem>>, vector<8x8x128xf32>
    %200 = vector.shape_cast %199 : vector<8x8x128xf32> to vector<64x128xf32>
    %c0_229 = arith.constant 0 : index
    %c0_230 = arith.constant 0 : index
    %201 = vector.load %arg10[%c0_229, %c0_230] : memref<64x128xf32, #tpu.memory_space<vmem>>, vector<64x128xf32>
    %202 = arith.truncf %200 : vector<64x128xf32> to vector<64x128xbf16>
    %c0_231 = arith.constant 0 : index
    %c0_232 = arith.constant 0 : index
    %c0_233 = arith.constant 0 : index
    %203 = vector.load %arg4[%c0_231, %c0_232, %c0_233] : memref<9x128x128xbf16, #tpu.memory_space<vmem>>, vector<1x128x128xbf16>
    %204 = vector.shape_cast %203 : vector<1x128x128xbf16> to vector<128x128xbf16>
    %cst_234 = arith.constant dense<0.000000e+00> : vector<64x128xf32>
    %205 = tpu.matmul %202, %204, %cst_234 {dimension_numbers = #tpu.dot_dimension_numbers<[1], [0], [0], [1], [0, 0, 1, 1], [], []>} : vector<64x128xbf16>, vector<128x128xbf16>, vector<64x128xf32> -> vector<64x128xf32>
    %206 = arith.addf %201, %205 : vector<64x128xf32>
    %c0_235 = arith.constant 0 : index
    %c0_236 = arith.constant 0 : index
    %207 = vector.load %arg10[%c0_235, %c0_236] : memref<64x128xf32, #tpu.memory_space<vmem>>, vector<64x128xf32>
    tpu.vector_store %arg10[%c0_235, %c0_236], %206 {strides = array<i32>} : memref<64x128xf32, #tpu.memory_space<vmem>>, vector<64x128xf32>,
    %c0_237 = arith.constant 0 : index
    %c1_238 = arith.constant 1 : index
    %c0_239 = arith.constant 0 : index
    %208 = vector.load %arg9[%c0_237, %c1_238, %c0_239] : memref<10x10x128xf32, #tpu.memory_space<vmem>>, vector<8x8x128xf32>
    %209 = vector.shape_cast %208 : vector<8x8x128xf32> to vector<64x128xf32>
    %c0_240 = arith.constant 0 : index
    %c0_241 = arith.constant 0 : index
    %210 = vector.load %arg10[%c0_240, %c0_241] : memref<64x128xf32, #tpu.memory_space<vmem>>, vector<64x128xf32>
    %211 = arith.truncf %209 : vector<64x128xf32> to vector<64x128xbf16>
    %c1_242 = arith.constant 1 : index
    %c0_243 = arith.constant 0 : index
    %c0_244 = arith.constant 0 : index
    %212 = vector.load %arg4[%c1_242, %c0_243, %c0_244] : memref<9x128x128xbf16, #tpu.memory_space<vmem>>, vector<1x128x128xbf16>
    %213 = vector.shape_cast %212 : vector<1x128x128xbf16> to vector<128x128xbf16>
    %cst_245 = arith.constant dense<0.000000e+00> : vector<64x128xf32>
    %214 = tpu.matmul %211, %213, %cst_245 {dimension_numbers = #tpu.dot_dimension_numbers<[1], [0], [0], [1], [0, 0, 1, 1], [], []>} : vector<64x128xbf16>, vector<128x128xbf16>, vector<64x128xf32> -> vector<64x128xf32>
    %215 = arith.addf %210, %214 : vector<64x128xf32>
    %c0_246 = arith.constant 0 : index
    %c0_247 = arith.constant 0 : index
    %216 = vector.load %arg10[%c0_246, %c0_247] : memref<64x128xf32, #tpu.memory_space<vmem>>, vector<64x128xf32>
    tpu.vector_store %arg10[%c0_246, %c0_247], %215 {strides = array<i32>} : memref<64x128xf32, #tpu.memory_space<vmem>>, vector<64x128xf32>,
    %c0_248 = arith.constant 0 : index
    %c2_249 = arith.constant 2 : index
    %c0_250 = arith.constant 0 : index
    %217 = vector.load %arg9[%c0_248, %c2_249, %c0_250] : memref<10x10x128xf32, #tpu.memory_space<vmem>>, vector<8x8x128xf32>
    %218 = vector.shape_cast %217 : vector<8x8x128xf32> to vector<64x128xf32>
    %c0_251 = arith.constant 0 : index
    %c0_252 = arith.constant 0 : index
    %219 = vector.load %arg10[%c0_251, %c0_252] : memref<64x128xf32, #tpu.memory_space<vmem>>, vector<64x128xf32>
    %220 = arith.truncf %218 : vector<64x128xf32> to vector<64x128xbf16>
    %c2_253 = arith.constant 2 : index
    %c0_254 = arith.constant 0 : index
    %c0_255 = arith.constant 0 : index
    %221 = vector.load %arg4[%c2_253, %c0_254, %c0_255] : memref<9x128x128xbf16, #tpu.memory_space<vmem>>, vector<1x128x128xbf16>
    %222 = vector.shape_cast %221 : vector<1x128x128xbf16> to vector<128x128xbf16>
    %cst_256 = arith.constant dense<0.000000e+00> : vector<64x128xf32>
    %223 = tpu.matmul %220, %222, %cst_256 {dimension_numbers = #tpu.dot_dimension_numbers<[1], [0], [0], [1], [0, 0, 1, 1], [], []>} : vector<64x128xbf16>, vector<128x128xbf16>, vector<64x128xf32> -> vector<64x128xf32>
    %224 = arith.addf %219, %223 : vector<64x128xf32>
    %c0_257 = arith.constant 0 : index
    %c0_258 = arith.constant 0 : index
    %225 = vector.load %arg10[%c0_257, %c0_258] : memref<64x128xf32, #tpu.memory_space<vmem>>, vector<64x128xf32>
    tpu.vector_store %arg10[%c0_257, %c0_258], %224 {strides = array<i32>} : memref<64x128xf32, #tpu.memory_space<vmem>>, vector<64x128xf32>,
    %c1_259 = arith.constant 1 : index
    %c0_260 = arith.constant 0 : index
    %c0_261 = arith.constant 0 : index
    %226 = vector.load %arg9[%c1_259, %c0_260, %c0_261] : memref<10x10x128xf32, #tpu.memory_space<vmem>>, vector<8x8x128xf32>
    %227 = vector.shape_cast %226 : vector<8x8x128xf32> to vector<64x128xf32>
    %c0_262 = arith.constant 0 : index
    %c0_263 = arith.constant 0 : index
    %228 = vector.load %arg10[%c0_262, %c0_263] : memref<64x128xf32, #tpu.memory_space<vmem>>, vector<64x128xf32>
    %229 = arith.truncf %227 : vector<64x128xf32> to vector<64x128xbf16>
    %c3_264 = arith.constant 3 : index
    %c0_265 = arith.constant 0 : index
    %c0_266 = arith.constant 0 : index
    %230 = vector.load %arg4[%c3_264, %c0_265, %c0_266] : memref<9x128x128xbf16, #tpu.memory_space<vmem>>, vector<1x128x128xbf16>
    %231 = vector.shape_cast %230 : vector<1x128x128xbf16> to vector<128x128xbf16>
    %cst_267 = arith.constant dense<0.000000e+00> : vector<64x128xf32>
    %232 = tpu.matmul %229, %231, %cst_267 {dimension_numbers = #tpu.dot_dimension_numbers<[1], [0], [0], [1], [0, 0, 1, 1], [], []>} : vector<64x128xbf16>, vector<128x128xbf16>, vector<64x128xf32> -> vector<64x128xf32>
    %233 = arith.addf %228, %232 : vector<64x128xf32>
    %c0_268 = arith.constant 0 : index
    %c0_269 = arith.constant 0 : index
    %234 = vector.load %arg10[%c0_268, %c0_269] : memref<64x128xf32, #tpu.memory_space<vmem>>, vector<64x128xf32>
    tpu.vector_store %arg10[%c0_268, %c0_269], %233 {strides = array<i32>} : memref<64x128xf32, #tpu.memory_space<vmem>>, vector<64x128xf32>,
    %c1_270 = arith.constant 1 : index
    %c1_271 = arith.constant 1 : index
    %c0_272 = arith.constant 0 : index
    %235 = vector.load %arg9[%c1_270, %c1_271, %c0_272] : memref<10x10x128xf32, #tpu.memory_space<vmem>>, vector<8x8x128xf32>
    %236 = vector.shape_cast %235 : vector<8x8x128xf32> to vector<64x128xf32>
    %c0_273 = arith.constant 0 : index
    %c0_274 = arith.constant 0 : index
    %237 = vector.load %arg10[%c0_273, %c0_274] : memref<64x128xf32, #tpu.memory_space<vmem>>, vector<64x128xf32>
    %238 = arith.truncf %236 : vector<64x128xf32> to vector<64x128xbf16>
    %c4_275 = arith.constant 4 : index
    %c0_276 = arith.constant 0 : index
    %c0_277 = arith.constant 0 : index
    %239 = vector.load %arg4[%c4_275, %c0_276, %c0_277] : memref<9x128x128xbf16, #tpu.memory_space<vmem>>, vector<1x128x128xbf16>
    %240 = vector.shape_cast %239 : vector<1x128x128xbf16> to vector<128x128xbf16>
    %cst_278 = arith.constant dense<0.000000e+00> : vector<64x128xf32>
    %241 = tpu.matmul %238, %240, %cst_278 {dimension_numbers = #tpu.dot_dimension_numbers<[1], [0], [0], [1], [0, 0, 1, 1], [], []>} : vector<64x128xbf16>, vector<128x128xbf16>, vector<64x128xf32> -> vector<64x128xf32>
    %242 = arith.addf %237, %241 : vector<64x128xf32>
    %c0_279 = arith.constant 0 : index
    %c0_280 = arith.constant 0 : index
    %243 = vector.load %arg10[%c0_279, %c0_280] : memref<64x128xf32, #tpu.memory_space<vmem>>, vector<64x128xf32>
    tpu.vector_store %arg10[%c0_279, %c0_280], %242 {strides = array<i32>} : memref<64x128xf32, #tpu.memory_space<vmem>>, vector<64x128xf32>,
    %c1_281 = arith.constant 1 : index
    %c2_282 = arith.constant 2 : index
    %c0_283 = arith.constant 0 : index
    %244 = vector.load %arg9[%c1_281, %c2_282, %c0_283] : memref<10x10x128xf32, #tpu.memory_space<vmem>>, vector<8x8x128xf32>
    %245 = vector.shape_cast %244 : vector<8x8x128xf32> to vector<64x128xf32>
    %c0_284 = arith.constant 0 : index
    %c0_285 = arith.constant 0 : index
    %246 = vector.load %arg10[%c0_284, %c0_285] : memref<64x128xf32, #tpu.memory_space<vmem>>, vector<64x128xf32>
    %247 = arith.truncf %245 : vector<64x128xf32> to vector<64x128xbf16>
    %c5_286 = arith.constant 5 : index
    %c0_287 = arith.constant 0 : index
    %c0_288 = arith.constant 0 : index
    %248 = vector.load %arg4[%c5_286, %c0_287, %c0_288] : memref<9x128x128xbf16, #tpu.memory_space<vmem>>, vector<1x128x128xbf16>
    %249 = vector.shape_cast %248 : vector<1x128x128xbf16> to vector<128x128xbf16>
    %cst_289 = arith.constant dense<0.000000e+00> : vector<64x128xf32>
    %250 = tpu.matmul %247, %249, %cst_289 {dimension_numbers = #tpu.dot_dimension_numbers<[1], [0], [0], [1], [0, 0, 1, 1], [], []>} : vector<64x128xbf16>, vector<128x128xbf16>, vector<64x128xf32> -> vector<64x128xf32>
    %251 = arith.addf %246, %250 : vector<64x128xf32>
    %c0_290 = arith.constant 0 : index
    %c0_291 = arith.constant 0 : index
    %252 = vector.load %arg10[%c0_290, %c0_291] : memref<64x128xf32, #tpu.memory_space<vmem>>, vector<64x128xf32>
    tpu.vector_store %arg10[%c0_290, %c0_291], %251 {strides = array<i32>} : memref<64x128xf32, #tpu.memory_space<vmem>>, vector<64x128xf32>,
    %c2_292 = arith.constant 2 : index
    %c0_293 = arith.constant 0 : index
    %c0_294 = arith.constant 0 : index
    %253 = vector.load %arg9[%c2_292, %c0_293, %c0_294] : memref<10x10x128xf32, #tpu.memory_space<vmem>>, vector<8x8x128xf32>
    %254 = vector.shape_cast %253 : vector<8x8x128xf32> to vector<64x128xf32>
    %c0_295 = arith.constant 0 : index
    %c0_296 = arith.constant 0 : index
    %255 = vector.load %arg10[%c0_295, %c0_296] : memref<64x128xf32, #tpu.memory_space<vmem>>, vector<64x128xf32>
    %256 = arith.truncf %254 : vector<64x128xf32> to vector<64x128xbf16>
    %c6_297 = arith.constant 6 : index
    %c0_298 = arith.constant 0 : index
    %c0_299 = arith.constant 0 : index
    %257 = vector.load %arg4[%c6_297, %c0_298, %c0_299] : memref<9x128x128xbf16, #tpu.memory_space<vmem>>, vector<1x128x128xbf16>
    %258 = vector.shape_cast %257 : vector<1x128x128xbf16> to vector<128x128xbf16>
    %cst_300 = arith.constant dense<0.000000e+00> : vector<64x128xf32>
    %259 = tpu.matmul %256, %258, %cst_300 {dimension_numbers = #tpu.dot_dimension_numbers<[1], [0], [0], [1], [0, 0, 1, 1], [], []>} : vector<64x128xbf16>, vector<128x128xbf16>, vector<64x128xf32> -> vector<64x128xf32>
    %260 = arith.addf %255, %259 : vector<64x128xf32>
    %c0_301 = arith.constant 0 : index
    %c0_302 = arith.constant 0 : index
    %261 = vector.load %arg10[%c0_301, %c0_302] : memref<64x128xf32, #tpu.memory_space<vmem>>, vector<64x128xf32>
    tpu.vector_store %arg10[%c0_301, %c0_302], %260 {strides = array<i32>} : memref<64x128xf32, #tpu.memory_space<vmem>>, vector<64x128xf32>,
    %c2_303 = arith.constant 2 : index
    %c1_304 = arith.constant 1 : index
    %c0_305 = arith.constant 0 : index
    %262 = vector.load %arg9[%c2_303, %c1_304, %c0_305] : memref<10x10x128xf32, #tpu.memory_space<vmem>>, vector<8x8x128xf32>
    %263 = vector.shape_cast %262 : vector<8x8x128xf32> to vector<64x128xf32>
    %c0_306 = arith.constant 0 : index
    %c0_307 = arith.constant 0 : index
    %264 = vector.load %arg10[%c0_306, %c0_307] : memref<64x128xf32, #tpu.memory_space<vmem>>, vector<64x128xf32>
    %265 = arith.truncf %263 : vector<64x128xf32> to vector<64x128xbf16>
    %c7_308 = arith.constant 7 : index
    %c0_309 = arith.constant 0 : index
    %c0_310 = arith.constant 0 : index
    %266 = vector.load %arg4[%c7_308, %c0_309, %c0_310] : memref<9x128x128xbf16, #tpu.memory_space<vmem>>, vector<1x128x128xbf16>
    %267 = vector.shape_cast %266 : vector<1x128x128xbf16> to vector<128x128xbf16>
    %cst_311 = arith.constant dense<0.000000e+00> : vector<64x128xf32>
    %268 = tpu.matmul %265, %267, %cst_311 {dimension_numbers = #tpu.dot_dimension_numbers<[1], [0], [0], [1], [0, 0, 1, 1], [], []>} : vector<64x128xbf16>, vector<128x128xbf16>, vector<64x128xf32> -> vector<64x128xf32>
    %269 = arith.addf %264, %268 : vector<64x128xf32>
    %c0_312 = arith.constant 0 : index
    %c0_313 = arith.constant 0 : index
    %270 = vector.load %arg10[%c0_312, %c0_313] : memref<64x128xf32, #tpu.memory_space<vmem>>, vector<64x128xf32>
    tpu.vector_store %arg10[%c0_312, %c0_313], %269 {strides = array<i32>} : memref<64x128xf32, #tpu.memory_space<vmem>>, vector<64x128xf32>,
    %c2_314 = arith.constant 2 : index
    %c2_315 = arith.constant 2 : index
    %c0_316 = arith.constant 0 : index
    %271 = vector.load %arg9[%c2_314, %c2_315, %c0_316] : memref<10x10x128xf32, #tpu.memory_space<vmem>>, vector<8x8x128xf32>
    %272 = vector.shape_cast %271 : vector<8x8x128xf32> to vector<64x128xf32>
    %c0_317 = arith.constant 0 : index
    %c0_318 = arith.constant 0 : index
    %273 = vector.load %arg10[%c0_317, %c0_318] : memref<64x128xf32, #tpu.memory_space<vmem>>, vector<64x128xf32>
    %274 = arith.truncf %272 : vector<64x128xf32> to vector<64x128xbf16>
    %c8_319 = arith.constant 8 : index
    %c0_320 = arith.constant 0 : index
    %c0_321 = arith.constant 0 : index
    %275 = vector.load %arg4[%c8_319, %c0_320, %c0_321] : memref<9x128x128xbf16, #tpu.memory_space<vmem>>, vector<1x128x128xbf16>
    %276 = vector.shape_cast %275 : vector<1x128x128xbf16> to vector<128x128xbf16>
    %cst_322 = arith.constant dense<0.000000e+00> : vector<64x128xf32>
    %277 = tpu.matmul %274, %276, %cst_322 {dimension_numbers = #tpu.dot_dimension_numbers<[1], [0], [0], [1], [0, 0, 1, 1], [], []>} : vector<64x128xbf16>, vector<128x128xbf16>, vector<64x128xf32> -> vector<64x128xf32>
    %278 = arith.addf %273, %277 : vector<64x128xf32>
    %c0_323 = arith.constant 0 : index
    %c0_324 = arith.constant 0 : index
    %279 = vector.load %arg10[%c0_323, %c0_324] : memref<64x128xf32, #tpu.memory_space<vmem>>, vector<64x128xf32>
    tpu.vector_store %arg10[%c0_323, %c0_324], %278 {strides = array<i32>} : memref<64x128xf32, #tpu.memory_space<vmem>>, vector<64x128xf32>,
    %c0_325 = arith.constant 0 : index
    %c0_326 = arith.constant 0 : index
    %280 = vector.load %arg10[%c0_325, %c0_326] : memref<64x128xf32, #tpu.memory_space<vmem>>, vector<64x128xf32>
    %c0_327 = arith.constant 0 : index
    %c0_328 = arith.constant 0 : index
    %281 = vector.load %arg5[%c0_327, %c0_328] : memref<1x128xf32, #tpu.memory_space<vmem>>, vector<1x128xf32>
    %282 = vector.broadcast %281 : vector<1x128xf32> to vector<64x128xf32>
    %283 = arith.addf %280, %282 : vector<64x128xf32>
    %cst_329 = arith.constant 0.000000e+00 : f32
    %284 = vector.broadcast %cst_329 : f32 to vector<64x128xf32>
    %285 = arith.maximumf %283, %284 : vector<64x128xf32>
    %286 = vector.shape_cast %285 : vector<64x128xf32> to vector<1x8x8x128xf32>
    %c0_330 = arith.constant 0 : index
    %c0_331 = arith.constant 0 : index
    %c0_332 = arith.constant 0 : index
    %c0_333 = arith.constant 0 : index
    %287 = vector.load %arg8[%c0_330, %c0_331, %c0_332, %c0_333] : memref<1x8x8x128xf32, #tpu.memory_space<vmem>>, vector<1x8x8x128xf32>
    tpu.vector_store %arg8[%c0_330, %c0_331, %c0_332, %c0_333], %286 {strides = array<i32>} : memref<1x8x8x128xf32, #tpu.memory_space<vmem>>, vector<1x8x8x128xf32>,
    return
  }
  func.func @transform_0(%arg0: i32) -> (i32, i32, i32, i32) {
    %c0_i32 = arith.constant 0 : i32
    %c0_i32_0 = arith.constant 0 : i32
    %c0_i32_1 = arith.constant 0 : i32
    %c0_i32_2 = arith.constant 0 : i32
    return %arg0, %c0_i32, %c0_i32_0, %c0_i32_1 : i32, i32, i32, i32
  }
  func.func @transform_1(%arg0: i32) -> (i32, i32, i32) {
    %c0_i32 = arith.constant 0 : i32
    %c0_i32_0 = arith.constant 0 : i32
    %c0_i32_1 = arith.constant 0 : i32
    %c0_i32_2 = arith.constant 0 : i32
    return %c0_i32, %c0_i32_0, %c0_i32_1 : i32, i32, i32
  }
  func.func @transform_2(%arg0: i32) -> (i32, i32) {
    %c0_i32 = arith.constant 0 : i32
    %c0_i32_0 = arith.constant 0 : i32
    %c0_i32_1 = arith.constant 0 : i32
    return %c0_i32, %c0_i32_0 : i32, i32
  }
  func.func @transform_3(%arg0: i32) -> (i32, i32, i32) {
    %c0_i32 = arith.constant 0 : i32
    %c0_i32_0 = arith.constant 0 : i32
    %c0_i32_1 = arith.constant 0 : i32
    %c0_i32_2 = arith.constant 0 : i32
    return %c0_i32, %c0_i32_0, %c0_i32_1 : i32, i32, i32
  }
  func.func @transform_4(%arg0: i32) -> (i32, i32) {
    %c0_i32 = arith.constant 0 : i32
    %c0_i32_0 = arith.constant 0 : i32
    %c0_i32_1 = arith.constant 0 : i32
    return %c0_i32, %c0_i32_0 : i32, i32
  }
  func.func @transform_5(%arg0: i32) -> (i32, i32, i32) {
    %c0_i32 = arith.constant 0 : i32
    %c0_i32_0 = arith.constant 0 : i32
    %c0_i32_1 = arith.constant 0 : i32
    %c0_i32_2 = arith.constant 0 : i32
    return %c0_i32, %c0_i32_0, %c0_i32_1 : i32, i32, i32
  }
  func.func @transform_6(%arg0: i32) -> (i32, i32) {
    %c0_i32 = arith.constant 0 : i32
    %c0_i32_0 = arith.constant 0 : i32
    %c0_i32_1 = arith.constant 0 : i32
    return %c0_i32, %c0_i32_0 : i32, i32
  }
  func.func @transform_7(%arg0: i32) -> (i32, i32, i32, i32) {
    %c0_i32 = arith.constant 0 : i32
    %c0_i32_0 = arith.constant 0 : i32
    %c0_i32_1 = arith.constant 0 : i32
    %c0_i32_2 = arith.constant 0 : i32
    return %arg0, %c0_i32, %c0_i32_0, %c0_i32_1 : i32, i32, i32, i32
  }
}

</mosaic_0001>

<llo_original>
// kernel: tpu_custom_call.1
$region0: #{tpu_custom_call.1}
  #allocation0 [shape = 'u32[]', space=smem, size = 0x4, offset = 0x4, fixed_abs, tag = 'smem constant byte address 0x4 - core index']
  #allocation1 [shape = 'u32[144,128]{1,0:T(1,128)}', space=vmem, size = 0x12000, scoped, tag = 'internal scratch']
  #allocation2 [shape = 'f32[10,10,128]{2,1,0:T(8,128)}', space=vmem, size = 0x14000, scoped, tag = 'scratch operand']
  #allocation3 [shape = 'f32[64,128]{1,0:T(8,128)}', space=vmem, size = 0x8000, scoped, tag = 'scratch operand']
  %s0 = inlined_call_operand.vmem [shape: f32[2,36,9,4], index: 0, kind: input, shape index: {}]
  %s1 = inlined_call_operand.vmem [shape: bf16[9,4,128], index: 1, kind: input, shape index: {}]
  %s2 = inlined_call_operand.vmem [shape: f32[1,128], index: 2, kind: input, shape index: {}]
  %s3 = inlined_call_operand.vmem [shape: bf16[9,128,128], index: 3, kind: input, shape index: {}]
  %s4 = inlined_call_operand.vmem [shape: f32[1,128], index: 4, kind: input, shape index: {}]
  %s5 = inlined_call_operand.vmem [shape: bf16[9,4,128], index: 5, kind: input, shape index: {}]
  %s6 = inlined_call_operand.vmem [shape: f32[1,128], index: 6, kind: input, shape index: {}]
  %s7 = inlined_call_operand.hbm [shape: f32[2,8,8,128], index: 7, kind: output, shape index: {}]
  %s8 = sld [smem:[#allocation0]]
  $region61: #{tpu_custom_call.1} parent=0
    _
  %s10 = ssub.s32 1, %s8
  %s11 = scalar_select 0, %s10, %s8
  $region1: #{tpu_custom_call.1} parent=0
    #allocation4 [shape = 'u8[65536]{0}', space=vmem, size = 0x10000, scoped, tag = 'output window, operand 0']
    #allocation5 [shape = 's32[2]{0}', space=sflag, size = 0x8, scoped, tag = 'scoped memory for tpu_custom_call.1']
    %12 = vsyncpa [#allocation5], 0
    %s13 = scalar_lea.sflag [#allocation5], 1
    %14 = vsyncpa %s13, 0
    loop: start=0, step=1, limit=4
    $region2: #{tpu_custom_call.1} parent=1 // loop_pre_header
      _
    $region3: #{tpu_custom_call.1} parent=1 // loop_header
      %s16 = sphi 0, %s20
      %p17 = scmp.ge.s32.totalorder %s16, 4
      %s26 = sphi 0, %s28
      %s29 = sphi 0, %s26
      %s30 = sphi 0, %s29
      %s46 = sphi 0, %s30
      %s50 = sphi 0, %s50
      %s52 = sphi 0, %s50
      %s53 = sphi 0, %s52
      %s67 = sphi 0, %s53
      %s71 = sphi 0, %s71
      %s73 = sphi 0, %s71
      %s74 = sphi 0, %s73
      %s88 = sphi 0, %s74
      %s92 = sphi 0, %s92
      %s94 = sphi 0, %s92
      %s95 = sphi 0, %s94
      %s109 = sphi 0, %s95
      %s113 = sphi 0, %s113
      %s115 = sphi 0, %s113
      %s116 = sphi 0, %s115
      %s130 = sphi 0, %s116
      %s134 = sphi 0, %s134
      %s136 = sphi 0, %s134
      %s137 = sphi 0, %s136
      %s151 = sphi 0, %s137
      %s155 = sphi 0, %s155
      %s157 = sphi 0, %s155
      %s158 = sphi 0, %s157
      %s172 = sphi 0, %s158
      %s178 = sphi 0, %s180
      %s181 = sphi 0, %s178
      %s182 = sphi 0, %s181
      %s198 = sphi 0, %s182
    $region4: #{tpu_custom_call.1} parent=1 // loop_header_branch
      %19 = sbr.rel (%p17) target = $region8
    $region5: #{tpu_custom_call.1} parent=1 // loop_body
      %s21 = ssub.s32 %s16, 1
      %s22 = ssub.s32 %s16, 2
      %s23 = sadd.s32 %s16, 1
      %s24 = ssub.s32 %s16, %s23
      %p25 = scmp.eq.s32.totalorder %s24, 0
      %s27 = sadd.s32 %s26, 1
      %s28 = scalar_select %p25, %s26, %s27
      %p31 = pneg %p25
      %p32 = scmp.eq.s32.totalorder %s16, 1
      %p33 = por %p31, %p32
      %p34 = scmp.ne.s32.totalorder %s26, %s29
      %p35 = scmp.eq.s32.totalorder %s16, 0
      %p36 = por %p34, %p35
      %p37 = scmp.ne.s32.totalorder %s26, %s29
      %p38 = scmp.eq.s32.totalorder %s21, 1
      %p39 = por %p37, %p38
      %p40 = scmp.ne.s32.totalorder %s29, %s30
      %p41 = scmp.eq.s32.totalorder %s21, 0
      %p42 = por %p40, %p41
      %p43 = scmp.ne.s32.totalorder %s29, %s30
      %p44 = scmp.eq.s32.totalorder %s22, 1
      %p45 = por %p43, %p44
      %p47 = scmp.ne.s32.totalorder %s30, %s46
      %p48 = scmp.eq.s32.totalorder %s22, 0
      %p49 = por %p47, %p48
      %s51 = sadd.s32 %s50, 1
      %p54 = scmp.eq.s32.totalorder %s16, 1
      %p55 = scmp.ne.s32.totalorder %s50, %s52
      %p56 = scmp.eq.s32.totalorder %s16, 0
      %p57 = por %p55, %p56
      %p58 = scmp.ne.s32.totalorder %s50, %s52
      %p59 = scmp.eq.s32.totalorder %s21, 1
      %p60 = por %p58, %p59
      %p61 = scmp.ne.s32.totalorder %s52, %s53
      %p62 = scmp.eq.s32.totalorder %s21, 0
      %p63 = por %p61, %p62
      %p64 = scmp.ne.s32.totalorder %s52, %s53
      %p65 = scmp.eq.s32.totalorder %s22, 1
      %p66 = por %p64, %p65
      %p68 = scmp.ne.s32.totalorder %s53, %s67
      %p69 = scmp.eq.s32.totalorder %s22, 0
      %p70 = por %p68, %p69
      %s72 = sadd.s32 %s71, 1
      %p75 = scmp.eq.s32.totalorder %s16, 1
      %p76 = scmp.ne.s32.totalorder %s71, %s73
      %p77 = scmp.eq.s32.totalorder %s16, 0
      %p78 = por %p76, %p77
      %p79 = scmp.ne.s32.totalorder %s71, %s73
      %p80 = scmp.eq.s32.totalorder %s21, 1
      %p81 = por %p79, %p80
      %p82 = scmp.ne.s32.totalorder %s73, %s74
      %p83 = scmp.eq.s32.totalorder %s21, 0
      %p84 = por %p82, %p83
      %p85 = scmp.ne.s32.totalorder %s73, %s74
      %p86 = scmp.eq.s32.totalorder %s22, 1
      %p87 = por %p85, %p86
      %p89 = scmp.ne.s32.totalorder %s74, %s88
      %p90 = scmp.eq.s32.totalorder %s22, 0
      %p91 = por %p89, %p90
      %s93 = sadd.s32 %s92, 1
      %p96 = scmp.eq.s32.totalorder %s16, 1
      %p97 = scmp.ne.s32.totalorder %s92, %s94
      %p98 = scmp.eq.s32.totalorder %s16, 0
      %p99 = por %p97, %p98
      %p100 = scmp.ne.s32.totalorder %s92, %s94
      %p101 = scmp.eq.s32.totalorder %s21, 1
      %p102 = por %p100, %p101
      %p103 = scmp.ne.s32.totalorder %s94, %s95
      %p104 = scmp.eq.s32.totalorder %s21, 0
      %p105 = por %p103, %p104
      %p106 = scmp.ne.s32.totalorder %s94, %s95
      %p107 = scmp.eq.s32.totalorder %s22, 1
      %p108 = por %p106, %p107
      %p110 = scmp.ne.s32.totalorder %s95, %s109
      %p111 = scmp.eq.s32.totalorder %s22, 0
      %p112 = por %p110, %p111
      %s114 = sadd.s32 %s113, 1
      %p117 = scmp.eq.s32.totalorder %s16, 1
      %p118 = scmp.ne.s32.totalorder %s113, %s115
      %p119 = scmp.eq.s32.totalorder %s16, 0
      %p120 = por %p118, %p119
      %p121 = scmp.ne.s32.totalorder %s113, %s115
      %p122 = scmp.eq.s32.totalorder %s21, 1
      %p123 = por %p121, %p122
      %p124 = scmp.ne.s32.totalorder %s115, %s116
      %p125 = scmp.eq.s32.totalorder %s21, 0
      %p126 = por %p124, %p125
      %p127 = scmp.ne.s32.totalorder %s115, %s116
      %p128 = scmp.eq.s32.totalorder %s22, 1
      %p129 = por %p127, %p128
      %p131 = scmp.ne.s32.totalorder %s116, %s130
      %p132 = scmp.eq.s32.totalorder %s22, 0
      %p133 = por %p131, %p132
      %s135 = sadd.s32 %s134, 1
      %p138 = scmp.eq.s32.totalorder %s16, 1
      %p139 = scmp.ne.s32.totalorder %s134, %s136
      %p140 = scmp.eq.s32.totalorder %s16, 0
      %p141 = por %p139, %p140
      %p142 = scmp.ne.s32.totalorder %s134, %s136
      %p143 = scmp.eq.s32.totalorder %s21, 1
      %p144 = por %p142, %p143
      %p145 = scmp.ne.s32.totalorder %s136, %s137
      %p146 = scmp.eq.s32.totalorder %s21, 0
      %p147 = por %p145, %p146
      %p148 = scmp.ne.s32.totalorder %s136, %s137
      %p149 = scmp.eq.s32.totalorder %s22, 1
      %p150 = por %p148, %p149
      %p152 = scmp.ne.s32.totalorder %s137, %s151
      %p153 = scmp.eq.s32.totalorder %s22, 0
      %p154 = por %p152, %p153
      %s156 = sadd.s32 %s155, 1
      %p159 = scmp.eq.s32.totalorder %s16, 1
      %p160 = scmp.ne.s32.totalorder %s155, %s157
      %p161 = scmp.eq.s32.totalorder %s16, 0
      %p162 = por %p160, %p161
      %p163 = scmp.ne.s32.totalorder %s155, %s157
      %p164 = scmp.eq.s32.totalorder %s21, 1
      %p165 = por %p163, %p164
      %p166 = scmp.ne.s32.totalorder %s157, %s158
      %p167 = scmp.eq.s32.totalorder %s21, 0
      %p168 = por %p166, %p167
      %p169 = scmp.ne.s32.totalorder %s157, %s158
      %p170 = scmp.eq.s32.totalorder %s22, 1
      %p171 = por %p169, %p170
      %p173 = scmp.ne.s32.totalorder %s158, %s172
      %p174 = scmp.eq.s32.totalorder %s22, 0
      %p175 = por %p173, %p174
      %s176 = ssub.s32 %s16, %s23
      %p177 = scmp.eq.s32.totalorder %s176, 0
      %s179 = sadd.s32 %s178, 1
      %s180 = scalar_select %p177, %s178, %s179
      %p183 = pneg %p177
      %p184 = scmp.eq.s32.totalorder %s16, 1
      %p185 = por %p183, %p184
      %p186 = scmp.ne.s32.totalorder %s178, %s181
      %p187 = scmp.eq.s32.totalorder %s16, 0
      %p188 = por %p186, %p187
      %p189 = scmp.ne.s32.totalorder %s178, %s181
      %p190 = scmp.eq.s32.totalorder %s21, 1
      %p191 = por %p189, %p190
      %p192 = scmp.ne.s32.totalorder %s181, %s182
      %p193 = scmp.eq.s32.totalorder %s21, 0
      %p194 = por %p192, %p193
      %p195 = scmp.ne.s32.totalorder %s181, %s182
      %p196 = scmp.eq.s32.totalorder %s22, 1
      %p197 = por %p195, %p196
      %p199 = scmp.ne.s32.totalorder %s182, %s198
      %p200 = scmp.eq.s32.totalorder %s22, 0
      %p201 = por %p199, %p200
      %p202 = scmp.le.s32.totalorder 1, %s16
      %p203 = scmp.lt.s32.totalorder %s16, 3
      %p204 = pnand %p202, %p203
      %p205 = pneg %p204
      // Predicated region
      $region9: #{tpu_custom_call.1} parent=5 // pred_check
        _
      $region10: #{tpu_custom_call.1} parent=5 // pred_check_branch
        %207 = sbr.rel (%p204) target = $region12
      $region11: #{tpu_custom_call.1} parent=5 // pred_region
        %s208 = ssub.s32 %s16, 1
        // Predicated region
        $region13: #{tpu_custom_call.1} parent=11 // pred_check
          %p209 = pneg %p63
        $region14: #{tpu_custom_call.1} parent=11 // pred_check_branch
          %211 = sbr.rel (%p209) target = $region16
        $region15: #{tpu_custom_call.1} parent=11 // pred_region
          _
        $region16: #{tpu_custom_call.1} parent=11 // pred_fallthru
          _
        // Predicated region
        $region17: #{tpu_custom_call.1} parent=11 // pred_check
          %p212 = pneg %p84
        $region18: #{tpu_custom_call.1} parent=11 // pred_check_branch
          %214 = sbr.rel (%p212) target = $region20
        $region19: #{tpu_custom_call.1} parent=11 // pred_region
          _
        $region20: #{tpu_custom_call.1} parent=11 // pred_fallthru
          _
        // Predicated region
        $region21: #{tpu_custom_call.1} parent=11 // pred_check
          %p215 = pneg %p105
        $region22: #{tpu_custom_call.1} parent=11 // pred_check_branch
          %217 = sbr.rel (%p215) target = $region24
        $region23: #{tpu_custom_call.1} parent=11 // pred_region
          _
        $region24: #{tpu_custom_call.1} parent=11 // pred_fallthru
          _
        // Predicated region
        $region25: #{tpu_custom_call.1} parent=11 // pred_check
          %p218 = pneg %p126
        $region26: #{tpu_custom_call.1} parent=11 // pred_check_branch
          %220 = sbr.rel (%p218) target = $region28
        $region27: #{tpu_custom_call.1} parent=11 // pred_region
          _
        $region28: #{tpu_custom_call.1} parent=11 // pred_fallthru
          _
        // Predicated region
        $region29: #{tpu_custom_call.1} parent=11 // pred_check
          %p221 = pneg %p147
        $region30: #{tpu_custom_call.1} parent=11 // pred_check_branch
          %223 = sbr.rel (%p221) target = $region32
        $region31: #{tpu_custom_call.1} parent=11 // pred_region
          _
        $region32: #{tpu_custom_call.1} parent=11 // pred_fallthru
          _
        // Predicated region
        $region33: #{tpu_custom_call.1} parent=11 // pred_check
          %p224 = pneg %p168
        $region34: #{tpu_custom_call.1} parent=11 // pred_check_branch
          %226 = sbr.rel (%p224) target = $region36
        $region35: #{tpu_custom_call.1} parent=11 // pred_region
          _
        $region36: #{tpu_custom_call.1} parent=11 // pred_fallthru
          _
      $region12: #{tpu_custom_call.1} parent=5 // pred_fallthru
        _
      %p227 = scmp.lt.s32.totalorder %s16, 2
      // Predicated region
      $region37: #{tpu_custom_call.1} parent=5 // pred_check
        %p228 = pneg %p227
      $region38: #{tpu_custom_call.1} parent=5 // pred_check_branch
        %230 = sbr.rel (%p228) target = $region40
      $region39: #{tpu_custom_call.1} parent=5 // pred_region
        // Predicated region
        $region41: #{tpu_custom_call.1} parent=39 // pred_check
          %p231 = pneg %p36
        $region42: #{tpu_custom_call.1} parent=39 // pred_check_branch
          %233 = sbr.rel (%p231) target = $region44
        $region43: #{tpu_custom_call.1} parent=39 // pred_region
          %p234 = scmp.lt.s32.totalorder %s16, 1
          %s235 = scalar_select %p234, %s16, 1
          %s236 = smul.addr %s235, 72
          %s237 = smul.addr %s236, 8
          %s238 = scalar_lea.vmem %s0, %s237
        $region44: #{tpu_custom_call.1} parent=39 // pred_fallthru
          _
      $region40: #{tpu_custom_call.1} parent=5 // pred_fallthru
        _
      %p239 = scmp.le.s32.totalorder 1, %s16
      %p240 = scmp.lt.s32.totalorder %s16, 3
      %p241 = pnand %p239, %p240
      %p242 = pneg %p241
      // Predicated region
      $region45: #{tpu_custom_call.1} parent=5 // pred_check
        _
      $region46: #{tpu_custom_call.1} parent=5 // pred_check_branch
        %244 = sbr.rel (%p241) target = $region48
      $region47: #{tpu_custom_call.1} parent=5 // pred_region
        %s245 = ssub.s32 %s16, 1
        %p246 = scmp.lt.s32.totalorder %s21, 1
        %s247 = scalar_select %p246, %s21, 1
        %s248 = smul.addr %s247, 72
        %s249 = smul.addr %s248, 8
        %s250 = scalar_lea.vmem %s0, %s249
        %p251 = pneg %p42
        %p252 = pneg %p39
        %p253 = pneg %p63
        %p254 = pneg %p60
        %p255 = pneg %p84
        %p256 = pneg %p81
        %p257 = pneg %p105
        %p258 = pneg %p102
        %p259 = pneg %p126
        %p260 = pneg %p123
        %p261 = pneg %p147
        %p262 = pneg %p144
        %p263 = pneg %p168
        %p264 = pneg %p165
        %p265 = pneg %p194
        %p266 = pneg %p191
        %s267 = sand.u32 %s181, 1
        %s268 = scalar_lea.sflag [#allocation5], %s267
        %s269 = sand.u32 %s181, 1
        %s270 = smul.addr %s269, 64
        %s271 = scalar_lea.vmem [#allocation4], %s270
        %p272 = scmp.lt.s32.totalorder %s21, 1
        %s273 = scalar_select %p272, %s21, 1
        %s274 = smul.addr %s273, 72
        %s275 = smul.addr %s274, 8
        %s276 = scalar_lea.vmem %s0, %s275
        %278 = vst [vmem:[#allocation3] sm:$0xff] 0.0
        %279 = vst [vmem:[#allocation3 + $0x8] sm:$0xff] 0.0
        %280 = vst [vmem:[#allocation3 + $0x10] sm:$0xff] 0.0
        %281 = vst [vmem:[#allocation3 + $0x18] sm:$0xff] 0.0
        %282 = vst [vmem:[#allocation3 + $0x20] sm:$0xff] 0.0
        %283 = vst [vmem:[#allocation3 + $0x28] sm:$0xff] 0.0
        %284 = vst [vmem:[#allocation3 + $0x30] sm:$0xff] 0.0
        %285 = vst [vmem:[#allocation3 + $0x38] sm:$0xff] 0.0
        %v286 = vld [vmem:[#allocation3] sm:$0xff]
        %v287 = vld [vmem:[#allocation3 + $0x8] sm:$0xff]
        %v288 = vld [vmem:[#allocation3 + $0x10] sm:$0xff]
        %v289 = vld [vmem:[#allocation3 + $0x18] sm:$0xff]
        %v290 = vld [vmem:[#allocation3 + $0x20] sm:$0xff]
        %v291 = vld [vmem:[#allocation3 + $0x28] sm:$0xff]
        %v292 = vld [vmem:[#allocation3 + $0x30] sm:$0xff]
        %v293 = vld [vmem:[#allocation3 + $0x38] sm:$0xff]
        %v294 = vld [vmem:[%s276] sm:$0xff]
        %v295 = vld [vmem:[%s276 + $0x10] sm:$0xff]
        %v296 = vld [vmem:[%s276 + $0x20] sm:$0xff]
        %v297 = vld [vmem:[%s276 + $0x30] sm:$0xff]
        %v298 = vld [vmem:[%s276 + $0x40] sm:$0xff]
        %v299 = vld [vmem:[%s276 + $0x50] sm:$0xff]
        %v300 = vld [vmem:[%s276 + $0x60] sm:$0xff]
        %v301 = vld [vmem:[%s276 + $0x70] sm:$0xff]
        %v302 = vpack.c.bf16 %v295, %v294
        %v303 = vpack.c.bf16 %v297, %v296
        %v304 = vpack.c.bf16 %v299, %v298
        %v305 = vpack.c.bf16 %v301, %v300
        %v306 = vld [vmem:[%s1] sm:$0x3]
        %vm307 = vcmask 31744
        %v309 = vsel %vm307, %v302, 0
        %v312 = vsel %vm307, %v303, 0
        %v315 = vsel %vm307, %v304, 0
        %v318 = vsel %vm307, %v305, 0
        %vm320 = vcmask 1041408
        %v322 = vsel %vm320, %v306, 0
        %324 = vmatprep.subr.bf16.mxu0 0
        %325 = vmatpush1.bf16.msra.mxu0 %v322
        %326 = vmatprep.subr.bf16.mxu0 0
        %327 = vmatpush1.bf16.msra.mxu0 0
        %328 = vmatprep.subr.bf16.mxu0 0
        %329 = vmatpush1.bf16.msra.mxu0 0
        %330 = vmatprep.subr.bf16.mxu0 0
        %331 = vmatpush1.bf16.msra.mxu0 0
        %332 = vmatprep.subr.bf16.mxu0 0
        %333 = vmatpush1.bf16.msra.mxu0 0
        %334 = vmatprep.subr.bf16.mxu0 0
        %335 = vmatpush1.bf16.msra.mxu0 0
        %336 = vmatprep.subr.bf16.mxu0 0
        %337 = vmatpush1.bf16.msra.mxu0 0
        %338 = vmatprep.subr.bf16.mxu0 0
        %339 = vmatpush1.bf16.msra.mxu0 0
        %340 = vmatprep.subr.bf16.mxu0 0
        %341 = vmatpush1.bf16.msra.mxu0 0
        %342 = vmatprep.subr.bf16.mxu0 0
        %343 = vmatpush1.bf16.msra.mxu0 0
        %344 = vmatprep.subr.bf16.mxu0 0
        %345 = vmatpush1.bf16.msra.mxu0 0
        %346 = vmatprep.subr.bf16.mxu0 0
        %347 = vmatpush1.bf16.msra.mxu0 0
        %348 = vmatprep.subr.bf16.mxu0 0
        %349 = vmatpush1.bf16.msra.mxu0 0
        %350 = vmatprep.subr.bf16.mxu0 0
        %351 = vmatpush1.bf16.msra.mxu0 0
        %352 = vmatprep.subr.bf16.mxu0 0
        %353 = vmatpush1.bf16.msra.mxu0 0
        %354 = vmatprep.subr.bf16.mxu0 0
        %355 = vmatpush1.bf16.msra.mxu0 0
        %356 = vmatprep.mubr.bf16.mxu0 0
        %357 = vmatmul.mubr.bf16.gmra.mrb[0].mxu0 %v309
        %v358 = vpop.f32.mrb[0].mxu0
        %v359 = vadd.f32 0.0, %v358
        %v360 = vpop.f32.mrb[0].mxu0
        %v361 = vpop.f32.mrb[0].mxu0
        %v362 = vadd.f32 0.0, %v361
        %v363 = vpop.f32.mrb[0].mxu0
        %364 = vmatprep.mubr.bf16.mxu0 0
        %365 = vmatmul.mubr.bf16.gmra.mrb[0].mxu0 %v312
        %v366 = vpop.f32.mrb[0].mxu0
        %v367 = vadd.f32 0.0, %v366
        %v368 = vpop.f32.mrb[0].mxu0
        %v369 = vpop.f32.mrb[0].mxu0
        %v370 = vadd.f32 0.0, %v369
        %v371 = vpop.f32.mrb[0].mxu0
        %372 = vmatprep.mubr.bf16.mxu0 0
        %373 = vmatmul.mubr.bf16.gmra.mrb[0].mxu0 %v315
        %v374 = vpop.f32.mrb[0].mxu0
        %v375 = vadd.f32 0.0, %v374
        %v376 = vpop.f32.mrb[0].mxu0
        %v377 = vpop.f32.mrb[0].mxu0
        %v378 = vadd.f32 0.0, %v377
        %v379 = vpop.f32.mrb[0].mxu0
        %380 = vmatprep.mubr.bf16.mxu0 0
        %381 = vmatmul.mubr.bf16.gmra.mrb[0].mxu0 %v318
        %v382 = vpop.f32.mrb[0].mxu0
        %v383 = vadd.f32 0.0, %v382
        %v384 = vpop.f32.mrb[0].mxu0
        %v385 = vpop.f32.mrb[0].mxu0
        %v386 = vadd.f32 0.0, %v385
        %v387 = vpop.f32.mrb[0].mxu0
        %388 = vdwg.mxu0
        %v389 = vadd.f32 %v286, %v359
        %v390 = vadd.f32 %v287, %v362
        %v391 = vadd.f32 %v288, %v367
        %v392 = vadd.f32 %v289, %v370
        %v393 = vadd.f32 %v290, %v375
        %v394 = vadd.f32 %v291, %v378
        %v395 = vadd.f32 %v292, %v383
        %v396 = vadd.f32 %v293, %v386
        %397 = vst [vmem:[#allocation3] sm:$0xff] %v389
        %398 = vst [vmem:[#allocation3 + $0x8] sm:$0xff] %v390
        %399 = vst [vmem:[#allocation3 + $0x10] sm:$0xff] %v391
        %400 = vst [vmem:[#allocation3 + $0x18] sm:$0xff] %v392
        %401 = vst [vmem:[#allocation3 + $0x20] sm:$0xff] %v393
        %402 = vst [vmem:[#allocation3 + $0x28] sm:$0xff] %v394
        %403 = vst [vmem:[#allocation3 + $0x30] sm:$0xff] %v395
        %404 = vst [vmem:[#allocation3 + $0x38] sm:$0xff] %v396
        %v405 = vld [vmem:[#allocation3] sm:$0xff]
        %v406 = vld [vmem:[#allocation3 + $0x8] sm:$0xff]
        %v407 = vld [vmem:[#allocation3 + $0x10] sm:$0xff]
        %v408 = vld [vmem:[#allocation3 + $0x18] sm:$0xff]
        %v409 = vld [vmem:[#allocation3 + $0x20] sm:$0xff]
        %v410 = vld [vmem:[#allocation3 + $0x28] sm:$0xff]
        %v411 = vld [vmem:[#allocation3 + $0x30] sm:$0xff]
        %v412 = vld [vmem:[#allocation3 + $0x38] sm:$0xff]
        %s413 = scalar_lea.vmem %s276, 144
        %v414 = vld [vmem:[%s413] sm:$0xff]
        %v415 = vld [vmem:[%s413 + $0x10] sm:$0xff]
        %v416 = vld [vmem:[%s413 + $0x20] sm:$0xff]
        %v417 = vld [vmem:[%s413 + $0x30] sm:$0xff]
        %v418 = vld [vmem:[%s413 + $0x40] sm:$0xff]
        %v419 = vld [vmem:[%s413 + $0x50] sm:$0xff]
        %v420 = vld [vmem:[%s413 + $0x60] sm:$0xff]
        %v421 = vld [vmem:[%s413 + $0x70] sm:$0xff]
        %v422 = vpack.c.bf16 %v415, %v414
        %v423 = vpack.c.bf16 %v417, %v416
        %v424 = vpack.c.bf16 %v419, %v418
        %v425 = vpack.c.bf16 %v421, %v420
        %s426 = scalar_lea.vmem %s1, 2
        %v427 = vld [vmem:[%s426] sm:$0x3]
        %v429 = vsel %vm307, %v422, 0
        %v432 = vsel %vm307, %v423, 0
        %v435 = vsel %vm307, %v424, 0
        %v438 = vsel %vm307, %v425, 0
        %v441 = vsel %vm320, %v427, 0
        %443 = vmatprep.subr.bf16.mxu0 0
        %444 = vmatpush1.bf16.msra.mxu0 %v441
        %445 = vmatprep.subr.bf16.mxu0 0
        %446 = vmatpush1.bf16.msra.mxu0 0
        %447 = vmatprep.subr.bf16.mxu0 0
        %448 = vmatpush1.bf16.msra.mxu0 0
        %449 = vmatprep.subr.bf16.mxu0 0
        %450 = vmatpush1.bf16.msra.mxu0 0
        %451 = vmatprep.subr.bf16.mxu0 0
        %452 = vmatpush1.bf16.msra.mxu0 0
        %453 = vmatprep.subr.bf16.mxu0 0
        %454 = vmatpush1.bf16.msra.mxu0 0
        %455 = vmatprep.subr.bf16.mxu0 0
        %456 = vmatpush1.bf16.msra.mxu0 0
        %457 = vmatprep.subr.bf16.mxu0 0
        %458 = vmatpush1.bf16.msra.mxu0 0
        %459 = vmatprep.subr.bf16.mxu0 0
        %460 = vmatpush1.bf16.msra.mxu0 0
        %461 = vmatprep.subr.bf16.mxu0 0
        %462 = vmatpush1.bf16.msra.mxu0 0
        %463 = vmatprep.subr.bf16.mxu0 0
        %464 = vmatpush1.bf16.msra.mxu0 0
        %465 = vmatprep.subr.bf16.mxu0 0
        %466 = vmatpush1.bf16.msra.mxu0 0
        %467 = vmatprep.subr.bf16.mxu0 0
        %468 = vmatpush1.bf16.msra.mxu0 0
        %469 = vmatprep.subr.bf16.mxu0 0
        %470 = vmatpush1.bf16.msra.mxu0 0
        %471 = vmatprep.subr.bf16.mxu0 0
        %472 = vmatpush1.bf16.msra.mxu0 0
        %473 = vmatprep.subr.bf16.mxu0 0
        %474 = vmatpush1.bf16.msra.mxu0 0
        %475 = vmatprep.mubr.bf16.mxu0 0
        %476 = vmatmul.mubr.bf16.gmra.mrb[0].mxu0 %v429
        %v477 = vpop.f32.mrb[0].mxu0
        %v478 = vadd.f32 0.0, %v477
        %v479 = vpop.f32.mrb[0].mxu0
        %v480 = vpop.f32.mrb[0].mxu0
        %v481 = vadd.f32 0.0, %v480
        %v482 = vpop.f32.mrb[0].mxu0
        %483 = vmatprep.mubr.bf16.mxu0 0
        %484 = vmatmul.mubr.bf16.gmra.mrb[0].mxu0 %v432
        %v485 = vpop.f32.mrb[0].mxu0
        %v486 = vadd.f32 0.0, %v485
        %v487 = vpop.f32.mrb[0].mxu0
        %v488 = vpop.f32.mrb[0].mxu0
        %v489 = vadd.f32 0.0, %v488
        %v490 = vpop.f32.mrb[0].mxu0
        %491 = vmatprep.mubr.bf16.mxu0 0
        %492 = vmatmul.mubr.bf16.gmra.mrb[0].mxu0 %v435
        %v493 = vpop.f32.mrb[0].mxu0
        %v494 = vadd.f32 0.0, %v493
        %v495 = vpop.f32.mrb[0].mxu0
        %v496 = vpop.f32.mrb[0].mxu0
        %v497 = vadd.f32 0.0, %v496
        %v498 = vpop.f32.mrb[0].mxu0
        %499 = vmatprep.mubr.bf16.mxu0 0
        %500 = vmatmul.mubr.bf16.gmra.mrb[0].mxu0 %v438
        %v501 = vpop.f32.mrb[0].mxu0
        %v502 = vadd.f32 0.0, %v501
        %v503 = vpop.f32.mrb[0].mxu0
        %v504 = vpop.f32.mrb[0].mxu0
        %v505 = vadd.f32 0.0, %v504
        %v506 = vpop.f32.mrb[0].mxu0
        %507 = vdwg.mxu0
        %v508 = vadd.f32 %v405, %v478
        %v509 = vadd.f32 %v406, %v481
        %v510 = vadd.f32 %v407, %v486
        %v511 = vadd.f32 %v408, %v489
        %v512 = vadd.f32 %v409, %v494
        %v513 = vadd.f32 %v410, %v497
        %v514 = vadd.f32 %v411, %v502
        %v515 = vadd.f32 %v412, %v505
        %516 = vst [vmem:[#allocation3] sm:$0xff] %v508
        %517 = vst [vmem:[#allocation3 + $0x8] sm:$0xff] %v509
        %518 = vst [vmem:[#allocation3 + $0x10] sm:$0xff] %v510
        %519 = vst [vmem:[#allocation3 + $0x18] sm:$0xff] %v511
        %520 = vst [vmem:[#allocation3 + $0x20] sm:$0xff] %v512
        %521 = vst [vmem:[#allocation3 + $0x28] sm:$0xff] %v513
        %522 = vst [vmem:[#allocation3 + $0x30] sm:$0xff] %v514
        %523 = vst [vmem:[#allocation3 + $0x38] sm:$0xff] %v515
        %v524 = vld [vmem:[#allocation3] sm:$0xff]
        %v525 = vld [vmem:[#allocation3 + $0x8] sm:$0xff]
        %v526 = vld [vmem:[#allocation3 + $0x10] sm:$0xff]
        %v527 = vld [vmem:[#allocation3 + $0x18] sm:$0xff]
        %v528 = vld [vmem:[#allocation3 + $0x20] sm:$0xff]
        %v529 = vld [vmem:[#allocation3 + $0x28] sm:$0xff]
        %v530 = vld [vmem:[#allocation3 + $0x30] sm:$0xff]
        %v531 = vld [vmem:[#allocation3 + $0x38] sm:$0xff]
        %v532 = vld [vmem:[%s276 + $0x1] sm:$0xff]
        %v533 = vld [vmem:[%s276 + $0x11] sm:$0xff]
        %v534 = vld [vmem:[%s276 + $0x21] sm:$0xff]
        %v535 = vld [vmem:[%s276 + $0x31] sm:$0xff]
        %v536 = vld [vmem:[%s276 + $0x41] sm:$0xff]
        %v537 = vld [vmem:[%s276 + $0x51] sm:$0xff]
        %v538 = vld [vmem:[%s276 + $0x61] sm:$0xff]
        %v539 = vld [vmem:[%s276 + $0x71] sm:$0xff]
        %v540 = vpack.c.bf16 %v533, %v532
        %v541 = vpack.c.bf16 %v535, %v534
        %v542 = vpack.c.bf16 %v537, %v536
        %v543 = vpack.c.bf16 %v539, %v538
        %s544 = scalar_lea.vmem %s1, 4
        %v545 = vld [vmem:[%s544] sm:$0x3]
        %v547 = vsel %vm307, %v540, 0
        %v550 = vsel %vm307, %v541, 0
        %v553 = vsel %vm307, %v542, 0
        %v556 = vsel %vm307, %v543, 0
        %v559 = vsel %vm320, %v545, 0
        %561 = vmatprep.subr.bf16.mxu0 0
        %562 = vmatpush1.bf16.msra.mxu0 %v559
        %563 = vmatprep.subr.bf16.mxu0 0
        %564 = vmatpush1.bf16.msra.mxu0 0
        %565 = vmatprep.subr.bf16.mxu0 0
        %566 = vmatpush1.bf16.msra.mxu0 0
        %567 = vmatprep.subr.bf16.mxu0 0
        %568 = vmatpush1.bf16.msra.mxu0 0
        %569 = vmatprep.subr.bf16.mxu0 0
        %570 = vmatpush1.bf16.msra.mxu0 0
        %571 = vmatprep.subr.bf16.mxu0 0
        %572 = vmatpush1.bf16.msra.mxu0 0
        %573 = vmatprep.subr.bf16.mxu0 0
        %574 = vmatpush1.bf16.msra.mxu0 0
        %575 = vmatprep.subr.bf16.mxu0 0
        %576 = vmatpush1.bf16.msra.mxu0 0
        %577 = vmatprep.subr.bf16.mxu0 0
        %578 = vmatpush1.bf16.msra.mxu0 0
        %579 = vmatprep.subr.bf16.mxu0 0
        %580 = vmatpush1.bf16.msra.mxu0 0
        %581 = vmatprep.subr.bf16.mxu0 0
        %582 = vmatpush1.bf16.msra.mxu0 0
        %583 = vmatprep.subr.bf16.mxu0 0
        %584 = vmatpush1.bf16.msra.mxu0 0
        %585 = vmatprep.subr.bf16.mxu0 0
        %586 = vmatpush1.bf16.msra.mxu0 0
        %587 = vmatprep.subr.bf16.mxu0 0
        %588 = vmatpush1.bf16.msra.mxu0 0
        %589 = vmatprep.subr.bf16.mxu0 0
        %590 = vmatpush1.bf16.msra.mxu0 0
        %591 = vmatprep.subr.bf16.mxu0 0
        %592 = vmatpush1.bf16.msra.mxu0 0
        %593 = vmatprep.mubr.bf16.mxu0 0
        %594 = vmatmul.mubr.bf16.gmra.mrb[0].mxu0 %v547
        %v595 = vpop.f32.mrb[0].mxu0
        %v596 = vadd.f32 0.0, %v595
        %v597 = vpop.f32.mrb[0].mxu0
        %v598 = vpop.f32.mrb[0].mxu0
        %v599 = vadd.f32 0.0, %v598
        %v600 = vpop.f32.mrb[0].mxu0
        %601 = vmatprep.mubr.bf16.mxu0 0
        %602 = vmatmul.mubr.bf16.gmra.mrb[0].mxu0 %v550
        %v603 = vpop.f32.mrb[0].mxu0
        %v604 = vadd.f32 0.0, %v603
        %v605 = vpop.f32.mrb[0].mxu0
        %v606 = vpop.f32.mrb[0].mxu0
        %v607 = vadd.f32 0.0, %v606
        %v608 = vpop.f32.mrb[0].mxu0
        %609 = vmatprep.mubr.bf16.mxu0 0
        %610 = vmatmul.mubr.bf16.gmra.mrb[0].mxu0 %v553
        %v611 = vpop.f32.mrb[0].mxu0
        %v612 = vadd.f32 0.0, %v611
        %v613 = vpop.f32.mrb[0].mxu0
        %v614 = vpop.f32.mrb[0].mxu0
        %v615 = vadd.f32 0.0, %v614
        %v616 = vpop.f32.mrb[0].mxu0
        %617 = vmatprep.mubr.bf16.mxu0 0
        %618 = vmatmul.mubr.bf16.gmra.mrb[0].mxu0 %v556
        %v619 = vpop.f32.mrb[0].mxu0
        %v620 = vadd.f32 0.0, %v619
        %v621 = vpop.f32.mrb[0].mxu0
        %v622 = vpop.f32.mrb[0].mxu0
        %v623 = vadd.f32 0.0, %v622
        %v624 = vpop.f32.mrb[0].mxu0
        %625 = vdwg.mxu0
        %v626 = vadd.f32 %v524, %v596
        %v627 = vadd.f32 %v525, %v599
        %v628 = vadd.f32 %v526, %v604
        %v629 = vadd.f32 %v527, %v607
        %v630 = vadd.f32 %v528, %v612
        %v631 = vadd.f32 %v529, %v615
        %v632 = vadd.f32 %v530, %v620
        %v633 = vadd.f32 %v531, %v623
        %634 = vst [vmem:[#allocation3] sm:$0xff] %v626
        %635 = vst [vmem:[#allocation3 + $0x8] sm:$0xff] %v627
        %636 = vst [vmem:[#allocation3 + $0x10] sm:$0xff] %v628
        %637 = vst [vmem:[#allocation3 + $0x18] sm:$0xff] %v629
        %638 = vst [vmem:[#allocation3 + $0x20] sm:$0xff] %v630
        %639 = vst [vmem:[#allocation3 + $0x28] sm:$0xff] %v631
        %640 = vst [vmem:[#allocation3 + $0x30] sm:$0xff] %v632
        %641 = vst [vmem:[#allocation3 + $0x38] sm:$0xff] %v633
        %v642 = vld [vmem:[#allocation3] sm:$0xff]
        %v643 = vld [vmem:[#allocation3 + $0x8] sm:$0xff]
        %v644 = vld [vmem:[#allocation3 + $0x10] sm:$0xff]
        %v645 = vld [vmem:[#allocation3 + $0x18] sm:$0xff]
        %v646 = vld [vmem:[#allocation3 + $0x20] sm:$0xff]
        %v647 = vld [vmem:[#allocation3 + $0x28] sm:$0xff]
        %v648 = vld [vmem:[#allocation3 + $0x30] sm:$0xff]
        %v649 = vld [vmem:[#allocation3 + $0x38] sm:$0xff]
        %s650 = scalar_lea.vmem %s276, 288
        %v651 = vld [vmem:[%s650] sm:$0xff]
        %v652 = vld [vmem:[%s650 + $0x10] sm:$0xff]
        %v653 = vld [vmem:[%s650 + $0x20] sm:$0xff]
        %v654 = vld [vmem:[%s650 + $0x30] sm:$0xff]
        %v655 = vld [vmem:[%s650 + $0x40] sm:$0xff]
        %v656 = vld [vmem:[%s650 + $0x50] sm:$0xff]
        %v657 = vld [vmem:[%s650 + $0x60] sm:$0xff]
        %v658 = vld [vmem:[%s650 + $0x70] sm:$0xff]
        %v659 = vpack.c.bf16 %v652, %v651
        %v660 = vpack.c.bf16 %v654, %v653
        %v661 = vpack.c.bf16 %v656, %v655
        %v662 = vpack.c.bf16 %v658, %v657
        %s663 = scalar_lea.vmem %s1, 6
        %v664 = vld [vmem:[%s663] sm:$0x3]
        %v666 = vsel %vm307, %v659, 0
        %v669 = vsel %vm307, %v660, 0
        %v672 = vsel %vm307, %v661, 0
        %v675 = vsel %vm307, %v662, 0
        %v678 = vsel %vm320, %v664, 0
        %680 = vmatprep.subr.bf16.mxu0 0
        %681 = vmatpush1.bf16.msra.mxu0 %v678
        %682 = vmatprep.subr.bf16.mxu0 0
        %683 = vmatpush1.bf16.msra.mxu0 0
        %684 = vmatprep.subr.bf16.mxu0 0
        %685 = vmatpush1.bf16.msra.mxu0 0
        %686 = vmatprep.subr.bf16.mxu0 0
        %687 = vmatpush1.bf16.msra.mxu0 0
        %688 = vmatprep.subr.bf16.mxu0 0
        %689 = vmatpush1.bf16.msra.mxu0 0
        %690 = vmatprep.subr.bf16.mxu0 0
        %691 = vmatpush1.bf16.msra.mxu0 0
        %692 = vmatprep.subr.bf16.mxu0 0
        %693 = vmatpush1.bf16.msra.mxu0 0
        %694 = vmatprep.subr.bf16.mxu0 0
        %695 = vmatpush1.bf16.msra.mxu0 0
        %696 = vmatprep.subr.bf16.mxu0 0
        %697 = vmatpush1.bf16.msra.mxu0 0
        %698 = vmatprep.subr.bf16.mxu0 0
        %699 = vmatpush1.bf16.msra.mxu0 0
        %700 = vmatprep.subr.bf16.mxu0 0
        %701 = vmatpush1.bf16.msra.mxu0 0
        %702 = vmatprep.subr.bf16.mxu0 0
        %703 = vmatpush1.bf16.msra.mxu0 0
        %704 = vmatprep.subr.bf16.mxu0 0
        %705 = vmatpush1.bf16.msra.mxu0 0
        %706 = vmatprep.subr.bf16.mxu0 0
        %707 = vmatpush1.bf16.msra.mxu0 0
        %708 = vmatprep.subr.bf16.mxu0 0
        %709 = vmatpush1.bf16.msra.mxu0 0
        %710 = vmatprep.subr.bf16.mxu0 0
        %711 = vmatpush1.bf16.msra.mxu0 0
        %712 = vmatprep.mubr.bf16.mxu0 0
        %713 = vmatmul.mubr.bf16.gmra.mrb[0].mxu0 %v666
        %v714 = vpop.f32.mrb[0].mxu0
        %v715 = vadd.f32 0.0, %v714
        %v716 = vpop.f32.mrb[0].mxu0
        %v717 = vpop.f32.mrb[0].mxu0
        %v718 = vadd.f32 0.0, %v717
        %v719 = vpop.f32.mrb[0].mxu0
        %720 = vmatprep.mubr.bf16.mxu0 0
        %721 = vmatmul.mubr.bf16.gmra.mrb[0].mxu0 %v669
        %v722 = vpop.f32.mrb[0].mxu0
        %v723 = vadd.f32 0.0, %v722
        %v724 = vpop.f32.mrb[0].mxu0
        %v725 = vpop.f32.mrb[0].mxu0
        %v726 = vadd.f32 0.0, %v725
        %v727 = vpop.f32.mrb[0].mxu0
        %728 = vmatprep.mubr.bf16.mxu0 0
        %729 = vmatmul.mubr.bf16.gmra.mrb[0].mxu0 %v672
        %v730 = vpop.f32.mrb[0].mxu0
        %v731 = vadd.f32 0.0, %v730
        %v732 = vpop.f32.mrb[0].mxu0
        %v733 = vpop.f32.mrb[0].mxu0
        %v734 = vadd.f32 0.0, %v733
        %v735 = vpop.f32.mrb[0].mxu0
        %736 = vmatprep.mubr.bf16.mxu0 0
        %737 = vmatmul.mubr.bf16.gmra.mrb[0].mxu0 %v675
        %v738 = vpop.f32.mrb[0].mxu0
        %v739 = vadd.f32 0.0, %v738
        %v740 = vpop.f32.mrb[0].mxu0
        %v741 = vpop.f32.mrb[0].mxu0
        %v742 = vadd.f32 0.0, %v741
        %v743 = vpop.f32.mrb[0].mxu0
        %744 = vdwg.mxu0
        %v745 = vadd.f32 %v642, %v715
        %v746 = vadd.f32 %v643, %v718
        %v747 = vadd.f32 %v644, %v723
        %v748 = vadd.f32 %v645, %v726
        %v749 = vadd.f32 %v646, %v731
        %v750 = vadd.f32 %v647, %v734
        %v751 = vadd.f32 %v648, %v739
        %v752 = vadd.f32 %v649, %v742
        %753 = vst [vmem:[#allocation3] sm:$0xff] %v745
        %754 = vst [vmem:[#allocation3 + $0x8] sm:$0xff] %v746
        %755 = vst [vmem:[#allocation3 + $0x10] sm:$0xff] %v747
        %756 = vst [vmem:[#allocation3 + $0x18] sm:$0xff] %v748
        %757 = vst [vmem:[#allocation3 + $0x20] sm:$0xff] %v749
        %758 = vst [vmem:[#allocation3 + $0x28] sm:$0xff] %v750
        %759 = vst [vmem:[#allocation3 + $0x30] sm:$0xff] %v751
        %760 = vst [vmem:[#allocation3 + $0x38] sm:$0xff] %v752
        %v761 = vld [vmem:[#allocation3] sm:$0xff]
        %v762 = vld [vmem:[#allocation3 + $0x8] sm:$0xff]
        %v763 = vld [vmem:[#allocation3 + $0x10] sm:$0xff]
        %v764 = vld [vmem:[#allocation3 + $0x18] sm:$0xff]
        %v765 = vld [vmem:[#allocation3 + $0x20] sm:$0xff]
        %v766 = vld [vmem:[#allocation3 + $0x28] sm:$0xff]
        %v767 = vld [vmem:[#allocation3 + $0x30] sm:$0xff]
        %v768 = vld [vmem:[#allocation3 + $0x38] sm:$0xff]
        %s769 = scalar_lea.vmem %s276, 432
        %v770 = vld [vmem:[%s769] sm:$0xff]
        %v771 = vld [vmem:[%s769 + $0x10] sm:$0xff]
        %v772 = vld [vmem:[%s769 + $0x20] sm:$0xff]
        %v773 = vld [vmem:[%s769 + $0x30] sm:$0xff]
        %v774 = vld [vmem:[%s769 + $0x40] sm:$0xff]
        %v775 = vld [vmem:[%s769 + $0x50] sm:$0xff]
        %v776 = vld [vmem:[%s769 + $0x60] sm:$0xff]
        %v777 = vld [vmem:[%s769 + $0x70] sm:$0xff]
        %v778 = vpack.c.bf16 %v771, %v770
        %v779 = vpack.c.bf16 %v773, %v772
        %v780 = vpack.c.bf16 %v775, %v774
        %v781 = vpack.c.bf16 %v777, %v776
        %s782 = scalar_lea.vmem %s1, 8
        %v783 = vld [vmem:[%s782] sm:$0x3]
        %v785 = vsel %vm307, %v778, 0
        %v788 = vsel %vm307, %v779, 0
        %v791 = vsel %vm307, %v780, 0
        %v794 = vsel %vm307, %v781, 0
        %v797 = vsel %vm320, %v783, 0
        %799 = vmatprep.subr.bf16.mxu0 0
        %800 = vmatpush1.bf16.msra.mxu0 %v797
        %801 = vmatprep.subr.bf16.mxu0 0
        %802 = vmatpush1.bf16.msra.mxu0 0
        %803 = vmatprep.subr.bf16.mxu0 0
        %804 = vmatpush1.bf16.msra.mxu0 0
        %805 = vmatprep.subr.bf16.mxu0 0
        %806 = vmatpush1.bf16.msra.mxu0 0
        %807 = vmatprep.subr.bf16.mxu0 0
        %808 = vmatpush1.bf16.msra.mxu0 0
        %809 = vmatprep.subr.bf16.mxu0 0
        %810 = vmatpush1.bf16.msra.mxu0 0
        %811 = vmatprep.subr.bf16.mxu0 0
        %812 = vmatpush1.bf16.msra.mxu0 0
        %813 = vmatprep.subr.bf16.mxu0 0
        %814 = vmatpush1.bf16.msra.mxu0 0
        %815 = vmatprep.subr.bf16.mxu0 0
        %816 = vmatpush1.bf16.msra.mxu0 0
        %817 = vmatprep.subr.bf16.mxu0 0
        %818 = vmatpush1.bf16.msra.mxu0 0
        %819 = vmatprep.subr.bf16.mxu0 0
        %820 = vmatpush1.bf16.msra.mxu0 0
        %821 = vmatprep.subr.bf16.mxu0 0
        %822 = vmatpush1.bf16.msra.mxu0 0
        %823 = vmatprep.subr.bf16.mxu0 0
        %824 = vmatpush1.bf16.msra.mxu0 0
        %825 = vmatprep.subr.bf16.mxu0 0
        %826 = vmatpush1.bf16.msra.mxu0 0
        %827 = vmatprep.subr.bf16.mxu0 0
        %828 = vmatpush1.bf16.msra.mxu0 0
        %829 = vmatprep.subr.bf16.mxu0 0
        %830 = vmatpush1.bf16.msra.mxu0 0
        %831 = vmatprep.mubr.bf16.mxu0 0
        %832 = vmatmul.mubr.bf16.gmra.mrb[0].mxu0 %v785
        %v833 = vpop.f32.mrb[0].mxu0
        %v834 = vadd.f32 0.0, %v833
        %v835 = vpop.f32.mrb[0].mxu0
        %v836 = vpop.f32.mrb[0].mxu0
        %v837 = vadd.f32 0.0, %v836
        %v838 = vpop.f32.mrb[0].mxu0
        %839 = vmatprep.mubr.bf16.mxu0 0
        %840 = vmatmul.mubr.bf16.gmra.mrb[0].mxu0 %v788
        %v841 = vpop.f32.mrb[0].mxu0
        %v842 = vadd.f32 0.0, %v841
        %v843 = vpop.f32.mrb[0].mxu0
        %v844 = vpop.f32.mrb[0].mxu0
        %v845 = vadd.f32 0.0, %v844
        %v846 = vpop.f32.mrb[0].mxu0
        %847 = vmatprep.mubr.bf16.mxu0 0
        %848 = vmatmul.mubr.bf16.gmra.mrb[0].mxu0 %v791
        %v849 = vpop.f32.mrb[0].mxu0
        %v850 = vadd.f32 0.0, %v849
        %v851 = vpop.f32.mrb[0].mxu0
        %v852 = vpop.f32.mrb[0].mxu0
        %v853 = vadd.f32 0.0, %v852
        %v854 = vpop.f32.mrb[0].mxu0
        %855 = vmatprep.mubr.bf16.mxu0 0
        %856 = vmatmul.mubr.bf16.gmra.mrb[0].mxu0 %v794
        %v857 = vpop.f32.mrb[0].mxu0
        %v858 = vadd.f32 0.0, %v857
        %v859 = vpop.f32.mrb[0].mxu0
        %v860 = vpop.f32.mrb[0].mxu0
        %v861 = vadd.f32 0.0, %v860
        %v862 = vpop.f32.mrb[0].mxu0
        %863 = vdwg.mxu0
        %v864 = vadd.f32 %v761, %v834
        %v865 = vadd.f32 %v762, %v837
        %v866 = vadd.f32 %v763, %v842
        %v867 = vadd.f32 %v764, %v845
        %v868 = vadd.f32 %v765, %v850
        %v869 = vadd.f32 %v766, %v853
        %v870 = vadd.f32 %v767, %v858
        %v871 = vadd.f32 %v768, %v861
        %872 = vst [vmem:[#allocation3] sm:$0xff] %v864
        %873 = vst [vmem:[#allocation3 + $0x8] sm:$0xff] %v865
        %874 = vst [vmem:[#allocation3 + $0x10] sm:$0xff] %v866
        %875 = vst [vmem:[#allocation3 + $0x18] sm:$0xff] %v867
        %876 = vst [vmem:[#allocation3 + $0x20] sm:$0xff] %v868
        %877 = vst [vmem:[#allocation3 + $0x28] sm:$0xff] %v869
        %878 = vst [vmem:[#allocation3 + $0x30] sm:$0xff] %v870
        %879 = vst [vmem:[#allocation3 + $0x38] sm:$0xff] %v871
        %v880 = vld [vmem:[#allocation3] sm:$0xff]
        %v881 = vld [vmem:[#allocation3 + $0x8] sm:$0xff]
        %v882 = vld [vmem:[#allocation3 + $0x10] sm:$0xff]
        %v883 = vld [vmem:[#allocation3 + $0x18] sm:$0xff]
        %v884 = vld [vmem:[#allocation3 + $0x20] sm:$0xff]
        %v885 = vld [vmem:[#allocation3 + $0x28] sm:$0xff]
        %v886 = vld [vmem:[#allocation3 + $0x30] sm:$0xff]
        %v887 = vld [vmem:[#allocation3 + $0x38] sm:$0xff]
        %v888 = vld [vmem:[%s650 + $0x1] sm:$0xff]
        %v889 = vld [vmem:[%s650 + $0x11] sm:$0xff]
        %v890 = vld [vmem:[%s650 + $0x21] sm:$0xff]
        %v891 = vld [vmem:[%s650 + $0x31] sm:$0xff]
        %v892 = vld [vmem:[%s650 + $0x41] sm:$0xff]
        %v893 = vld [vmem:[%s650 + $0x51] sm:$0xff]
        %v894 = vld [vmem:[%s650 + $0x61] sm:$0xff]
        %v895 = vld [vmem:[%s650 + $0x71] sm:$0xff]
        %v896 = vpack.c.bf16 %v889, %v888
        %v897 = vpack.c.bf16 %v891, %v890
        %v898 = vpack.c.bf16 %v893, %v892
        %v899 = vpack.c.bf16 %v895, %v894
        %s900 = scalar_lea.vmem %s1, 10
        %v901 = vld [vmem:[%s900] sm:$0x3]
        %v903 = vsel %vm307, %v896, 0
        %v906 = vsel %vm307, %v897, 0
        %v909 = vsel %vm307, %v898, 0
        %v912 = vsel %vm307, %v899, 0
        %v915 = vsel %vm320, %v901, 0
        %917 = vmatprep.subr.bf16.mxu0 0
        %918 = vmatpush1.bf16.msra.mxu0 %v915
        %919 = vmatprep.subr.bf16.mxu0 0
        %920 = vmatpush1.bf16.msra.mxu0 0
        %921 = vmatprep.subr.bf16.mxu0 0
        %922 = vmatpush1.bf16.msra.mxu0 0
        %923 = vmatprep.subr.bf16.mxu0 0
        %924 = vmatpush1.bf16.msra.mxu0 0
        %925 = vmatprep.subr.bf16.mxu0 0
        %926 = vmatpush1.bf16.msra.mxu0 0
        %927 = vmatprep.subr.bf16.mxu0 0
        %928 = vmatpush1.bf16.msra.mxu0 0
        %929 = vmatprep.subr.bf16.mxu0 0
        %930 = vmatpush1.bf16.msra.mxu0 0
        %931 = vmatprep.subr.bf16.mxu0 0
        %932 = vmatpush1.bf16.msra.mxu0 0
        %933 = vmatprep.subr.bf16.mxu0 0
        %934 = vmatpush1.bf16.msra.mxu0 0
        %935 = vmatprep.subr.bf16.mxu0 0
        %936 = vmatpush1.bf16.msra.mxu0 0
        %937 = vmatprep.subr.bf16.mxu0 0
        %938 = vmatpush1.bf16.msra.mxu0 0
        %939 = vmatprep.subr.bf16.mxu0 0
        %940 = vmatpush1.bf16.msra.mxu0 0
        %941 = vmatprep.subr.bf16.mxu0 0
        %942 = vmatpush1.bf16.msra.mxu0 0
        %943 = vmatprep.subr.bf16.mxu0 0
        %944 = vmatpush1.bf16.msra.mxu0 0
        %945 = vmatprep.subr.bf16.mxu0 0
        %946 = vmatpush1.bf16.msra.mxu0 0
        %947 = vmatprep.subr.bf16.mxu0 0
        %948 = vmatpush1.bf16.msra.mxu0 0
        %949 = vmatprep.mubr.bf16.mxu0 0
        %950 = vmatmul.mubr.bf16.gmra.mrb[0].mxu0 %v903
        %v951 = vpop.f32.mrb[0].mxu0
        %v952 = vadd.f32 0.0, %v951
        %v953 = vpop.f32.mrb[0].mxu0
        %v954 = vpop.f32.mrb[0].mxu0
        %v955 = vadd.f32 0.0, %v954
        %v956 = vpop.f32.mrb[0].mxu0
        %957 = vmatprep.mubr.bf16.mxu0 0
        %958 = vmatmul.mubr.bf16.gmra.mrb[0].mxu0 %v906
        %v959 = vpop.f32.mrb[0].mxu0
        %v960 = vadd.f32 0.0, %v959
        %v961 = vpop.f32.mrb[0].mxu0
        %v962 = vpop.f32.mrb[0].mxu0
        %v963 = vadd.f32 0.0, %v962
        %v964 = vpop.f32.mrb[0].mxu0
        %965 = vmatprep.mubr.bf16.mxu0 0
        %966 = vmatmul.mubr.bf16.gmra.mrb[0].mxu0 %v909
        %v967 = vpop.f32.mrb[0].mxu0
        %v968 = vadd.f32 0.0, %v967
        %v969 = vpop.f32.mrb[0].mxu0
        %v970 = vpop.f32.mrb[0].mxu0
        %v971 = vadd.f32 0.0, %v970
        %v972 = vpop.f32.mrb[0].mxu0
        %973 = vmatprep.mubr.bf16.mxu0 0
        %974 = vmatmul.mubr.bf16.gmra.mrb[0].mxu0 %v912
        %v975 = vpop.f32.mrb[0].mxu0
        %v976 = vadd.f32 0.0, %v975
        %v977 = vpop.f32.mrb[0].mxu0
        %v978 = vpop.f32.mrb[0].mxu0
        %v979 = vadd.f32 0.0, %v978
        %v980 = vpop.f32.mrb[0].mxu0
        %981 = vdwg.mxu0
        %v982 = vadd.f32 %v880, %v952
        %v983 = vadd.f32 %v881, %v955
        %v984 = vadd.f32 %v882, %v960
        %v985 = vadd.f32 %v883, %v963
        %v986 = vadd.f32 %v884, %v968
        %v987 = vadd.f32 %v885, %v971
        %v988 = vadd.f32 %v886, %v976
        %v989 = vadd.f32 %v887, %v979
        %990 = vst [vmem:[#allocation3] sm:$0xff] %v982
        %991 = vst [vmem:[#allocation3 + $0x8] sm:$0xff] %v983
        %992 = vst [vmem:[#allocation3 + $0x10] sm:$0xff] %v984
        %993 = vst [vmem:[#allocation3 + $0x18] sm:$0xff] %v985
        %994 = vst [vmem:[#allocation3 + $0x20] sm:$0xff] %v986
        %995 = vst [vmem:[#allocation3 + $0x28] sm:$0xff] %v987
        %996 = vst [vmem:[#allocation3 + $0x30] sm:$0xff] %v988
        %997 = vst [vmem:[#allocation3 + $0x38] sm:$0xff] %v989
        %v998 = vld [vmem:[#allocation3] sm:$0xff]
        %v999 = vld [vmem:[#allocation3 + $0x8] sm:$0xff]
        %v1000 = vld [vmem:[#allocation3 + $0x10] sm:$0xff]
        %v1001 = vld [vmem:[#allocation3 + $0x18] sm:$0xff]
        %v1002 = vld [vmem:[#allocation3 + $0x20] sm:$0xff]
        %v1003 = vld [vmem:[#allocation3 + $0x28] sm:$0xff]
        %v1004 = vld [vmem:[#allocation3 + $0x30] sm:$0xff]
        %v1005 = vld [vmem:[#allocation3 + $0x38] sm:$0xff]
        %s1006 = scalar_lea.vmem %s276, 16
        %v1007 = vld [vmem:[%s1006] sm:$0xff]
        %v1008 = vld [vmem:[%s1006 + $0x10] sm:$0xff]
        %v1009 = vld [vmem:[%s1006 + $0x20] sm:$0xff]
        %v1010 = vld [vmem:[%s1006 + $0x30] sm:$0xff]
        %v1011 = vld [vmem:[%s1006 + $0x40] sm:$0xff]
        %v1012 = vld [vmem:[%s1006 + $0x50] sm:$0xff]
        %v1013 = vld [vmem:[%s1006 + $0x60] sm:$0xff]
        %v1014 = vld [vmem:[%s1006 + $0x70] sm:$0xff]
        %v1015 = vpack.c.bf16 %v1008, %v1007
        %v1016 = vpack.c.bf16 %v1010, %v1009
        %v1017 = vpack.c.bf16 %v1012, %v1011
        %v1018 = vpack.c.bf16 %v1014, %v1013
        %s1019 = scalar_lea.vmem %s1, 12
        %v1020 = vld [vmem:[%s1019] sm:$0x3]
        %v1022 = vsel %vm307, %v1015, 0
        %v1025 = vsel %vm307, %v1016, 0
        %v1028 = vsel %vm307, %v1017, 0
        %v1031 = vsel %vm307, %v1018, 0
        %v1034 = vsel %vm320, %v1020, 0
        %1036 = vmatprep.subr.bf16.mxu0 0
        %1037 = vmatpush1.bf16.msra.mxu0 %v1034
        %1038 = vmatprep.subr.bf16.mxu0 0
        %1039 = vmatpush1.bf16.msra.mxu0 0
        %1040 = vmatprep.subr.bf16.mxu0 0
        %1041 = vmatpush1.bf16.msra.mxu0 0
        %1042 = vmatprep.subr.bf16.mxu0 0
        %1043 = vmatpush1.bf16.msra.mxu0 0
        %1044 = vmatprep.subr.bf16.mxu0 0
        %1045 = vmatpush1.bf16.msra.mxu0 0
        %1046 = vmatprep.subr.bf16.mxu0 0
        %1047 = vmatpush1.bf16.msra.mxu0 0
        %1048 = vmatprep.subr.bf16.mxu0 0
        %1049 = vmatpush1.bf16.msra.mxu0 0
        %1050 = vmatprep.subr.bf16.mxu0 0
        %1051 = vmatpush1.bf16.msra.mxu0 0
        %1052 = vmatprep.subr.bf16.mxu0 0
        %1053 = vmatpush1.bf16.msra.mxu0 0
        %1054 = vmatprep.subr.bf16.mxu0 0
        %1055 = vmatpush1.bf16.msra.mxu0 0
        %1056 = vmatprep.subr.bf16.mxu0 0
        %1057 = vmatpush1.bf16.msra.mxu0 0
        %1058 = vmatprep.subr.bf16.mxu0 0
        %1059 = vmatpush1.bf16.msra.mxu0 0
        %1060 = vmatprep.subr.bf16.mxu0 0
        %1061 = vmatpush1.bf16.msra.mxu0 0
        %1062 = vmatprep.subr.bf16.mxu0 0
        %1063 = vmatpush1.bf16.msra.mxu0 0
        %1064 = vmatprep.subr.bf16.mxu0 0
        %1065 = vmatpush1.bf16.msra.mxu0 0
        %1066 = vmatprep.subr.bf16.mxu0 0
        %1067 = vmatpush1.bf16.msra.mxu0 0
        %1068 = vmatprep.mubr.bf16.mxu0 0
        %1069 = vmatmul.mubr.bf16.gmra.mrb[0].mxu0 %v1022
        %v1070 = vpop.f32.mrb[0].mxu0
        %v1071 = vadd.f32 0.0, %v1070
        %v1072 = vpop.f32.mrb[0].mxu0
        %v1073 = vpop.f32.mrb[0].mxu0
        %v1074 = vadd.f32 0.0, %v1073
        %v1075 = vpop.f32.mrb[0].mxu0
        %1076 = vmatprep.mubr.bf16.mxu0 0
        %1077 = vmatmul.mubr.bf16.gmra.mrb[0].mxu0 %v1025
        %v1078 = vpop.f32.mrb[0].mxu0
        %v1079 = vadd.f32 0.0, %v1078
        %v1080 = vpop.f32.mrb[0].mxu0
        %v1081 = vpop.f32.mrb[0].mxu0
        %v1082 = vadd.f32 0.0, %v1081
        %v1083 = vpop.f32.mrb[0].mxu0
        %1084 = vmatprep.mubr.bf16.mxu0 0
        %1085 = vmatmul.mubr.bf16.gmra.mrb[0].mxu0 %v1028
        %v1086 = vpop.f32.mrb[0].mxu0
        %v1087 = vadd.f32 0.0, %v1086
        %v1088 = vpop.f32.mrb[0].mxu0
        %v1089 = vpop.f32.mrb[0].mxu0
        %v1090 = vadd.f32 0.0, %v1089
        %v1091 = vpop.f32.mrb[0].mxu0
        %1092 = vmatprep.mubr.bf16.mxu0 0
        %1093 = vmatmul.mubr.bf16.gmra.mrb[0].mxu0 %v1031
        %v1094 = vpop.f32.mrb[0].mxu0
        %v1095 = vadd.f32 0.0, %v1094
        %v1096 = vpop.f32.mrb[0].mxu0
        %v1097 = vpop.f32.mrb[0].mxu0
        %v1098 = vadd.f32 0.0, %v1097
        %v1099 = vpop.f32.mrb[0].mxu0
        %1100 = vdwg.mxu0
        %v1101 = vadd.f32 %v998, %v1071
        %v1102 = vadd.f32 %v999, %v1074
        %v1103 = vadd.f32 %v1000, %v1079
        %v1104 = vadd.f32 %v1001, %v1082
        %v1105 = vadd.f32 %v1002, %v1087
        %v1106 = vadd.f32 %v1003, %v1090
        %v1107 = vadd.f32 %v1004, %v1095
        %v1108 = vadd.f32 %v1005, %v1098
        %1109 = vst [vmem:[#allocation3] sm:$0xff] %v1101
        %1110 = vst [vmem:[#allocation3 + $0x8] sm:$0xff] %v1102
        %1111 = vst [vmem:[#allocation3 + $0x10] sm:$0xff] %v1103
        %1112 = vst [vmem:[#allocation3 + $0x18] sm:$0xff] %v1104
        %1113 = vst [vmem:[#allocation3 + $0x20] sm:$0xff] %v1105
        %1114 = vst [vmem:[#allocation3 + $0x28] sm:$0xff] %v1106
        %1115 = vst [vmem:[#allocation3 + $0x30] sm:$0xff] %v1107
        %1116 = vst [vmem:[#allocation3 + $0x38] sm:$0xff] %v1108
        %v1117 = vld [vmem:[#allocation3] sm:$0xff]
        %v1118 = vld [vmem:[#allocation3 + $0x8] sm:$0xff]
        %v1119 = vld [vmem:[#allocation3 + $0x10] sm:$0xff]
        %v1120 = vld [vmem:[#allocation3 + $0x18] sm:$0xff]
        %v1121 = vld [vmem:[#allocation3 + $0x20] sm:$0xff]
        %v1122 = vld [vmem:[#allocation3 + $0x28] sm:$0xff]
        %v1123 = vld [vmem:[#allocation3 + $0x30] sm:$0xff]
        %v1124 = vld [vmem:[#allocation3 + $0x38] sm:$0xff]
        %s1125 = scalar_lea.vmem %s276, 160
        %v1126 = vld [vmem:[%s1125] sm:$0xff]
        %v1127 = vld [vmem:[%s1125 + $0x10] sm:$0xff]
        %v1128 = vld [vmem:[%s1125 + $0x20] sm:$0xff]
        %v1129 = vld [vmem:[%s1125 + $0x30] sm:$0xff]
        %v1130 = vld [vmem:[%s1125 + $0x40] sm:$0xff]
        %v1131 = vld [vmem:[%s1125 + $0x50] sm:$0xff]
        %v1132 = vld [vmem:[%s1125 + $0x60] sm:$0xff]
        %v1133 = vld [vmem:[%s1125 + $0x70] sm:$0xff]
        %v1134 = vpack.c.bf16 %v1127, %v1126
        %v1135 = vpack.c.bf16 %v1129, %v1128
        %v1136 = vpack.c.bf16 %v1131, %v1130
        %v1137 = vpack.c.bf16 %v1133, %v1132
        %s1138 = scalar_lea.vmem %s1, 14
        %v1139 = vld [vmem:[%s1138] sm:$0x3]
        %v1141 = vsel %vm307, %v1134, 0
        %v1144 = vsel %vm307, %v1135, 0
        %v1147 = vsel %vm307, %v1136, 0
        %v1150 = vsel %vm307, %v1137, 0
        %v1153 = vsel %vm320, %v1139, 0
        %1155 = vmatprep.subr.bf16.mxu0 0
        %1156 = vmatpush1.bf16.msra.mxu0 %v1153
        %1157 = vmatprep.subr.bf16.mxu0 0
        %1158 = vmatpush1.bf16.msra.mxu0 0
        %1159 = vmatprep.subr.bf16.mxu0 0
        %1160 = vmatpush1.bf16.msra.mxu0 0
        %1161 = vmatprep.subr.bf16.mxu0 0
        %1162 = vmatpush1.bf16.msra.mxu0 0
        %1163 = vmatprep.subr.bf16.mxu0 0
        %1164 = vmatpush1.bf16.msra.mxu0 0
        %1165 = vmatprep.subr.bf16.mxu0 0
        %1166 = vmatpush1.bf16.msra.mxu0 0
        %1167 = vmatprep.subr.bf16.mxu0 0
        %1168 = vmatpush1.bf16.msra.mxu0 0
        %1169 = vmatprep.subr.bf16.mxu0 0
        %1170 = vmatpush1.bf16.msra.mxu0 0
        %1171 = vmatprep.subr.bf16.mxu0 0
        %1172 = vmatpush1.bf16.msra.mxu0 0
        %1173 = vmatprep.subr.bf16.mxu0 0
        %1174 = vmatpush1.bf16.msra.mxu0 0
        %1175 = vmatprep.subr.bf16.mxu0 0
        %1176 = vmatpush1.bf16.msra.mxu0 0
        %1177 = vmatprep.subr.bf16.mxu0 0
        %1178 = vmatpush1.bf16.msra.mxu0 0
        %1179 = vmatprep.subr.bf16.mxu0 0
        %1180 = vmatpush1.bf16.msra.mxu0 0
        %1181 = vmatprep.subr.bf16.mxu0 0
        %1182 = vmatpush1.bf16.msra.mxu0 0
        %1183 = vmatprep.subr.bf16.mxu0 0
        %1184 = vmatpush1.bf16.msra.mxu0 0
        %1185 = vmatprep.subr.bf16.mxu0 0
        %1186 = vmatpush1.bf16.msra.mxu0 0
        %1187 = vmatprep.mubr.bf16.mxu0 0
        %1188 = vmatmul.mubr.bf16.gmra.mrb[0].mxu0 %v1141
        %v1189 = vpop.f32.mrb[0].mxu0
        %v1190 = vadd.f32 0.0, %v1189
        %v1191 = vpop.f32.mrb[0].mxu0
        %v1192 = vpop.f32.mrb[0].mxu0
        %v1193 = vadd.f32 0.0, %v1192
        %v1194 = vpop.f32.mrb[0].mxu0
        %1195 = vmatprep.mubr.bf16.mxu0 0
        %1196 = vmatmul.mubr.bf16.gmra.mrb[0].mxu0 %v1144
        %v1197 = vpop.f32.mrb[0].mxu0
        %v1198 = vadd.f32 0.0, %v1197
        %v1199 = vpop.f32.mrb[0].mxu0
        %v1200 = vpop.f32.mrb[0].mxu0
        %v1201 = vadd.f32 0.0, %v1200
        %v1202 = vpop.f32.mrb[0].mxu0
        %1203 = vmatprep.mubr.bf16.mxu0 0
        %1204 = vmatmul.mubr.bf16.gmra.mrb[0].mxu0 %v1147
        %v1205 = vpop.f32.mrb[0].mxu0
        %v1206 = vadd.f32 0.0, %v1205
        %v1207 = vpop.f32.mrb[0].mxu0
        %v1208 = vpop.f32.mrb[0].mxu0
        %v1209 = vadd.f32 0.0, %v1208
        %v1210 = vpop.f32.mrb[0].mxu0
        %1211 = vmatprep.mubr.bf16.mxu0 0
        %1212 = vmatmul.mubr.bf16.gmra.mrb[0].mxu0 %v1150
        %v1213 = vpop.f32.mrb[0].mxu0
        %v1214 = vadd.f32 0.0, %v1213
        %v1215 = vpop.f32.mrb[0].mxu0
        %v1216 = vpop.f32.mrb[0].mxu0
        %v1217 = vadd.f32 0.0, %v1216
        %v1218 = vpop.f32.mrb[0].mxu0
        %1219 = vdwg.mxu0
        %v1220 = vadd.f32 %v1117, %v1190
        %v1221 = vadd.f32 %v1118, %v1193
        %v1222 = vadd.f32 %v1119, %v1198
        %v1223 = vadd.f32 %v1120, %v1201
        %v1224 = vadd.f32 %v1121, %v1206
        %v1225 = vadd.f32 %v1122, %v1209
        %v1226 = vadd.f32 %v1123, %v1214
        %v1227 = vadd.f32 %v1124, %v1217
        %1228 = vst [vmem:[#allocation3] sm:$0xff] %v1220
        %1229 = vst [vmem:[#allocation3 + $0x8] sm:$0xff] %v1221
        %1230 = vst [vmem:[#allocation3 + $0x10] sm:$0xff] %v1222
        %1231 = vst [vmem:[#allocation3 + $0x18] sm:$0xff] %v1223
        %1232 = vst [vmem:[#allocation3 + $0x20] sm:$0xff] %v1224
        %1233 = vst [vmem:[#allocation3 + $0x28] sm:$0xff] %v1225
        %1234 = vst [vmem:[#allocation3 + $0x30] sm:$0xff] %v1226
        %1235 = vst [vmem:[#allocation3 + $0x38] sm:$0xff] %v1227
        %v1236 = vld [vmem:[#allocation3] sm:$0xff]
        %v1237 = vld [vmem:[#allocation3 + $0x8] sm:$0xff]
        %v1238 = vld [vmem:[#allocation3 + $0x10] sm:$0xff]
        %v1239 = vld [vmem:[#allocation3 + $0x18] sm:$0xff]
        %v1240 = vld [vmem:[#allocation3 + $0x20] sm:$0xff]
        %v1241 = vld [vmem:[#allocation3 + $0x28] sm:$0xff]
        %v1242 = vld [vmem:[#allocation3 + $0x30] sm:$0xff]
        %v1243 = vld [vmem:[#allocation3 + $0x38] sm:$0xff]
        %v1244 = vld [vmem:[%s1006 + $0x1] sm:$0xff]
        %v1245 = vld [vmem:[%s1006 + $0x11] sm:$0xff]
        %v1246 = vld [vmem:[%s1006 + $0x21] sm:$0xff]
        %v1247 = vld [vmem:[%s1006 + $0x31] sm:$0xff]
        %v1248 = vld [vmem:[%s1006 + $0x41] sm:$0xff]
        %v1249 = vld [vmem:[%s1006 + $0x51] sm:$0xff]
        %v1250 = vld [vmem:[%s1006 + $0x61] sm:$0xff]
        %v1251 = vld [vmem:[%s1006 + $0x71] sm:$0xff]
        %v1252 = vpack.c.bf16 %v1245, %v1244
        %v1253 = vpack.c.bf16 %v1247, %v1246
        %v1254 = vpack.c.bf16 %v1249, %v1248
        %v1255 = vpack.c.bf16 %v1251, %v1250
        %s1256 = scalar_lea.vmem %s1, 16
        %v1257 = vld [vmem:[%s1256] sm:$0x3]
        %v1259 = vsel %vm307, %v1252, 0
        %v1262 = vsel %vm307, %v1253, 0
        %v1265 = vsel %vm307, %v1254, 0
        %v1268 = vsel %vm307, %v1255, 0
        %v1271 = vsel %vm320, %v1257, 0
        %1273 = vmatprep.subr.bf16.mxu0 0
        %1274 = vmatpush1.bf16.msra.mxu0 %v1271
        %1275 = vmatprep.subr.bf16.mxu0 0
        %1276 = vmatpush1.bf16.msra.mxu0 0
        %1277 = vmatprep.subr.bf16.mxu0 0
        %1278 = vmatpush1.bf16.msra.mxu0 0
        %1279 = vmatprep.subr.bf16.mxu0 0
        %1280 = vmatpush1.bf16.msra.mxu0 0
        %1281 = vmatprep.subr.bf16.mxu0 0
        %1282 = vmatpush1.bf16.msra.mxu0 0
        %1283 = vmatprep.subr.bf16.mxu0 0
        %1284 = vmatpush1.bf16.msra.mxu0 0
        %1285 = vmatprep.subr.bf16.mxu0 0
        %1286 = vmatpush1.bf16.msra.mxu0 0
        %1287 = vmatprep.subr.bf16.mxu0 0
        %1288 = vmatpush1.bf16.msra.mxu0 0
        %1289 = vmatprep.subr.bf16.mxu0 0
        %1290 = vmatpush1.bf16.msra.mxu0 0
        %1291 = vmatprep.subr.bf16.mxu0 0
        %1292 = vmatpush1.bf16.msra.mxu0 0
        %1293 = vmatprep.subr.bf16.mxu0 0
        %1294 = vmatpush1.bf16.msra.mxu0 0
        %1295 = vmatprep.subr.bf16.mxu0 0
        %1296 = vmatpush1.bf16.msra.mxu0 0
        %1297 = vmatprep.subr.bf16.mxu0 0
        %1298 = vmatpush1.bf16.msra.mxu0 0
        %1299 = vmatprep.subr.bf16.mxu0 0
        %1300 = vmatpush1.bf16.msra.mxu0 0
        %1301 = vmatprep.subr.bf16.mxu0 0
        %1302 = vmatpush1.bf16.msra.mxu0 0
        %1303 = vmatprep.subr.bf16.mxu0 0
        %1304 = vmatpush1.bf16.msra.mxu0 0
        %1305 = vmatprep.mubr.bf16.mxu0 0
        %1306 = vmatmul.mubr.bf16.gmra.mrb[0].mxu0 %v1259
        %v1307 = vpop.f32.mrb[0].mxu0
        %v1308 = vadd.f32 0.0, %v1307
        %v1309 = vpop.f32.mrb[0].mxu0
        %v1310 = vpop.f32.mrb[0].mxu0
        %v1311 = vadd.f32 0.0, %v1310
        %v1312 = vpop.f32.mrb[0].mxu0
        %1313 = vmatprep.mubr.bf16.mxu0 0
        %1314 = vmatmul.mubr.bf16.gmra.mrb[0].mxu0 %v1262
        %v1315 = vpop.f32.mrb[0].mxu0
        %v1316 = vadd.f32 0.0, %v1315
        %v1317 = vpop.f32.mrb[0].mxu0
        %v1318 = vpop.f32.mrb[0].mxu0
        %v1319 = vadd.f32 0.0, %v1318
        %v1320 = vpop.f32.mrb[0].mxu0
        %1321 = vmatprep.mubr.bf16.mxu0 0
        %1322 = vmatmul.mubr.bf16.gmra.mrb[0].mxu0 %v1265
        %v1323 = vpop.f32.mrb[0].mxu0
        %v1324 = vadd.f32 0.0, %v1323
        %v1325 = vpop.f32.mrb[0].mxu0
        %v1326 = vpop.f32.mrb[0].mxu0
        %v1327 = vadd.f32 0.0, %v1326
        %v1328 = vpop.f32.mrb[0].mxu0
        %1329 = vmatprep.mubr.bf16.mxu0 0
        %1330 = vmatmul.mubr.bf16.gmra.mrb[0].mxu0 %v1268
        %v1331 = vpop.f32.mrb[0].mxu0
        %v1332 = vadd.f32 0.0, %v1331
        %v1333 = vpop.f32.mrb[0].mxu0
        %v1334 = vpop.f32.mrb[0].mxu0
        %v1335 = vadd.f32 0.0, %v1334
        %v1336 = vpop.f32.mrb[0].mxu0
        %1337 = vdwg.mxu0
        %v1338 = vadd.f32 %v1236, %v1308
        %v1339 = vadd.f32 %v1237, %v1311
        %v1340 = vadd.f32 %v1238, %v1316
        %v1341 = vadd.f32 %v1239, %v1319
        %v1342 = vadd.f32 %v1240, %v1324
        %v1343 = vadd.f32 %v1241, %v1327
        %v1344 = vadd.f32 %v1242, %v1332
        %v1345 = vadd.f32 %v1243, %v1335
        %1346 = vst [vmem:[#allocation3] sm:$0xff] %v1338
        %1347 = vst [vmem:[#allocation3 + $0x8] sm:$0xff] %v1339
        %1348 = vst [vmem:[#allocation3 + $0x10] sm:$0xff] %v1340
        %1349 = vst [vmem:[#allocation3 + $0x18] sm:$0xff] %v1341
        %1350 = vst [vmem:[#allocation3 + $0x20] sm:$0xff] %v1342
        %1351 = vst [vmem:[#allocation3 + $0x28] sm:$0xff] %v1343
        %1352 = vst [vmem:[#allocation3 + $0x30] sm:$0xff] %v1344
        %1353 = vst [vmem:[#allocation3 + $0x38] sm:$0xff] %v1345
        %v1354 = vld [vmem:[#allocation3] sm:$0xff]
        %v1355 = vld [vmem:[#allocation3 + $0x8] sm:$0xff]
        %v1356 = vld [vmem:[#allocation3 + $0x10] sm:$0xff]
        %v1357 = vld [vmem:[#allocation3 + $0x18] sm:$0xff]
        %v1358 = vld [vmem:[#allocation3 + $0x20] sm:$0xff]
        %v1359 = vld [vmem:[#allocation3 + $0x28] sm:$0xff]
        %v1360 = vld [vmem:[#allocation3 + $0x30] sm:$0xff]
        %v1361 = vld [vmem:[#allocation3 + $0x38] sm:$0xff]
        %v1362 = vld [vmem:[%s2] sm:$0x1]
        %v1364 = vlaneseq
        %v1365 = vshrl.u32 %v1364, 7
        %v1366 = vsub.s32 0, %v1365
        %v1367 = vrot.slane %v1362, %v1366
        %v1369 = vadd.f32 %v1354, %v1367
        %v1370 = vadd.f32 %v1355, %v1367
        %v1371 = vadd.f32 %v1356, %v1367
        %v1372 = vadd.f32 %v1357, %v1367
        %v1373 = vadd.f32 %v1358, %v1367
        %v1374 = vadd.f32 %v1359, %v1367
        %v1375 = vadd.f32 %v1360, %v1367
        %v1376 = vadd.f32 %v1361, %v1367
        %v1377 = vmax.f32 %v1369, 0.0
        %v1378 = vmax.f32 %v1370, 0.0
        %v1379 = vmax.f32 %v1371, 0.0
        %v1380 = vmax.f32 %v1372, 0.0
        %v1381 = vmax.f32 %v1373, 0.0
        %v1382 = vmax.f32 %v1374, 0.0
        %v1383 = vmax.f32 %v1375, 0.0
        %v1384 = vmax.f32 %v1376, 0.0
        %1385 = vst [vmem:[#allocation2] sm:$0xff] 0.0
        %1386 = vst [vmem:[#allocation2 + $0x8] sm:$0x3] 0.0
        %1387 = vst [vmem:[#allocation2 + $0x10] sm:$0xff] 0.0
        %1388 = vst [vmem:[#allocation2 + $0x18] sm:$0x3] 0.0
        %1389 = vst [vmem:[#allocation2 + $0x20] sm:$0xff] 0.0
        %1390 = vst [vmem:[#allocation2 + $0x28] sm:$0x3] 0.0
        %1391 = vst [vmem:[#allocation2 + $0x30] sm:$0xff] 0.0
        %1392 = vst [vmem:[#allocation2 + $0x38] sm:$0x3] 0.0
        %1393 = vst [vmem:[#allocation2 + $0x40] sm:$0xff] 0.0
        %1394 = vst [vmem:[#allocation2 + $0x48] sm:$0x3] 0.0
        %1395 = vst [vmem:[#allocation2 + $0x50] sm:$0xff] 0.0
        %1396 = vst [vmem:[#allocation2 + $0x58] sm:$0x3] 0.0
        %1397 = vst [vmem:[#allocation2 + $0x60] sm:$0xff] 0.0
        %1398 = vst [vmem:[#allocation2 + $0x68] sm:$0x3] 0.0
        %1399 = vst [vmem:[#allocation2 + $0x70] sm:$0xff] 0.0
        %1400 = vst [vmem:[#allocation2 + $0x78] sm:$0x3] 0.0
        %1401 = vst [vmem:[#allocation2 + $0x80] sm:$0xff] 0.0
        %1402 = vst [vmem:[#allocation2 + $0x88] sm:$0x3] 0.0
        %1403 = vst [vmem:[#allocation2 + $0x90] sm:$0xff] 0.0
        %1404 = vst [vmem:[#allocation2 + $0x98] sm:$0x3] 0.0
        %s1405 = scalar_lea.vmem [#allocation2], 16
        %1406 = vst [vmem:[%s1405 + $0x1] sm:$0xff] %v1377
        %1407 = vst [vmem:[%s1405 + $0x11] sm:$0xff] %v1378
        %1408 = vst [vmem:[%s1405 + $0x21] sm:$0xff] %v1379
        %1409 = vst [vmem:[%s1405 + $0x31] sm:$0xff] %v1380
        %1410 = vst [vmem:[%s1405 + $0x41] sm:$0xff] %v1381
        %1411 = vst [vmem:[%s1405 + $0x51] sm:$0xff] %v1382
        %1412 = vst [vmem:[%s1405 + $0x61] sm:$0xff] %v1383
        %1413 = vst [vmem:[%s1405 + $0x71] sm:$0xff] %v1384
        %1414 = vst [vmem:[#allocation3] sm:$0xff] 0.0
        %1415 = vst [vmem:[#allocation3 + $0x8] sm:$0xff] 0.0
        %1416 = vst [vmem:[#allocation3 + $0x10] sm:$0xff] 0.0
        %1417 = vst [vmem:[#allocation3 + $0x18] sm:$0xff] 0.0
        %1418 = vst [vmem:[#allocation3 + $0x20] sm:$0xff] 0.0
        %1419 = vst [vmem:[#allocation3 + $0x28] sm:$0xff] 0.0
        %1420 = vst [vmem:[#allocation3 + $0x30] sm:$0xff] 0.0
        %1421 = vst [vmem:[#allocation3 + $0x38] sm:$0xff] 0.0
        %v1422 = vld [vmem:[#allocation3] sm:$0xff]
        %v1423 = vld [vmem:[#allocation3 + $0x8] sm:$0xff]
        %v1424 = vld [vmem:[#allocation3 + $0x10] sm:$0xff]
        %v1425 = vld [vmem:[#allocation3 + $0x18] sm:$0xff]
        %v1426 = vld [vmem:[#allocation3 + $0x20] sm:$0xff]
        %v1427 = vld [vmem:[#allocation3 + $0x28] sm:$0xff]
        %v1428 = vld [vmem:[#allocation3 + $0x30] sm:$0xff]
        %v1429 = vld [vmem:[#allocation3 + $0x38] sm:$0xff]
        %v1430 = vld [vmem:[%s276] sm:$0xff]
        %v1431 = vld [vmem:[%s276 + $0x10] sm:$0xff]
        %v1432 = vld [vmem:[%s276 + $0x20] sm:$0xff]
        %v1433 = vld [vmem:[%s276 + $0x30] sm:$0xff]
        %v1434 = vld [vmem:[%s276 + $0x40] sm:$0xff]
        %v1435 = vld [vmem:[%s276 + $0x50] sm:$0xff]
        %v1436 = vld [vmem:[%s276 + $0x60] sm:$0xff]
        %v1437 = vld [vmem:[%s276 + $0x70] sm:$0xff]
        %v1438 = vpack.c.bf16 %v1431, %v1430
        %v1439 = vpack.c.bf16 %v1433, %v1432
        %v1440 = vpack.c.bf16 %v1435, %v1434
        %v1441 = vpack.c.bf16 %v1437, %v1436
        %v1442 = vld [vmem:[%s5] sm:$0x3]
        %v1444 = vsel %vm307, %v1438, 0
        %v1447 = vsel %vm307, %v1439, 0
        %v1450 = vsel %vm307, %v1440, 0
        %v1453 = vsel %vm307, %v1441, 0
        %v1456 = vsel %vm320, %v1442, 0
        %1458 = vmatprep.subr.bf16.mxu0 0
        %1459 = vmatpush1.bf16.msra.mxu0 %v1456
        %1460 = vmatprep.subr.bf16.mxu0 0
        %1461 = vmatpush1.bf16.msra.mxu0 0
        %1462 = vmatprep.subr.bf16.mxu0 0
        %1463 = vmatpush1.bf16.msra.mxu0 0
        %1464 = vmatprep.subr.bf16.mxu0 0
        %1465 = vmatpush1.bf16.msra.mxu0 0
        %1466 = vmatprep.subr.bf16.mxu0 0
        %1467 = vmatpush1.bf16.msra.mxu0 0
        %1468 = vmatprep.subr.bf16.mxu0 0
        %1469 = vmatpush1.bf16.msra.mxu0 0
        %1470 = vmatprep.subr.bf16.mxu0 0
        %1471 = vmatpush1.bf16.msra.mxu0 0
        %1472 = vmatprep.subr.bf16.mxu0 0
        %1473 = vmatpush1.bf16.msra.mxu0 0
        %1474 = vmatprep.subr.bf16.mxu0 0
        %1475 = vmatpush1.bf16.msra.mxu0 0
        %1476 = vmatprep.subr.bf16.mxu0 0
        %1477 = vmatpush1.bf16.msra.mxu0 0
        %1478 = vmatprep.subr.bf16.mxu0 0
        %1479 = vmatpush1.bf16.msra.mxu0 0
        %1480 = vmatprep.subr.bf16.mxu0 0
        %1481 = vmatpush1.bf16.msra.mxu0 0
        %1482 = vmatprep.subr.bf16.mxu0 0
        %1483 = vmatpush1.bf16.msra.mxu0 0
        %1484 = vmatprep.subr.bf16.mxu0 0
        %1485 = vmatpush1.bf16.msra.mxu0 0
        %1486 = vmatprep.subr.bf16.mxu0 0
        %1487 = vmatpush1.bf16.msra.mxu0 0
        %1488 = vmatprep.subr.bf16.mxu0 0
        %1489 = vmatpush1.bf16.msra.mxu0 0
        %1490 = vmatprep.mubr.bf16.mxu0 0
        %1491 = vmatmul.mubr.bf16.gmra.mrb[0].mxu0 %v1444
        %v1492 = vpop.f32.mrb[0].mxu0
        %v1493 = vadd.f32 0.0, %v1492
        %v1494 = vpop.f32.mrb[0].mxu0
        %v1495 = vpop.f32.mrb[0].mxu0
        %v1496 = vadd.f32 0.0, %v1495
        %v1497 = vpop.f32.mrb[0].mxu0
        %1498 = vmatprep.mubr.bf16.mxu0 0
        %1499 = vmatmul.mubr.bf16.gmra.mrb[0].mxu0 %v1447
        %v1500 = vpop.f32.mrb[0].mxu0
        %v1501 = vadd.f32 0.0, %v1500
        %v1502 = vpop.f32.mrb[0].mxu0
        %v1503 = vpop.f32.mrb[0].mxu0
        %v1504 = vadd.f32 0.0, %v1503
        %v1505 = vpop.f32.mrb[0].mxu0
        %1506 = vmatprep.mubr.bf16.mxu0 0
        %1507 = vmatmul.mubr.bf16.gmra.mrb[0].mxu0 %v1450
        %v1508 = vpop.f32.mrb[0].mxu0
        %v1509 = vadd.f32 0.0, %v1508
        %v1510 = vpop.f32.mrb[0].mxu0
        %v1511 = vpop.f32.mrb[0].mxu0
        %v1512 = vadd.f32 0.0, %v1511
        %v1513 = vpop.f32.mrb[0].mxu0
        %1514 = vmatprep.mubr.bf16.mxu0 0
        %1515 = vmatmul.mubr.bf16.gmra.mrb[0].mxu0 %v1453
        %v1516 = vpop.f32.mrb[0].mxu0
        %v1517 = vadd.f32 0.0, %v1516
        %v1518 = vpop.f32.mrb[0].mxu0
        %v1519 = vpop.f32.mrb[0].mxu0
        %v1520 = vadd.f32 0.0, %v1519
        %v1521 = vpop.f32.mrb[0].mxu0
        %1522 = vdwg.mxu0
        %v1523 = vadd.f32 %v1422, %v1493
        %v1524 = vadd.f32 %v1423, %v1496
        %v1525 = vadd.f32 %v1424, %v1501
        %v1526 = vadd.f32 %v1425, %v1504
        %v1527 = vadd.f32 %v1426, %v1509
        %v1528 = vadd.f32 %v1427, %v1512
        %v1529 = vadd.f32 %v1428, %v1517
        %v1530 = vadd.f32 %v1429, %v1520
        %1531 = vst [vmem:[#allocation3] sm:$0xff] %v1523
        %1532 = vst [vmem:[#allocation3 + $0x8] sm:$0xff] %v1524
        %1533 = vst [vmem:[#allocation3 + $0x10] sm:$0xff] %v1525
        %1534 = vst [vmem:[#allocation3 + $0x18] sm:$0xff] %v1526
        %1535 = vst [vmem:[#allocation3 + $0x20] sm:$0xff] %v1527
        %1536 = vst [vmem:[#allocation3 + $0x28] sm:$0xff] %v1528
        %1537 = vst [vmem:[#allocation3 + $0x30] sm:$0xff] %v1529
        %1538 = vst [vmem:[#allocation3 + $0x38] sm:$0xff] %v1530
        %v1539 = vld [vmem:[#allocation3] sm:$0xff]
        %v1540 = vld [vmem:[#allocation3 + $0x8] sm:$0xff]
        %v1541 = vld [vmem:[#allocation3 + $0x10] sm:$0xff]
        %v1542 = vld [vmem:[#allocation3 + $0x18] sm:$0xff]
        %v1543 = vld [vmem:[#allocation3 + $0x20] sm:$0xff]
        %v1544 = vld [vmem:[#allocation3 + $0x28] sm:$0xff]
        %v1545 = vld [vmem:[#allocation3 + $0x30] sm:$0xff]
        %v1546 = vld [vmem:[#allocation3 + $0x38] sm:$0xff]
        %v1547 = vld [vmem:[%s413] sm:$0xff]
        %v1548 = vld [vmem:[%s413 + $0x10] sm:$0xff]
        %v1549 = vld [vmem:[%s413 + $0x20] sm:$0xff]
        %v1550 = vld [vmem:[%s413 + $0x30] sm:$0xff]
        %v1551 = vld [vmem:[%s413 + $0x40] sm:$0xff]
        %v1552 = vld [vmem:[%s413 + $0x50] sm:$0xff]
        %v1553 = vld [vmem:[%s413 + $0x60] sm:$0xff]
        %v1554 = vld [vmem:[%s413 + $0x70] sm:$0xff]
        %v1555 = vpack.c.bf16 %v1548, %v1547
        %v1556 = vpack.c.bf16 %v1550, %v1549
        %v1557 = vpack.c.bf16 %v1552, %v1551
        %v1558 = vpack.c.bf16 %v1554, %v1553
        %s1559 = scalar_lea.vmem %s5, 2
        %v1560 = vld [vmem:[%s1559] sm:$0x3]
        %v1562 = vsel %vm307, %v1555, 0
        %v1565 = vsel %vm307, %v1556, 0
        %v1568 = vsel %vm307, %v1557, 0
        %v1571 = vsel %vm307, %v1558, 0
        %v1574 = vsel %vm320, %v1560, 0
        %1576 = vmatprep.subr.bf16.mxu0 0
        %1577 = vmatpush1.bf16.msra.mxu0 %v1574
        %1578 = vmatprep.subr.bf16.mxu0 0
        %1579 = vmatpush1.bf16.msra.mxu0 0
        %1580 = vmatprep.subr.bf16.mxu0 0
        %1581 = vmatpush1.bf16.msra.mxu0 0
        %1582 = vmatprep.subr.bf16.mxu0 0
        %1583 = vmatpush1.bf16.msra.mxu0 0
        %1584 = vmatprep.subr.bf16.mxu0 0
        %1585 = vmatpush1.bf16.msra.mxu0 0
        %1586 = vmatprep.subr.bf16.mxu0 0
        %1587 = vmatpush1.bf16.msra.mxu0 0
        %1588 = vmatprep.subr.bf16.mxu0 0
        %1589 = vmatpush1.bf16.msra.mxu0 0
        %1590 = vmatprep.subr.bf16.mxu0 0
        %1591 = vmatpush1.bf16.msra.mxu0 0
        %1592 = vmatprep.subr.bf16.mxu0 0
        %1593 = vmatpush1.bf16.msra.mxu0 0
        %1594 = vmatprep.subr.bf16.mxu0 0
        %1595 = vmatpush1.bf16.msra.mxu0 0
        %1596 = vmatprep.subr.bf16.mxu0 0
        %1597 = vmatpush1.bf16.msra.mxu0 0
        %1598 = vmatprep.subr.bf16.mxu0 0
        %1599 = vmatpush1.bf16.msra.mxu0 0
        %1600 = vmatprep.subr.bf16.mxu0 0
        %1601 = vmatpush1.bf16.msra.mxu0 0
        %1602 = vmatprep.subr.bf16.mxu0 0
        %1603 = vmatpush1.bf16.msra.mxu0 0
        %1604 = vmatprep.subr.bf16.mxu0 0
        %1605 = vmatpush1.bf16.msra.mxu0 0
        %1606 = vmatprep.subr.bf16.mxu0 0
        %1607 = vmatpush1.bf16.msra.mxu0 0
        %1608 = vmatprep.mubr.bf16.mxu0 0
        %1609 = vmatmul.mubr.bf16.gmra.mrb[0].mxu0 %v1562
        %v1610 = vpop.f32.mrb[0].mxu0
        %v1611 = vadd.f32 0.0, %v1610
        %v1612 = vpop.f32.mrb[0].mxu0
        %v1613 = vpop.f32.mrb[0].mxu0
        %v1614 = vadd.f32 0.0, %v1613
        %v1615 = vpop.f32.mrb[0].mxu0
        %1616 = vmatprep.mubr.bf16.mxu0 0
        %1617 = vmatmul.mubr.bf16.gmra.mrb[0].mxu0 %v1565
        %v1618 = vpop.f32.mrb[0].mxu0
        %v1619 = vadd.f32 0.0, %v1618
        %v1620 = vpop.f32.mrb[0].mxu0
        %v1621 = vpop.f32.mrb[0].mxu0
        %v1622 = vadd.f32 0.0, %v1621
        %v1623 = vpop.f32.mrb[0].mxu0
        %1624 = vmatprep.mubr.bf16.mxu0 0
        %1625 = vmatmul.mubr.bf16.gmra.mrb[0].mxu0 %v1568
        %v1626 = vpop.f32.mrb[0].mxu0
        %v1627 = vadd.f32 0.0, %v1626
        %v1628 = vpop.f32.mrb[0].mxu0
        %v1629 = vpop.f32.mrb[0].mxu0
        %v1630 = vadd.f32 0.0, %v1629
        %v1631 = vpop.f32.mrb[0].mxu0
        %1632 = vmatprep.mubr.bf16.mxu0 0
        %1633 = vmatmul.mubr.bf16.gmra.mrb[0].mxu0 %v1571
        %v1634 = vpop.f32.mrb[0].mxu0
        %v1635 = vadd.f32 0.0, %v1634
        %v1636 = vpop.f32.mrb[0].mxu0
        %v1637 = vpop.f32.mrb[0].mxu0
        %v1638 = vadd.f32 0.0, %v1637
        %v1639 = vpop.f32.mrb[0].mxu0
        %1640 = vdwg.mxu0
        %v1641 = vadd.f32 %v1539, %v1611
        %v1642 = vadd.f32 %v1540, %v1614
        %v1643 = vadd.f32 %v1541, %v1619
        %v1644 = vadd.f32 %v1542, %v1622
        %v1645 = vadd.f32 %v1543, %v1627
        %v1646 = vadd.f32 %v1544, %v1630
        %v1647 = vadd.f32 %v1545, %v1635
        %v1648 = vadd.f32 %v1546, %v1638
        %1649 = vst [vmem:[#allocation3] sm:$0xff] %v1641
        %1650 = vst [vmem:[#allocation3 + $0x8] sm:$0xff] %v1642
        %1651 = vst [vmem:[#allocation3 + $0x10] sm:$0xff] %v1643
        %1652 = vst [vmem:[#allocation3 + $0x18] sm:$0xff] %v1644
        %1653 = vst [vmem:[#allocation3 + $0x20] sm:$0xff] %v1645
        %1654 = vst [vmem:[#allocation3 + $0x28] sm:$0xff] %v1646
        %1655 = vst [vmem:[#allocation3 + $0x30] sm:$0xff] %v1647
        %1656 = vst [vmem:[#allocation3 + $0x38] sm:$0xff] %v1648
        %v1657 = vld [vmem:[#allocation3] sm:$0xff]
        %v1658 = vld [vmem:[#allocation3 + $0x8] sm:$0xff]
        %v1659 = vld [vmem:[#allocation3 + $0x10] sm:$0xff]
        %v1660 = vld [vmem:[#allocation3 + $0x18] sm:$0xff]
        %v1661 = vld [vmem:[#allocation3 + $0x20] sm:$0xff]
        %v1662 = vld [vmem:[#allocation3 + $0x28] sm:$0xff]
        %v1663 = vld [vmem:[#allocation3 + $0x30] sm:$0xff]
        %v1664 = vld [vmem:[#allocation3 + $0x38] sm:$0xff]
        %v1665 = vld [vmem:[%s276 + $0x1] sm:$0xff]
        %v1666 = vld [vmem:[%s276 + $0x11] sm:$0xff]
        %v1667 = vld [vmem:[%s276 + $0x21] sm:$0xff]
        %v1668 = vld [vmem:[%s276 + $0x31] sm:$0xff]
        %v1669 = vld [vmem:[%s276 + $0x41] sm:$0xff]
        %v1670 = vld [vmem:[%s276 + $0x51] sm:$0xff]
        %v1671 = vld [vmem:[%s276 + $0x61] sm:$0xff]
        %v1672 = vld [vmem:[%s276 + $0x71] sm:$0xff]
        %v1673 = vpack.c.bf16 %v1666, %v1665
        %v1674 = vpack.c.bf16 %v1668, %v1667
        %v1675 = vpack.c.bf16 %v1670, %v1669
        %v1676 = vpack.c.bf16 %v1672, %v1671
        %s1677 = scalar_lea.vmem %s5, 4
        %v1678 = vld [vmem:[%s1677] sm:$0x3]
        %v1680 = vsel %vm307, %v1673, 0
        %v1683 = vsel %vm307, %v1674, 0
        %v1686 = vsel %vm307, %v1675, 0
        %v1689 = vsel %vm307, %v1676, 0
        %v1692 = vsel %vm320, %v1678, 0
        %1694 = vmatprep.subr.bf16.mxu0 0
        %1695 = vmatpush1.bf16.msra.mxu0 %v1692
        %1696 = vmatprep.subr.bf16.mxu0 0
        %1697 = vmatpush1.bf16.msra.mxu0 0
        %1698 = vmatprep.subr.bf16.mxu0 0
        %1699 = vmatpush1.bf16.msra.mxu0 0
        %1700 = vmatprep.subr.bf16.mxu0 0
        %1701 = vmatpush1.bf16.msra.mxu0 0
        %1702 = vmatprep.subr.bf16.mxu0 0
        %1703 = vmatpush1.bf16.msra.mxu0 0
        %1704 = vmatprep.subr.bf16.mxu0 0
        %1705 = vmatpush1.bf16.msra.mxu0 0
        %1706 = vmatprep.subr.bf16.mxu0 0
        %1707 = vmatpush1.bf16.msra.mxu0 0
        %1708 = vmatprep.subr.bf16.mxu0 0
        %1709 = vmatpush1.bf16.msra.mxu0 0
        %1710 = vmatprep.subr.bf16.mxu0 0
        %1711 = vmatpush1.bf16.msra.mxu0 0
        %1712 = vmatprep.subr.bf16.mxu0 0
        %1713 = vmatpush1.bf16.msra.mxu0 0
        %1714 = vmatprep.subr.bf16.mxu0 0
        %1715 = vmatpush1.bf16.msra.mxu0 0
        %1716 = vmatprep.subr.bf16.mxu0 0
        %1717 = vmatpush1.bf16.msra.mxu0 0
        %1718 = vmatprep.subr.bf16.mxu0 0
        %1719 = vmatpush1.bf16.msra.mxu0 0
        %1720 = vmatprep.subr.bf16.mxu0 0
        %1721 = vmatpush1.bf16.msra.mxu0 0
        %1722 = vmatprep.subr.bf16.mxu0 0
        %1723 = vmatpush1.bf16.msra.mxu0 0
        %1724 = vmatprep.subr.bf16.mxu0 0
        %1725 = vmatpush1.bf16.msra.mxu0 0
        %1726 = vmatprep.mubr.bf16.mxu0 0
        %1727 = vmatmul.mubr.bf16.gmra.mrb[0].mxu0 %v1680
        %v1728 = vpop.f32.mrb[0].mxu0
        %v1729 = vadd.f32 0.0, %v1728
        %v1730 = vpop.f32.mrb[0].mxu0
        %v1731 = vpop.f32.mrb[0].mxu0
        %v1732 = vadd.f32 0.0, %v1731
        %v1733 = vpop.f32.mrb[0].mxu0
        %1734 = vmatprep.mubr.bf16.mxu0 0
        %1735 = vmatmul.mubr.bf16.gmra.mrb[0].mxu0 %v1683
        %v1736 = vpop.f32.mrb[0].mxu0
        %v1737 = vadd.f32 0.0, %v1736
        %v1738 = vpop.f32.mrb[0].mxu0
        %v1739 = vpop.f32.mrb[0].mxu0
        %v1740 = vadd.f32 0.0, %v1739
        %v1741 = vpop.f32.mrb[0].mxu0
        %1742 = vmatprep.mubr.bf16.mxu0 0
        %1743 = vmatmul.mubr.bf16.gmra.mrb[0].mxu0 %v1686
        %v1744 = vpop.f32.mrb[0].mxu0
        %v1745 = vadd.f32 0.0, %v1744
        %v1746 = vpop.f32.mrb[0].mxu0
        %v1747 = vpop.f32.mrb[0].mxu0
        %v1748 = vadd.f32 0.0, %v1747
        %v1749 = vpop.f32.mrb[0].mxu0
        %1750 = vmatprep.mubr.bf16.mxu0 0
        %1751 = vmatmul.mubr.bf16.gmra.mrb[0].mxu0 %v1689
        %v1752 = vpop.f32.mrb[0].mxu0
        %v1753 = vadd.f32 0.0, %v1752
        %v1754 = vpop.f32.mrb[0].mxu0
        %v1755 = vpop.f32.mrb[0].mxu0
        %v1756 = vadd.f32 0.0, %v1755
        %v1757 = vpop.f32.mrb[0].mxu0
        %1758 = vdwg.mxu0
        %v1759 = vadd.f32 %v1657, %v1729
        %v1760 = vadd.f32 %v1658, %v1732
        %v1761 = vadd.f32 %v1659, %v1737
        %v1762 = vadd.f32 %v1660, %v1740
        %v1763 = vadd.f32 %v1661, %v1745
        %v1764 = vadd.f32 %v1662, %v1748
        %v1765 = vadd.f32 %v1663, %v1753
        %v1766 = vadd.f32 %v1664, %v1756
        %1767 = vst [vmem:[#allocation3] sm:$0xff] %v1759
        %1768 = vst [vmem:[#allocation3 + $0x8] sm:$0xff] %v1760
        %1769 = vst [vmem:[#allocation3 + $0x10] sm:$0xff] %v1761
        %1770 = vst [vmem:[#allocation3 + $0x18] sm:$0xff] %v1762
        %1771 = vst [vmem:[#allocation3 + $0x20] sm:$0xff] %v1763
        %1772 = vst [vmem:[#allocation3 + $0x28] sm:$0xff] %v1764
        %1773 = vst [vmem:[#allocation3 + $0x30] sm:$0xff] %v1765
        %1774 = vst [vmem:[#allocation3 + $0x38] sm:$0xff] %v1766
        %v1775 = vld [vmem:[#allocation3] sm:$0xff]
        %v1776 = vld [vmem:[#allocation3 + $0x8] sm:$0xff]
        %v1777 = vld [vmem:[#allocation3 + $0x10] sm:$0xff]
        %v1778 = vld [vmem:[#allocation3 + $0x18] sm:$0xff]
        %v1779 = vld [vmem:[#allocation3 + $0x20] sm:$0xff]
        %v1780 = vld [vmem:[#allocation3 + $0x28] sm:$0xff]
        %v1781 = vld [vmem:[#allocation3 + $0x30] sm:$0xff]
        %v1782 = vld [vmem:[#allocation3 + $0x38] sm:$0xff]
        %v1783 = vld [vmem:[%s650] sm:$0xff]
        %v1784 = vld [vmem:[%s650 + $0x10] sm:$0xff]
        %v1785 = vld [vmem:[%s650 + $0x20] sm:$0xff]
        %v1786 = vld [vmem:[%s650 + $0x30] sm:$0xff]
        %v1787 = vld [vmem:[%s650 + $0x40] sm:$0xff]
        %v1788 = vld [vmem:[%s650 + $0x50] sm:$0xff]
        %v1789 = vld [vmem:[%s650 + $0x60] sm:$0xff]
        %v1790 = vld [vmem:[%s650 + $0x70] sm:$0xff]
        %v1791 = vpack.c.bf16 %v1784, %v1783
        %v1792 = vpack.c.bf16 %v1786, %v1785
        %v1793 = vpack.c.bf16 %v1788, %v1787
        %v1794 = vpack.c.bf16 %v1790, %v1789
        %s1795 = scalar_lea.vmem %s5, 6
        %v1796 = vld [vmem:[%s1795] sm:$0x3]
        %v1798 = vsel %vm307, %v1791, 0
        %v1801 = vsel %vm307, %v1792, 0
        %v1804 = vsel %vm307, %v1793, 0
        %v1807 = vsel %vm307, %v1794, 0
        %v1810 = vsel %vm320, %v1796, 0
        %1812 = vmatprep.subr.bf16.mxu0 0
        %1813 = vmatpush1.bf16.msra.mxu0 %v1810
        %1814 = vmatprep.subr.bf16.mxu0 0
        %1815 = vmatpush1.bf16.msra.mxu0 0
        %1816 = vmatprep.subr.bf16.mxu0 0
        %1817 = vmatpush1.bf16.msra.mxu0 0
        %1818 = vmatprep.subr.bf16.mxu0 0
        %1819 = vmatpush1.bf16.msra.mxu0 0
        %1820 = vmatprep.subr.bf16.mxu0 0
        %1821 = vmatpush1.bf16.msra.mxu0 0
        %1822 = vmatprep.subr.bf16.mxu0 0
        %1823 = vmatpush1.bf16.msra.mxu0 0
        %1824 = vmatprep.subr.bf16.mxu0 0
        %1825 = vmatpush1.bf16.msra.mxu0 0
        %1826 = vmatprep.subr.bf16.mxu0 0
        %1827 = vmatpush1.bf16.msra.mxu0 0
        %1828 = vmatprep.subr.bf16.mxu0 0
        %1829 = vmatpush1.bf16.msra.mxu0 0
        %1830 = vmatprep.subr.bf16.mxu0 0
        %1831 = vmatpush1.bf16.msra.mxu0 0
        %1832 = vmatprep.subr.bf16.mxu0 0
        %1833 = vmatpush1.bf16.msra.mxu0 0
        %1834 = vmatprep.subr.bf16.mxu0 0
        %1835 = vmatpush1.bf16.msra.mxu0 0
        %1836 = vmatprep.subr.bf16.mxu0 0
        %1837 = vmatpush1.bf16.msra.mxu0 0
        %1838 = vmatprep.subr.bf16.mxu0 0
        %1839 = vmatpush1.bf16.msra.mxu0 0
        %1840 = vmatprep.subr.bf16.mxu0 0
        %1841 = vmatpush1.bf16.msra.mxu0 0
        %1842 = vmatprep.subr.bf16.mxu0 0
        %1843 = vmatpush1.bf16.msra.mxu0 0
        %1844 = vmatprep.mubr.bf16.mxu0 0
        %1845 = vmatmul.mubr.bf16.gmra.mrb[0].mxu0 %v1798
        %v1846 = vpop.f32.mrb[0].mxu0
        %v1847 = vadd.f32 0.0, %v1846
        %v1848 = vpop.f32.mrb[0].mxu0
        %v1849 = vpop.f32.mrb[0].mxu0
        %v1850 = vadd.f32 0.0, %v1849
        %v1851 = vpop.f32.mrb[0].mxu0
        %1852 = vmatprep.mubr.bf16.mxu0 0
        %1853 = vmatmul.mubr.bf16.gmra.mrb[0].mxu0 %v1801
        %v1854 = vpop.f32.mrb[0].mxu0
        %v1855 = vadd.f32 0.0, %v1854
        %v1856 = vpop.f32.mrb[0].mxu0
        %v1857 = vpop.f32.mrb[0].mxu0
        %v1858 = vadd.f32 0.0, %v1857
        %v1859 = vpop.f32.mrb[0].mxu0
        %1860 = vmatprep.mubr.bf16.mxu0 0
        %1861 = vmatmul.mubr.bf16.gmra.mrb[0].mxu0 %v1804
        %v1862 = vpop.f32.mrb[0].mxu0
        %v1863 = vadd.f32 0.0, %v1862
        %v1864 = vpop.f32.mrb[0].mxu0
        %v1865 = vpop.f32.mrb[0].mxu0
        %v1866 = vadd.f32 0.0, %v1865
        %v1867 = vpop.f32.mrb[0].mxu0
        %1868 = vmatprep.mubr.bf16.mxu0 0
        %1869 = vmatmul.mubr.bf16.gmra.mrb[0].mxu0 %v1807
        %v1870 = vpop.f32.mrb[0].mxu0
        %v1871 = vadd.f32 0.0, %v1870
        %v1872 = vpop.f32.mrb[0].mxu0
        %v1873 = vpop.f32.mrb[0].mxu0
        %v1874 = vadd.f32 0.0, %v1873
        %v1875 = vpop.f32.mrb[0].mxu0
        %1876 = vdwg.mxu0
        %v1877 = vadd.f32 %v1775, %v1847
        %v1878 = vadd.f32 %v1776, %v1850
        %v1879 = vadd.f32 %v1777, %v1855
        %v1880 = vadd.f32 %v1778, %v1858
        %v1881 = vadd.f32 %v1779, %v1863
        %v1882 = vadd.f32 %v1780, %v1866
        %v1883 = vadd.f32 %v1781, %v1871
        %v1884 = vadd.f32 %v1782, %v1874
        %1885 = vst [vmem:[#allocation3] sm:$0xff] %v1877
        %1886 = vst [vmem:[#allocation3 + $0x8] sm:$0xff] %v1878
        %1887 = vst [vmem:[#allocation3 + $0x10] sm:$0xff] %v1879
        %1888 = vst [vmem:[#allocation3 + $0x18] sm:$0xff] %v1880
        %1889 = vst [vmem:[#allocation3 + $0x20] sm:$0xff] %v1881
        %1890 = vst [vmem:[#allocation3 + $0x28] sm:$0xff] %v1882
        %1891 = vst [vmem:[#allocation3 + $0x30] sm:$0xff] %v1883
        %1892 = vst [vmem:[#allocation3 + $0x38] sm:$0xff] %v1884
        %v1893 = vld [vmem:[#allocation3] sm:$0xff]
        %v1894 = vld [vmem:[#allocation3 + $0x8] sm:$0xff]
        %v1895 = vld [vmem:[#allocation3 + $0x10] sm:$0xff]
        %v1896 = vld [vmem:[#allocation3 + $0x18] sm:$0xff]
        %v1897 = vld [vmem:[#allocation3 + $0x20] sm:$0xff]
        %v1898 = vld [vmem:[#allocation3 + $0x28] sm:$0xff]
        %v1899 = vld [vmem:[#allocation3 + $0x30] sm:$0xff]
        %v1900 = vld [vmem:[#allocation3 + $0x38] sm:$0xff]
        %v1901 = vld [vmem:[%s769] sm:$0xff]
        %v1902 = vld [vmem:[%s769 + $0x10] sm:$0xff]
        %v1903 = vld [vmem:[%s769 + $0x20] sm:$0xff]
        %v1904 = vld [vmem:[%s769 + $0x30] sm:$0xff]
        %v1905 = vld [vmem:[%s769 + $0x40] sm:$0xff]
        %v1906 = vld [vmem:[%s769 + $0x50] sm:$0xff]
        %v1907 = vld [vmem:[%s769 + $0x60] sm:$0xff]
        %v1908 = vld [vmem:[%s769 + $0x70] sm:$0xff]
        %v1909 = vpack.c.bf16 %v1902, %v1901
        %v1910 = vpack.c.bf16 %v1904, %v1903
        %v1911 = vpack.c.bf16 %v1906, %v1905
        %v1912 = vpack.c.bf16 %v1908, %v1907
        %s1913 = scalar_lea.vmem %s5, 8
        %v1914 = vld [vmem:[%s1913] sm:$0x3]
        %v1916 = vsel %vm307, %v1909, 0
        %v1919 = vsel %vm307, %v1910, 0
        %v1922 = vsel %vm307, %v1911, 0
        %v1925 = vsel %vm307, %v1912, 0
        %v1928 = vsel %vm320, %v1914, 0
        %1930 = vmatprep.subr.bf16.mxu0 0
        %1931 = vmatpush1.bf16.msra.mxu0 %v1928
        %1932 = vmatprep.subr.bf16.mxu0 0
        %1933 = vmatpush1.bf16.msra.mxu0 0
        %1934 = vmatprep.subr.bf16.mxu0 0
        %1935 = vmatpush1.bf16.msra.mxu0 0
        %1936 = vmatprep.subr.bf16.mxu0 0
        %1937 = vmatpush1.bf16.msra.mxu0 0
        %1938 = vmatprep.subr.bf16.mxu0 0
        %1939 = vmatpush1.bf16.msra.mxu0 0
        %1940 = vmatprep.subr.bf16.mxu0 0
        %1941 = vmatpush1.bf16.msra.mxu0 0
        %1942 = vmatprep.subr.bf16.mxu0 0
        %1943 = vmatpush1.bf16.msra.mxu0 0
        %1944 = vmatprep.subr.bf16.mxu0 0
        %1945 = vmatpush1.bf16.msra.mxu0 0
        %1946 = vmatprep.subr.bf16.mxu0 0
        %1947 = vmatpush1.bf16.msra.mxu0 0
        %1948 = vmatprep.subr.bf16.mxu0 0
        %1949 = vmatpush1.bf16.msra.mxu0 0
        %1950 = vmatprep.subr.bf16.mxu0 0
        %1951 = vmatpush1.bf16.msra.mxu0 0
        %1952 = vmatprep.subr.bf16.mxu0 0
        %1953 = vmatpush1.bf16.msra.mxu0 0
        %1954 = vmatprep.subr.bf16.mxu0 0
        %1955 = vmatpush1.bf16.msra.mxu0 0
        %1956 = vmatprep.subr.bf16.mxu0 0
        %1957 = vmatpush1.bf16.msra.mxu0 0
        %1958 = vmatprep.subr.bf16.mxu0 0
        %1959 = vmatpush1.bf16.msra.mxu0 0
        %1960 = vmatprep.subr.bf16.mxu0 0
        %1961 = vmatpush1.bf16.msra.mxu0 0
        %1962 = vmatprep.mubr.bf16.mxu0 0
        %1963 = vmatmul.mubr.bf16.gmra.mrb[0].mxu0 %v1916
        %v1964 = vpop.f32.mrb[0].mxu0
        %v1965 = vadd.f32 0.0, %v1964
        %v1966 = vpop.f32.mrb[0].mxu0
        %v1967 = vpop.f32.mrb[0].mxu0
        %v1968 = vadd.f32 0.0, %v1967
        %v1969 = vpop.f32.mrb[0].mxu0
        %1970 = vmatprep.mubr.bf16.mxu0 0
        %1971 = vmatmul.mubr.bf16.gmra.mrb[0].mxu0 %v1919
        %v1972 = vpop.f32.mrb[0].mxu0
        %v1973 = vadd.f32 0.0, %v1972
        %v1974 = vpop.f32.mrb[0].mxu0
        %v1975 = vpop.f32.mrb[0].mxu0
        %v1976 = vadd.f32 0.0, %v1975
        %v1977 = vpop.f32.mrb[0].mxu0
        %1978 = vmatprep.mubr.bf16.mxu0 0
        %1979 = vmatmul.mubr.bf16.gmra.mrb[0].mxu0 %v1922
        %v1980 = vpop.f32.mrb[0].mxu0
        %v1981 = vadd.f32 0.0, %v1980
        %v1982 = vpop.f32.mrb[0].mxu0
        %v1983 = vpop.f32.mrb[0].mxu0
        %v1984 = vadd.f32 0.0, %v1983
        %v1985 = vpop.f32.mrb[0].mxu0
        %1986 = vmatprep.mubr.bf16.mxu0 0
        %1987 = vmatmul.mubr.bf16.gmra.mrb[0].mxu0 %v1925
        %v1988 = vpop.f32.mrb[0].mxu0
        %v1989 = vadd.f32 0.0, %v1988
        %v1990 = vpop.f32.mrb[0].mxu0
        %v1991 = vpop.f32.mrb[0].mxu0
        %v1992 = vadd.f32 0.0, %v1991
        %v1993 = vpop.f32.mrb[0].mxu0
        %1994 = vdwg.mxu0
        %v1995 = vadd.f32 %v1893, %v1965
        %v1996 = vadd.f32 %v1894, %v1968
        %v1997 = vadd.f32 %v1895, %v1973
        %v1998 = vadd.f32 %v1896, %v1976
        %v1999 = vadd.f32 %v1897, %v1981
        %v2000 = vadd.f32 %v1898, %v1984
        %v2001 = vadd.f32 %v1899, %v1989
        %v2002 = vadd.f32 %v1900, %v1992
        %2003 = vst [vmem:[#allocation3] sm:$0xff] %v1995
        %2004 = vst [vmem:[#allocation3 + $0x8] sm:$0xff] %v1996
        %2005 = vst [vmem:[#allocation3 + $0x10] sm:$0xff] %v1997
        %2006 = vst [vmem:[#allocation3 + $0x18] sm:$0xff] %v1998
        %2007 = vst [vmem:[#allocation3 + $0x20] sm:$0xff] %v1999
        %2008 = vst [vmem:[#allocation3 + $0x28] sm:$0xff] %v2000
        %2009 = vst [vmem:[#allocation3 + $0x30] sm:$0xff] %v2001
        %2010 = vst [vmem:[#allocation3 + $0x38] sm:$0xff] %v2002
        %v2011 = vld [vmem:[#allocation3] sm:$0xff]
        %v2012 = vld [vmem:[#allocation3 + $0x8] sm:$0xff]
        %v2013 = vld [vmem:[#allocation3 + $0x10] sm:$0xff]
        %v2014 = vld [vmem:[#allocation3 + $0x18] sm:$0xff]
        %v2015 = vld [vmem:[#allocation3 + $0x20] sm:$0xff]
        %v2016 = vld [vmem:[#allocation3 + $0x28] sm:$0xff]
        %v2017 = vld [vmem:[#allocation3 + $0x30] sm:$0xff]
        %v2018 = vld [vmem:[#allocation3 + $0x38] sm:$0xff]
        %v2019 = vld [vmem:[%s650 + $0x1] sm:$0xff]
        %v2020 = vld [vmem:[%s650 + $0x11] sm:$0xff]
        %v2021 = vld [vmem:[%s650 + $0x21] sm:$0xff]
        %v2022 = vld [vmem:[%s650 + $0x31] sm:$0xff]
        %v2023 = vld [vmem:[%s650 + $0x41] sm:$0xff]
        %v2024 = vld [vmem:[%s650 + $0x51] sm:$0xff]
        %v2025 = vld [vmem:[%s650 + $0x61] sm:$0xff]
        %v2026 = vld [vmem:[%s650 + $0x71] sm:$0xff]
        %v2027 = vpack.c.bf16 %v2020, %v2019
        %v2028 = vpack.c.bf16 %v2022, %v2021
        %v2029 = vpack.c.bf16 %v2024, %v2023
        %v2030 = vpack.c.bf16 %v2026, %v2025
        %s2031 = scalar_lea.vmem %s5, 10
        %v2032 = vld [vmem:[%s2031] sm:$0x3]
        %v2034 = vsel %vm307, %v2027, 0
        %v2037 = vsel %vm307, %v2028, 0
        %v2040 = vsel %vm307, %v2029, 0
        %v2043 = vsel %vm307, %v2030, 0
        %v2046 = vsel %vm320, %v2032, 0
        %2048 = vmatprep.subr.bf16.mxu0 0
        %2049 = vmatpush1.bf16.msra.mxu0 %v2046
        %2050 = vmatprep.subr.bf16.mxu0 0
        %2051 = vmatpush1.bf16.msra.mxu0 0
        %2052 = vmatprep.subr.bf16.mxu0 0
        %2053 = vmatpush1.bf16.msra.mxu0 0
        %2054 = vmatprep.subr.bf16.mxu0 0
        %2055 = vmatpush1.bf16.msra.mxu0 0
        %2056 = vmatprep.subr.bf16.mxu0 0
        %2057 = vmatpush1.bf16.msra.mxu0 0
        %2058 = vmatprep.subr.bf16.mxu0 0
        %2059 = vmatpush1.bf16.msra.mxu0 0
        %2060 = vmatprep.subr.bf16.mxu0 0
        %2061 = vmatpush1.bf16.msra.mxu0 0
        %2062 = vmatprep.subr.bf16.mxu0 0
        %2063 = vmatpush1.bf16.msra.mxu0 0
        %2064 = vmatprep.subr.bf16.mxu0 0
        %2065 = vmatpush1.bf16.msra.mxu0 0
        %2066 = vmatprep.subr.bf16.mxu0 0
        %2067 = vmatpush1.bf16.msra.mxu0 0
        %2068 = vmatprep.subr.bf16.mxu0 0
        %2069 = vmatpush1.bf16.msra.mxu0 0
        %2070 = vmatprep.subr.bf16.mxu0 0
        %2071 = vmatpush1.bf16.msra.mxu0 0
        %2072 = vmatprep.subr.bf16.mxu0 0
        %2073 = vmatpush1.bf16.msra.mxu0 0
        %2074 = vmatprep.subr.bf16.mxu0 0
        %2075 = vmatpush1.bf16.msra.mxu0 0
        %2076 = vmatprep.subr.bf16.mxu0 0
        %2077 = vmatpush1.bf16.msra.mxu0 0
        %2078 = vmatprep.subr.bf16.mxu0 0
        %2079 = vmatpush1.bf16.msra.mxu0 0
        %2080 = vmatprep.mubr.bf16.mxu0 0
        %2081 = vmatmul.mubr.bf16.gmra.mrb[0].mxu0 %v2034
        %v2082 = vpop.f32.mrb[0].mxu0
        %v2083 = vadd.f32 0.0, %v2082
        %v2084 = vpop.f32.mrb[0].mxu0
        %v2085 = vpop.f32.mrb[0].mxu0
        %v2086 = vadd.f32 0.0, %v2085
        %v2087 = vpop.f32.mrb[0].mxu0
        %2088 = vmatprep.mubr.bf16.mxu0 0
        %2089 = vmatmul.mubr.bf16.gmra.mrb[0].mxu0 %v2037
        %v2090 = vpop.f32.mrb[0].mxu0
        %v2091 = vadd.f32 0.0, %v2090
        %v2092 = vpop.f32.mrb[0].mxu0
        %v2093 = vpop.f32.mrb[0].mxu0
        %v2094 = vadd.f32 0.0, %v2093
        %v2095 = vpop.f32.mrb[0].mxu0
        %2096 = vmatprep.mubr.bf16.mxu0 0
        %2097 = vmatmul.mubr.bf16.gmra.mrb[0].mxu0 %v2040
        %v2098 = vpop.f32.mrb[0].mxu0
        %v2099 = vadd.f32 0.0, %v2098
        %v2100 = vpop.f32.mrb[0].mxu0
        %v2101 = vpop.f32.mrb[0].mxu0
        %v2102 = vadd.f32 0.0, %v2101
        %v2103 = vpop.f32.mrb[0].mxu0
        %2104 = vmatprep.mubr.bf16.mxu0 0
        %2105 = vmatmul.mubr.bf16.gmra.mrb[0].mxu0 %v2043
        %v2106 = vpop.f32.mrb[0].mxu0
        %v2107 = vadd.f32 0.0, %v2106
        %v2108 = vpop.f32.mrb[0].mxu0
        %v2109 = vpop.f32.mrb[0].mxu0
        %v2110 = vadd.f32 0.0, %v2109
        %v2111 = vpop.f32.mrb[0].mxu0
        %2112 = vdwg.mxu0
        %v2113 = vadd.f32 %v2011, %v2083
        %v2114 = vadd.f32 %v2012, %v2086
        %v2115 = vadd.f32 %v2013, %v2091
        %v2116 = vadd.f32 %v2014, %v2094
        %v2117 = vadd.f32 %v2015, %v2099
        %v2118 = vadd.f32 %v2016, %v2102
        %v2119 = vadd.f32 %v2017, %v2107
        %v2120 = vadd.f32 %v2018, %v2110
        %2121 = vst [vmem:[#allocation3] sm:$0xff] %v2113
        %2122 = vst [vmem:[#allocation3 + $0x8] sm:$0xff] %v2114
        %2123 = vst [vmem:[#allocation3 + $0x10] sm:$0xff] %v2115
        %2124 = vst [vmem:[#allocation3 + $0x18] sm:$0xff] %v2116
        %2125 = vst [vmem:[#allocation3 + $0x20] sm:$0xff] %v2117
        %2126 = vst [vmem:[#allocation3 + $0x28] sm:$0xff] %v2118
        %2127 = vst [vmem:[#allocation3 + $0x30] sm:$0xff] %v2119
        %2128 = vst [vmem:[#allocation3 + $0x38] sm:$0xff] %v2120
        %v2129 = vld [vmem:[#allocation3] sm:$0xff]
        %v2130 = vld [vmem:[#allocation3 + $0x8] sm:$0xff]
        %v2131 = vld [vmem:[#allocation3 + $0x10] sm:$0xff]
        %v2132 = vld [vmem:[#allocation3 + $0x18] sm:$0xff]
        %v2133 = vld [vmem:[#allocation3 + $0x20] sm:$0xff]
        %v2134 = vld [vmem:[#allocation3 + $0x28] sm:$0xff]
        %v2135 = vld [vmem:[#allocation3 + $0x30] sm:$0xff]
        %v2136 = vld [vmem:[#allocation3 + $0x38] sm:$0xff]
        %v2137 = vld [vmem:[%s1006] sm:$0xff]
        %v2138 = vld [vmem:[%s1006 + $0x10] sm:$0xff]
        %v2139 = vld [vmem:[%s1006 + $0x20] sm:$0xff]
        %v2140 = vld [vmem:[%s1006 + $0x30] sm:$0xff]
        %v2141 = vld [vmem:[%s1006 + $0x40] sm:$0xff]
        %v2142 = vld [vmem:[%s1006 + $0x50] sm:$0xff]
        %v2143 = vld [vmem:[%s1006 + $0x60] sm:$0xff]
        %v2144 = vld [vmem:[%s1006 + $0x70] sm:$0xff]
        %v2145 = vpack.c.bf16 %v2138, %v2137
        %v2146 = vpack.c.bf16 %v2140, %v2139
        %v2147 = vpack.c.bf16 %v2142, %v2141
        %v2148 = vpack.c.bf16 %v2144, %v2143
        %s2149 = scalar_lea.vmem %s5, 12
        %v2150 = vld [vmem:[%s2149] sm:$0x3]
        %v2152 = vsel %vm307, %v2145, 0
        %v2155 = vsel %vm307, %v2146, 0
        %v2158 = vsel %vm307, %v2147, 0
        %v2161 = vsel %vm307, %v2148, 0
        %v2164 = vsel %vm320, %v2150, 0
        %2166 = vmatprep.subr.bf16.mxu0 0
        %2167 = vmatpush1.bf16.msra.mxu0 %v2164
        %2168 = vmatprep.subr.bf16.mxu0 0
        %2169 = vmatpush1.bf16.msra.mxu0 0
        %2170 = vmatprep.subr.bf16.mxu0 0
        %2171 = vmatpush1.bf16.msra.mxu0 0
        %2172 = vmatprep.subr.bf16.mxu0 0
        %2173 = vmatpush1.bf16.msra.mxu0 0
        %2174 = vmatprep.subr.bf16.mxu0 0
        %2175 = vmatpush1.bf16.msra.mxu0 0
        %2176 = vmatprep.subr.bf16.mxu0 0
        %2177 = vmatpush1.bf16.msra.mxu0 0
        %2178 = vmatprep.subr.bf16.mxu0 0
        %2179 = vmatpush1.bf16.msra.mxu0 0
        %2180 = vmatprep.subr.bf16.mxu0 0
        %2181 = vmatpush1.bf16.msra.mxu0 0
        %2182 = vmatprep.subr.bf16.mxu0 0
        %2183 = vmatpush1.bf16.msra.mxu0 0
        %2184 = vmatprep.subr.bf16.mxu0 0
        %2185 = vmatpush1.bf16.msra.mxu0 0
        %2186 = vmatprep.subr.bf16.mxu0 0
        %2187 = vmatpush1.bf16.msra.mxu0 0
        %2188 = vmatprep.subr.bf16.mxu0 0
        %2189 = vmatpush1.bf16.msra.mxu0 0
        %2190 = vmatprep.subr.bf16.mxu0 0
        %2191 = vmatpush1.bf16.msra.mxu0 0
        %2192 = vmatprep.subr.bf16.mxu0 0
        %2193 = vmatpush1.bf16.msra.mxu0 0
        %2194 = vmatprep.subr.bf16.mxu0 0
        %2195 = vmatpush1.bf16.msra.mxu0 0
        %2196 = vmatprep.subr.bf16.mxu0 0
        %2197 = vmatpush1.bf16.msra.mxu0 0
        %2198 = vmatprep.mubr.bf16.mxu0 0
        %2199 = vmatmul.mubr.bf16.gmra.mrb[0].mxu0 %v2152
        %v2200 = vpop.f32.mrb[0].mxu0
        %v2201 = vadd.f32 0.0, %v2200
        %v2202 = vpop.f32.mrb[0].mxu0
        %v2203 = vpop.f32.mrb[0].mxu0
        %v2204 = vadd.f32 0.0, %v2203
        %v2205 = vpop.f32.mrb[0].mxu0
        %2206 = vmatprep.mubr.bf16.mxu0 0
        %2207 = vmatmul.mubr.bf16.gmra.mrb[0].mxu0 %v2155
        %v2208 = vpop.f32.mrb[0].mxu0
        %v2209 = vadd.f32 0.0, %v2208
        %v2210 = vpop.f32.mrb[0].mxu0
        %v2211 = vpop.f32.mrb[0].mxu0
        %v2212 = vadd.f32 0.0, %v2211
        %v2213 = vpop.f32.mrb[0].mxu0
        %2214 = vmatprep.mubr.bf16.mxu0 0
        %2215 = vmatmul.mubr.bf16.gmra.mrb[0].mxu0 %v2158
        %v2216 = vpop.f32.mrb[0].mxu0
        %v2217 = vadd.f32 0.0, %v2216
        %v2218 = vpop.f32.mrb[0].mxu0
        %v2219 = vpop.f32.mrb[0].mxu0
        %v2220 = vadd.f32 0.0, %v2219
        %v2221 = vpop.f32.mrb[0].mxu0
        %2222 = vmatprep.mubr.bf16.mxu0 0
        %2223 = vmatmul.mubr.bf16.gmra.mrb[0].mxu0 %v2161
        %v2224 = vpop.f32.mrb[0].mxu0
        %v2225 = vadd.f32 0.0, %v2224
        %v2226 = vpop.f32.mrb[0].mxu0
        %v2227 = vpop.f32.mrb[0].mxu0
        %v2228 = vadd.f32 0.0, %v2227
        %v2229 = vpop.f32.mrb[0].mxu0
        %2230 = vdwg.mxu0
        %v2231 = vadd.f32 %v2129, %v2201
        %v2232 = vadd.f32 %v2130, %v2204
        %v2233 = vadd.f32 %v2131, %v2209
        %v2234 = vadd.f32 %v2132, %v2212
        %v2235 = vadd.f32 %v2133, %v2217
        %v2236 = vadd.f32 %v2134, %v2220
        %v2237 = vadd.f32 %v2135, %v2225
        %v2238 = vadd.f32 %v2136, %v2228
        %2239 = vst [vmem:[#allocation3] sm:$0xff] %v2231
        %2240 = vst [vmem:[#allocation3 + $0x8] sm:$0xff] %v2232
        %2241 = vst [vmem:[#allocation3 + $0x10] sm:$0xff] %v2233
        %2242 = vst [vmem:[#allocation3 + $0x18] sm:$0xff] %v2234
        %2243 = vst [vmem:[#allocation3 + $0x20] sm:$0xff] %v2235
        %2244 = vst [vmem:[#allocation3 + $0x28] sm:$0xff] %v2236
        %2245 = vst [vmem:[#allocation3 + $0x30] sm:$0xff] %v2237
        %2246 = vst [vmem:[#allocation3 + $0x38] sm:$0xff] %v2238
        %v2247 = vld [vmem:[#allocation3] sm:$0xff]
        %v2248 = vld [vmem:[#allocation3 + $0x8] sm:$0xff]
        %v2249 = vld [vmem:[#allocation3 + $0x10] sm:$0xff]
        %v2250 = vld [vmem:[#allocation3 + $0x18] sm:$0xff]
        %v2251 = vld [vmem:[#allocation3 + $0x20] sm:$0xff]
        %v2252 = vld [vmem:[#allocation3 + $0x28] sm:$0xff]
        %v2253 = vld [vmem:[#allocation3 + $0x30] sm:$0xff]
        %v2254 = vld [vmem:[#allocation3 + $0x38] sm:$0xff]
        %v2255 = vld [vmem:[%s1125] sm:$0xff]
        %v2256 = vld [vmem:[%s1125 + $0x10] sm:$0xff]
        %v2257 = vld [vmem:[%s1125 + $0x20] sm:$0xff]
        %v2258 = vld [vmem:[%s1125 + $0x30] sm:$0xff]
        %v2259 = vld [vmem:[%s1125 + $0x40] sm:$0xff]
        %v2260 = vld [vmem:[%s1125 + $0x50] sm:$0xff]
        %v2261 = vld [vmem:[%s1125 + $0x60] sm:$0xff]
        %v2262 = vld [vmem:[%s1125 + $0x70] sm:$0xff]
        %v2263 = vpack.c.bf16 %v2256, %v2255
        %v2264 = vpack.c.bf16 %v2258, %v2257
        %v2265 = vpack.c.bf16 %v2260, %v2259
        %v2266 = vpack.c.bf16 %v2262, %v2261
        %s2267 = scalar_lea.vmem %s5, 14
        %v2268 = vld [vmem:[%s2267] sm:$0x3]
        %v2270 = vsel %vm307, %v2263, 0
        %v2273 = vsel %vm307, %v2264, 0
        %v2276 = vsel %vm307, %v2265, 0
        %v2279 = vsel %vm307, %v2266, 0
        %v2282 = vsel %vm320, %v2268, 0
        %2284 = vmatprep.subr.bf16.mxu0 0
        %2285 = vmatpush1.bf16.msra.mxu0 %v2282
        %2286 = vmatprep.subr.bf16.mxu0 0
        %2287 = vmatpush1.bf16.msra.mxu0 0
        %2288 = vmatprep.subr.bf16.mxu0 0
        %2289 = vmatpush1.bf16.msra.mxu0 0
        %2290 = vmatprep.subr.bf16.mxu0 0
        %2291 = vmatpush1.bf16.msra.mxu0 0
        %2292 = vmatprep.subr.bf16.mxu0 0
        %2293 = vmatpush1.bf16.msra.mxu0 0
        %2294 = vmatprep.subr.bf16.mxu0 0
        %2295 = vmatpush1.bf16.msra.mxu0 0
        %2296 = vmatprep.subr.bf16.mxu0 0
        %2297 = vmatpush1.bf16.msra.mxu0 0
        %2298 = vmatprep.subr.bf16.mxu0 0
        %2299 = vmatpush1.bf16.msra.mxu0 0
        %2300 = vmatprep.subr.bf16.mxu0 0
        %2301 = vmatpush1.bf16.msra.mxu0 0
        %2302 = vmatprep.subr.bf16.mxu0 0
        %2303 = vmatpush1.bf16.msra.mxu0 0
        %2304 = vmatprep.subr.bf16.mxu0 0
        %2305 = vmatpush1.bf16.msra.mxu0 0
        %2306 = vmatprep.subr.bf16.mxu0 0
        %2307 = vmatpush1.bf16.msra.mxu0 0
        %2308 = vmatprep.subr.bf16.mxu0 0
        %2309 = vmatpush1.bf16.msra.mxu0 0
        %2310 = vmatprep.subr.bf16.mxu0 0
        %2311 = vmatpush1.bf16.msra.mxu0 0
        %2312 = vmatprep.subr.bf16.mxu0 0
        %2313 = vmatpush1.bf16.msra.mxu0 0
        %2314 = vmatprep.subr.bf16.mxu0 0
        %2315 = vmatpush1.bf16.msra.mxu0 0
        %2316 = vmatprep.mubr.bf16.mxu0 0
        %2317 = vmatmul.mubr.bf16.gmra.mrb[0].mxu0 %v2270
        %v2318 = vpop.f32.mrb[0].mxu0
        %v2319 = vadd.f32 0.0, %v2318
        %v2320 = vpop.f32.mrb[0].mxu0
        %v2321 = vpop.f32.mrb[0].mxu0
        %v2322 = vadd.f32 0.0, %v2321
        %v2323 = vpop.f32.mrb[0].mxu0
        %2324 = vmatprep.mubr.bf16.mxu0 0
        %2325 = vmatmul.mubr.bf16.gmra.mrb[0].mxu0 %v2273
        %v2326 = vpop.f32.mrb[0].mxu0
        %v2327 = vadd.f32 0.0, %v2326
        %v2328 = vpop.f32.mrb[0].mxu0
        %v2329 = vpop.f32.mrb[0].mxu0
        %v2330 = vadd.f32 0.0, %v2329
        %v2331 = vpop.f32.mrb[0].mxu0
        %2332 = vmatprep.mubr.bf16.mxu0 0
        %2333 = vmatmul.mubr.bf16.gmra.mrb[0].mxu0 %v2276
        %v2334 = vpop.f32.mrb[0].mxu0
        %v2335 = vadd.f32 0.0, %v2334
        %v2336 = vpop.f32.mrb[0].mxu0
        %v2337 = vpop.f32.mrb[0].mxu0
        %v2338 = vadd.f32 0.0, %v2337
        %v2339 = vpop.f32.mrb[0].mxu0
        %2340 = vmatprep.mubr.bf16.mxu0 0
        %2341 = vmatmul.mubr.bf16.gmra.mrb[0].mxu0 %v2279
        %v2342 = vpop.f32.mrb[0].mxu0
        %v2343 = vadd.f32 0.0, %v2342
        %v2344 = vpop.f32.mrb[0].mxu0
        %v2345 = vpop.f32.mrb[0].mxu0
        %v2346 = vadd.f32 0.0, %v2345
        %v2347 = vpop.f32.mrb[0].mxu0
        %2348 = vdwg.mxu0
        %v2349 = vadd.f32 %v2247, %v2319
        %v2350 = vadd.f32 %v2248, %v2322
        %v2351 = vadd.f32 %v2249, %v2327
        %v2352 = vadd.f32 %v2250, %v2330
        %v2353 = vadd.f32 %v2251, %v2335
        %v2354 = vadd.f32 %v2252, %v2338
        %v2355 = vadd.f32 %v2253, %v2343
        %v2356 = vadd.f32 %v2254, %v2346
        %2357 = vst [vmem:[#allocation3] sm:$0xff] %v2349
        %2358 = vst [vmem:[#allocation3 + $0x8] sm:$0xff] %v2350
        %2359 = vst [vmem:[#allocation3 + $0x10] sm:$0xff] %v2351
        %2360 = vst [vmem:[#allocation3 + $0x18] sm:$0xff] %v2352
        %2361 = vst [vmem:[#allocation3 + $0x20] sm:$0xff] %v2353
        %2362 = vst [vmem:[#allocation3 + $0x28] sm:$0xff] %v2354
        %2363 = vst [vmem:[#allocation3 + $0x30] sm:$0xff] %v2355
        %2364 = vst [vmem:[#allocation3 + $0x38] sm:$0xff] %v2356
        %v2365 = vld [vmem:[#allocation3] sm:$0xff]
        %v2366 = vld [vmem:[#allocation3 + $0x8] sm:$0xff]
        %v2367 = vld [vmem:[#allocation3 + $0x10] sm:$0xff]
        %v2368 = vld [vmem:[#allocation3 + $0x18] sm:$0xff]
        %v2369 = vld [vmem:[#allocation3 + $0x20] sm:$0xff]
        %v2370 = vld [vmem:[#allocation3 + $0x28] sm:$0xff]
        %v2371 = vld [vmem:[#allocation3 + $0x30] sm:$0xff]
        %v2372 = vld [vmem:[#allocation3 + $0x38] sm:$0xff]
        %v2373 = vld [vmem:[%s1006 + $0x1] sm:$0xff]
        %v2374 = vld [vmem:[%s1006 + $0x11] sm:$0xff]
        %v2375 = vld [vmem:[%s1006 + $0x21] sm:$0xff]
        %v2376 = vld [vmem:[%s1006 + $0x31] sm:$0xff]
        %v2377 = vld [vmem:[%s1006 + $0x41] sm:$0xff]
        %v2378 = vld [vmem:[%s1006 + $0x51] sm:$0xff]
        %v2379 = vld [vmem:[%s1006 + $0x61] sm:$0xff]
        %v2380 = vld [vmem:[%s1006 + $0x71] sm:$0xff]
        %v2381 = vpack.c.bf16 %v2374, %v2373
        %v2382 = vpack.c.bf16 %v2376, %v2375
        %v2383 = vpack.c.bf16 %v2378, %v2377
        %v2384 = vpack.c.bf16 %v2380, %v2379
        %s2385 = scalar_lea.vmem %s5, 16
        %v2386 = vld [vmem:[%s2385] sm:$0x3]
        %v2388 = vsel %vm307, %v2381, 0
        %v2391 = vsel %vm307, %v2382, 0
        %v2394 = vsel %vm307, %v2383, 0
        %v2397 = vsel %vm307, %v2384, 0
        %v2400 = vsel %vm320, %v2386, 0
        %2402 = vmatprep.subr.bf16.mxu0 0
        %2403 = vmatpush1.bf16.msra.mxu0 %v2400
        %2404 = vmatprep.subr.bf16.mxu0 0
        %2405 = vmatpush1.bf16.msra.mxu0 0
        %2406 = vmatprep.subr.bf16.mxu0 0
        %2407 = vmatpush1.bf16.msra.mxu0 0
        %2408 = vmatprep.subr.bf16.mxu0 0
        %2409 = vmatpush1.bf16.msra.mxu0 0
        %2410 = vmatprep.subr.bf16.mxu0 0
        %2411 = vmatpush1.bf16.msra.mxu0 0
        %2412 = vmatprep.subr.bf16.mxu0 0
        %2413 = vmatpush1.bf16.msra.mxu0 0
        %2414 = vmatprep.subr.bf16.mxu0 0
        %2415 = vmatpush1.bf16.msra.mxu0 0
        %2416 = vmatprep.subr.bf16.mxu0 0
        %2417 = vmatpush1.bf16.msra.mxu0 0
        %2418 = vmatprep.subr.bf16.mxu0 0
        %2419 = vmatpush1.bf16.msra.mxu0 0
        %2420 = vmatprep.subr.bf16.mxu0 0
        %2421 = vmatpush1.bf16.msra.mxu0 0
        %2422 = vmatprep.subr.bf16.mxu0 0
        %2423 = vmatpush1.bf16.msra.mxu0 0
        %2424 = vmatprep.subr.bf16.mxu0 0
        %2425 = vmatpush1.bf16.msra.mxu0 0
        %2426 = vmatprep.subr.bf16.mxu0 0
        %2427 = vmatpush1.bf16.msra.mxu0 0
        %2428 = vmatprep.subr.bf16.mxu0 0
        %2429 = vmatpush1.bf16.msra.mxu0 0
        %2430 = vmatprep.subr.bf16.mxu0 0
        %2431 = vmatpush1.bf16.msra.mxu0 0
        %2432 = vmatprep.subr.bf16.mxu0 0
        %2433 = vmatpush1.bf16.msra.mxu0 0
        %2434 = vmatprep.mubr.bf16.mxu0 0
        %2435 = vmatmul.mubr.bf16.gmra.mrb[0].mxu0 %v2388
        %v2436 = vpop.f32.mrb[0].mxu0
        %v2437 = vadd.f32 0.0, %v2436
        %v2438 = vpop.f32.mrb[0].mxu0
        %v2439 = vpop.f32.mrb[0].mxu0
        %v2440 = vadd.f32 0.0, %v2439
        %v2441 = vpop.f32.mrb[0].mxu0
        %2442 = vmatprep.mubr.bf16.mxu0 0
        %2443 = vmatmul.mubr.bf16.gmra.mrb[0].mxu0 %v2391
        %v2444 = vpop.f32.mrb[0].mxu0
        %v2445 = vadd.f32 0.0, %v2444
        %v2446 = vpop.f32.mrb[0].mxu0
        %v2447 = vpop.f32.mrb[0].mxu0
        %v2448 = vadd.f32 0.0, %v2447
        %v2449 = vpop.f32.mrb[0].mxu0
        %2450 = vmatprep.mubr.bf16.mxu0 0
        %2451 = vmatmul.mubr.bf16.gmra.mrb[0].mxu0 %v2394
        %v2452 = vpop.f32.mrb[0].mxu0
        %v2453 = vadd.f32 0.0, %v2452
        %v2454 = vpop.f32.mrb[0].mxu0
        %v2455 = vpop.f32.mrb[0].mxu0
        %v2456 = vadd.f32 0.0, %v2455
        %v2457 = vpop.f32.mrb[0].mxu0
        %2458 = vmatprep.mubr.bf16.mxu0 0
        %2459 = vmatmul.mubr.bf16.gmra.mrb[0].mxu0 %v2397
        %v2460 = vpop.f32.mrb[0].mxu0
        %v2461 = vadd.f32 0.0, %v2460
        %v2462 = vpop.f32.mrb[0].mxu0
        %v2463 = vpop.f32.mrb[0].mxu0
        %v2464 = vadd.f32 0.0, %v2463
        %v2465 = vpop.f32.mrb[0].mxu0
        %2466 = vdwg.mxu0
        %v2467 = vadd.f32 %v2365, %v2437
        %v2468 = vadd.f32 %v2366, %v2440
        %v2469 = vadd.f32 %v2367, %v2445
        %v2470 = vadd.f32 %v2368, %v2448
        %v2471 = vadd.f32 %v2369, %v2453
        %v2472 = vadd.f32 %v2370, %v2456
        %v2473 = vadd.f32 %v2371, %v2461
        %v2474 = vadd.f32 %v2372, %v2464
        %2475 = vst [vmem:[#allocation3] sm:$0xff] %v2467
        %2476 = vst [vmem:[#allocation3 + $0x8] sm:$0xff] %v2468
        %2477 = vst [vmem:[#allocation3 + $0x10] sm:$0xff] %v2469
        %2478 = vst [vmem:[#allocation3 + $0x18] sm:$0xff] %v2470
        %2479 = vst [vmem:[#allocation3 + $0x20] sm:$0xff] %v2471
        %2480 = vst [vmem:[#allocation3 + $0x28] sm:$0xff] %v2472
        %2481 = vst [vmem:[#allocation3 + $0x30] sm:$0xff] %v2473
        %2482 = vst [vmem:[#allocation3 + $0x38] sm:$0xff] %v2474
        %v2483 = vld [vmem:[#allocation3] sm:$0xff]
        %v2484 = vld [vmem:[#allocation3 + $0x8] sm:$0xff]
        %v2485 = vld [vmem:[#allocation3 + $0x10] sm:$0xff]
        %v2486 = vld [vmem:[#allocation3 + $0x18] sm:$0xff]
        %v2487 = vld [vmem:[#allocation3 + $0x20] sm:$0xff]
        %v2488 = vld [vmem:[#allocation3 + $0x28] sm:$0xff]
        %v2489 = vld [vmem:[#allocation3 + $0x30] sm:$0xff]
        %v2490 = vld [vmem:[#allocation3 + $0x38] sm:$0xff]
        %v2491 = vld [vmem:[%s6] sm:$0x1]
        %v2493 = vlaneseq
        %v2494 = vshrl.u32 %v2493, 7
        %v2495 = vsub.s32 0, %v2494
        %v2496 = vrot.slane %v2491, %v2495
        %v2498 = vadd.f32 %v2483, %v2496
        %v2499 = vadd.f32 %v2484, %v2496
        %v2500 = vadd.f32 %v2485, %v2496
        %v2501 = vadd.f32 %v2486, %v2496
        %v2502 = vadd.f32 %v2487, %v2496
        %v2503 = vadd.f32 %v2488, %v2496
        %v2504 = vadd.f32 %v2489, %v2496
        %v2505 = vadd.f32 %v2490, %v2496
        %2506 = vst [vmem:[#allocation3] sm:$0xff] %v2498
        %2507 = vst [vmem:[#allocation3 + $0x8] sm:$0xff] %v2499
        %2508 = vst [vmem:[#allocation3 + $0x10] sm:$0xff] %v2500
        %2509 = vst [vmem:[#allocation3 + $0x18] sm:$0xff] %v2501
        %2510 = vst [vmem:[#allocation3 + $0x20] sm:$0xff] %v2502
        %2511 = vst [vmem:[#allocation3 + $0x28] sm:$0xff] %v2503
        %2512 = vst [vmem:[#allocation3 + $0x30] sm:$0xff] %v2504
        %2513 = vst [vmem:[#allocation3 + $0x38] sm:$0xff] %v2505
        %v2514 = vld [vmem:[#allocation2] sm:$0xff]
        %v2515 = vld [vmem:[#allocation2 + $0x10] sm:$0xff]
        %v2516 = vld [vmem:[#allocation2 + $0x20] sm:$0xff]
        %v2517 = vld [vmem:[#allocation2 + $0x30] sm:$0xff]
        %v2518 = vld [vmem:[#allocation2 + $0x40] sm:$0xff]
        %v2519 = vld [vmem:[#allocation2 + $0x50] sm:$0xff]
        %v2520 = vld [vmem:[#allocation2 + $0x60] sm:$0xff]
        %v2521 = vld [vmem:[#allocation2 + $0x70] sm:$0xff]
        %v2522 = vld [vmem:[#allocation3] sm:$0xff]
        %v2523 = vld [vmem:[#allocation3 + $0x8] sm:$0xff]
        %v2524 = vld [vmem:[#allocation3 + $0x10] sm:$0xff]
        %v2525 = vld [vmem:[#allocation3 + $0x18] sm:$0xff]
        %v2526 = vld [vmem:[#allocation3 + $0x20] sm:$0xff]
        %v2527 = vld [vmem:[#allocation3 + $0x28] sm:$0xff]
        %v2528 = vld [vmem:[#allocation3 + $0x30] sm:$0xff]
        %v2529 = vld [vmem:[#allocation3 + $0x38] sm:$0xff]
        %v2530 = vpack.c.bf16 %v2515, %v2514
        %v2531 = vpack.c.bf16 %v2517, %v2516
        %v2532 = vpack.c.bf16 %v2519, %v2518
        %v2533 = vpack.c.bf16 %v2521, %v2520
        %v2534 = vld [vmem:[%s3] sm:$0xf]
        %v2535 = vld [vmem:[%s3 + $0x4] sm:$0xf]
        %v2536 = vld [vmem:[%s3 + $0x8] sm:$0xf]
        %v2537 = vld [vmem:[%s3 + $0xc] sm:$0xf]
        %v2538 = vld [vmem:[%s3 + $0x10] sm:$0xf]
        %v2539 = vld [vmem:[%s3 + $0x14] sm:$0xf]
        %v2540 = vld [vmem:[%s3 + $0x18] sm:$0xf]
        %v2541 = vld [vmem:[%s3 + $0x1c] sm:$0xf]
        %v2542 = vld [vmem:[%s3 + $0x20] sm:$0xf]
        %v2543 = vld [vmem:[%s3 + $0x24] sm:$0xf]
        %v2544 = vld [vmem:[%s3 + $0x28] sm:$0xf]
        %v2545 = vld [vmem:[%s3 + $0x2c] sm:$0xf]
        %v2546 = vld [vmem:[%s3 + $0x30] sm:$0xf]
        %v2547 = vld [vmem:[%s3 + $0x34] sm:$0xf]
        %v2548 = vld [vmem:[%s3 + $0x38] sm:$0xf]
        %v2549 = vld [vmem:[%s3 + $0x3c] sm:$0xf]
        %v2566 = vunpack.c.l.b16 %v2534
        %v2567 = vunpack.c.l.b16 %v2535
        %v2568 = vunpack.c.l.b16 %v2536
        %v2569 = vunpack.c.l.b16 %v2537
        %v2570 = vunpack.c.l.b16 %v2538
        %v2571 = vunpack.c.l.b16 %v2539
        %v2572 = vunpack.c.l.b16 %v2540
        %v2573 = vunpack.c.l.b16 %v2541
        %v2574 = vunpack.c.l.b16 %v2542
        %v2575 = vunpack.c.l.b16 %v2543
        %v2576 = vunpack.c.l.b16 %v2544
        %v2577 = vunpack.c.l.b16 %v2545
        %v2578 = vunpack.c.l.b16 %v2546
        %v2579 = vunpack.c.l.b16 %v2547
        %v2580 = vunpack.c.l.b16 %v2548
        %v2581 = vunpack.c.l.b16 %v2549
        %v2582 = vpack.c.b16 %v2567, %v2566
        %v2583 = vpack.c.b16 %v2569, %v2568
        %v2584 = vpack.c.b16 %v2571, %v2570
        %v2585 = vpack.c.b16 %v2573, %v2572
        %v2586 = vpack.c.b16 %v2575, %v2574
        %v2587 = vpack.c.b16 %v2577, %v2576
        %v2588 = vpack.c.b16 %v2579, %v2578
        %v2589 = vpack.c.b16 %v2581, %v2580
        %2598 = vmatprep.subr.bf16.mxu0 0
        %2599 = vmatpush1.bf16.msra.mxu0 %v2582
        %2600 = vmatprep.subr.bf16.mxu0 0
        %2601 = vmatpush1.bf16.msra.mxu0 %v2583
        %2602 = vmatprep.subr.bf16.mxu0 0
        %2603 = vmatpush1.bf16.msra.mxu0 %v2584
        %2604 = vmatprep.subr.bf16.mxu0 0
        %2605 = vmatpush1.bf16.msra.mxu0 %v2585
        %2606 = vmatprep.subr.bf16.mxu0 0
        %2607 = vmatpush1.bf16.msra.mxu0 %v2586
        %2608 = vmatprep.subr.bf16.mxu0 0
        %2609 = vmatpush1.bf16.msra.mxu0 %v2587
        %2610 = vmatprep.subr.bf16.mxu0 0
        %2611 = vmatpush1.bf16.msra.mxu0 %v2588
        %2612 = vmatprep.subr.bf16.mxu0 0
        %2613 = vmatpush1.bf16.msra.mxu0 %v2589
        %2614 = vmatprep.subr.bf16.mxu0 0
        %2615 = vmatpush1.bf16.msra.mxu0 0
        %2616 = vmatprep.subr.bf16.mxu0 0
        %2617 = vmatpush1.bf16.msra.mxu0 0
        %2618 = vmatprep.subr.bf16.mxu0 0
        %2619 = vmatpush1.bf16.msra.mxu0 0
        %2620 = vmatprep.subr.bf16.mxu0 0
        %2621 = vmatpush1.bf16.msra.mxu0 0
        %2622 = vmatprep.subr.bf16.mxu0 0
        %2623 = vmatpush1.bf16.msra.mxu0 0
        %2624 = vmatprep.subr.bf16.mxu0 0
        %2625 = vmatpush1.bf16.msra.mxu0 0
        %2626 = vmatprep.subr.bf16.mxu0 0
        %2627 = vmatpush1.bf16.msra.mxu0 0
        %2628 = vmatprep.subr.bf16.mxu0 0
        %2629 = vmatpush1.bf16.msra.mxu0 0
        %2630 = vmatprep.mubr.bf16.mxu0 0
        %2631 = vmatmul.mubr.bf16.gmra.mrb[0].mxu0 %v2530
        %v2632 = vpop.f32.mrb[0].mxu0
        %v2633 = vadd.f32 0.0, %v2632
        %v2634 = vpop.f32.mrb[0].mxu0
        %v2635 = vpop.f32.mrb[0].mxu0
        %v2636 = vadd.f32 0.0, %v2635
        %v2637 = vpop.f32.mrb[0].mxu0
        %2638 = vmatprep.mubr.bf16.mxu0 0
        %2639 = vmatmul.mubr.bf16.gmra.mrb[0].mxu0 %v2531
        %v2640 = vpop.f32.mrb[0].mxu0
        %v2641 = vadd.f32 0.0, %v2640
        %v2642 = vpop.f32.mrb[0].mxu0
        %v2643 = vpop.f32.mrb[0].mxu0
        %v2644 = vadd.f32 0.0, %v2643
        %v2645 = vpop.f32.mrb[0].mxu0
        %2646 = vmatprep.mubr.bf16.mxu0 0
        %2647 = vmatmul.mubr.bf16.gmra.mrb[0].mxu0 %v2532
        %v2648 = vpop.f32.mrb[0].mxu0
        %v2649 = vadd.f32 0.0, %v2648
        %v2650 = vpop.f32.mrb[0].mxu0
        %v2651 = vpop.f32.mrb[0].mxu0
        %v2652 = vadd.f32 0.0, %v2651
        %v2653 = vpop.f32.mrb[0].mxu0
        %2654 = vmatprep.mubr.bf16.mxu0 0
        %2655 = vmatmul.mubr.bf16.gmra.mrb[0].mxu0 %v2533
        %v2656 = vpop.f32.mrb[0].mxu0
        %v2657 = vadd.f32 0.0, %v2656
        %v2658 = vpop.f32.mrb[0].mxu0
        %v2659 = vpop.f32.mrb[0].mxu0
        %v2660 = vadd.f32 0.0, %v2659
        %v2661 = vpop.f32.mrb[0].mxu0
        %2662 = vdwg.mxu0
        %v2663 = vadd.f32 %v2522, %v2633
        %v2664 = vadd.f32 %v2523, %v2636
        %v2665 = vadd.f32 %v2524, %v2641
        %v2666 = vadd.f32 %v2525, %v2644
        %v2667 = vadd.f32 %v2526, %v2649
        %v2668 = vadd.f32 %v2527, %v2652
        %v2669 = vadd.f32 %v2528, %v2657
        %v2670 = vadd.f32 %v2529, %v2660
        %2671 = vst [vmem:[#allocation3] sm:$0xff] %v2663
        %2672 = vst [vmem:[#allocation3 + $0x8] sm:$0xff] %v2664
        %2673 = vst [vmem:[#allocation3 + $0x10] sm:$0xff] %v2665
        %2674 = vst [vmem:[#allocation3 + $0x18] sm:$0xff] %v2666
        %2675 = vst [vmem:[#allocation3 + $0x20] sm:$0xff] %v2667
        %2676 = vst [vmem:[#allocation3 + $0x28] sm:$0xff] %v2668
        %2677 = vst [vmem:[#allocation3 + $0x30] sm:$0xff] %v2669
        %2678 = vst [vmem:[#allocation3 + $0x38] sm:$0xff] %v2670
        %v2679 = vld [vmem:[#allocation2 + $0x1] sm:$0xff]
        %v2680 = vld [vmem:[#allocation2 + $0x11] sm:$0xff]
        %v2681 = vld [vmem:[#allocation2 + $0x21] sm:$0xff]
        %v2682 = vld [vmem:[#allocation2 + $0x31] sm:$0xff]
        %v2683 = vld [vmem:[#allocation2 + $0x41] sm:$0xff]
        %v2684 = vld [vmem:[#allocation2 + $0x51] sm:$0xff]
        %v2685 = vld [vmem:[#allocation2 + $0x61] sm:$0xff]
        %v2686 = vld [vmem:[#allocation2 + $0x71] sm:$0xff]
        %v2687 = vld [vmem:[#allocation3] sm:$0xff]
        %v2688 = vld [vmem:[#allocation3 + $0x8] sm:$0xff]
        %v2689 = vld [vmem:[#allocation3 + $0x10] sm:$0xff]
        %v2690 = vld [vmem:[#allocation3 + $0x18] sm:$0xff]
        %v2691 = vld [vmem:[#allocation3 + $0x20] sm:$0xff]
        %v2692 = vld [vmem:[#allocation3 + $0x28] sm:$0xff]
        %v2693 = vld [vmem:[#allocation3 + $0x30] sm:$0xff]
        %v2694 = vld [vmem:[#allocation3 + $0x38] sm:$0xff]
        %v2695 = vpack.c.bf16 %v2680, %v2679
        %v2696 = vpack.c.bf16 %v2682, %v2681
        %v2697 = vpack.c.bf16 %v2684, %v2683
        %v2698 = vpack.c.bf16 %v2686, %v2685
        %s2699 = scalar_lea.vmem %s3, 64
        %v2700 = vld [vmem:[%s2699] sm:$0xf]
        %v2701 = vld [vmem:[%s2699 + $0x4] sm:$0xf]
        %v2702 = vld [vmem:[%s2699 + $0x8] sm:$0xf]
        %v2703 = vld [vmem:[%s2699 + $0xc] sm:$0xf]
        %v2704 = vld [vmem:[%s2699 + $0x10] sm:$0xf]
        %v2705 = vld [vmem:[%s2699 + $0x14] sm:$0xf]
        %v2706 = vld [vmem:[%s2699 + $0x18] sm:$0xf]
        %v2707 = vld [vmem:[%s2699 + $0x1c] sm:$0xf]
        %v2708 = vld [vmem:[%s2699 + $0x20] sm:$0xf]
        %v2709 = vld [vmem:[%s2699 + $0x24] sm:$0xf]
        %v2710 = vld [vmem:[%s2699 + $0x28] sm:$0xf]
        %v2711 = vld [vmem:[%s2699 + $0x2c] sm:$0xf]
        %v2712 = vld [vmem:[%s2699 + $0x30] sm:$0xf]
        %v2713 = vld [vmem:[%s2699 + $0x34] sm:$0xf]
        %v2714 = vld [vmem:[%s2699 + $0x38] sm:$0xf]
        %v2715 = vld [vmem:[%s2699 + $0x3c] sm:$0xf]
        %v2732 = vunpack.c.l.b16 %v2700
        %v2733 = vunpack.c.l.b16 %v2701
        %v2734 = vunpack.c.l.b16 %v2702
        %v2735 = vunpack.c.l.b16 %v2703
        %v2736 = vunpack.c.l.b16 %v2704
        %v2737 = vunpack.c.l.b16 %v2705
        %v2738 = vunpack.c.l.b16 %v2706
        %v2739 = vunpack.c.l.b16 %v2707
        %v2740 = vunpack.c.l.b16 %v2708
        %v2741 = vunpack.c.l.b16 %v2709
        %v2742 = vunpack.c.l.b16 %v2710
        %v2743 = vunpack.c.l.b16 %v2711
        %v2744 = vunpack.c.l.b16 %v2712
        %v2745 = vunpack.c.l.b16 %v2713
        %v2746 = vunpack.c.l.b16 %v2714
        %v2747 = vunpack.c.l.b16 %v2715
        %v2748 = vpack.c.b16 %v2733, %v2732
        %v2749 = vpack.c.b16 %v2735, %v2734
        %v2750 = vpack.c.b16 %v2737, %v2736
        %v2751 = vpack.c.b16 %v2739, %v2738
        %v2752 = vpack.c.b16 %v2741, %v2740
        %v2753 = vpack.c.b16 %v2743, %v2742
        %v2754 = vpack.c.b16 %v2745, %v2744
        %v2755 = vpack.c.b16 %v2747, %v2746
        %2764 = vmatprep.subr.bf16.mxu0 0
        %2765 = vmatpush1.bf16.msra.mxu0 %v2748
        %2766 = vmatprep.subr.bf16.mxu0 0
        %2767 = vmatpush1.bf16.msra.mxu0 %v2749
        %2768 = vmatprep.subr.bf16.mxu0 0
        %2769 = vmatpush1.bf16.msra.mxu0 %v2750
        %2770 = vmatprep.subr.bf16.mxu0 0
        %2771 = vmatpush1.bf16.msra.mxu0 %v2751
        %2772 = vmatprep.subr.bf16.mxu0 0
        %2773 = vmatpush1.bf16.msra.mxu0 %v2752
        %2774 = vmatprep.subr.bf16.mxu0 0
        %2775 = vmatpush1.bf16.msra.mxu0 %v2753
        %2776 = vmatprep.subr.bf16.mxu0 0
        %2777 = vmatpush1.bf16.msra.mxu0 %v2754
        %2778 = vmatprep.subr.bf16.mxu0 0
        %2779 = vmatpush1.bf16.msra.mxu0 %v2755
        %2780 = vmatprep.subr.bf16.mxu0 0
        %2781 = vmatpush1.bf16.msra.mxu0 0
        %2782 = vmatprep.subr.bf16.mxu0 0
        %2783 = vmatpush1.bf16.msra.mxu0 0
        %2784 = vmatprep.subr.bf16.mxu0 0
        %2785 = vmatpush1.bf16.msra.mxu0 0
        %2786 = vmatprep.subr.bf16.mxu0 0
        %2787 = vmatpush1.bf16.msra.mxu0 0
        %2788 = vmatprep.subr.bf16.mxu0 0
        %2789 = vmatpush1.bf16.msra.mxu0 0
        %2790 = vmatprep.subr.bf16.mxu0 0
        %2791 = vmatpush1.bf16.msra.mxu0 0
        %2792 = vmatprep.subr.bf16.mxu0 0
        %2793 = vmatpush1.bf16.msra.mxu0 0
        %2794 = vmatprep.subr.bf16.mxu0 0
        %2795 = vmatpush1.bf16.msra.mxu0 0
        %2796 = vmatprep.mubr.bf16.mxu0 0
        %2797 = vmatmul.mubr.bf16.gmra.mrb[0].mxu0 %v2695
        %v2798 = vpop.f32.mrb[0].mxu0
        %v2799 = vadd.f32 0.0, %v2798
        %v2800 = vpop.f32.mrb[0].mxu0
        %v2801 = vpop.f32.mrb[0].mxu0
        %v2802 = vadd.f32 0.0, %v2801
        %v2803 = vpop.f32.mrb[0].mxu0
        %2804 = vmatprep.mubr.bf16.mxu0 0
        %2805 = vmatmul.mubr.bf16.gmra.mrb[0].mxu0 %v2696
        %v2806 = vpop.f32.mrb[0].mxu0
        %v2807 = vadd.f32 0.0, %v2806
        %v2808 = vpop.f32.mrb[0].mxu0
        %v2809 = vpop.f32.mrb[0].mxu0
        %v2810 = vadd.f32 0.0, %v2809
        %v2811 = vpop.f32.mrb[0].mxu0
        %2812 = vmatprep.mubr.bf16.mxu0 0
        %2813 = vmatmul.mubr.bf16.gmra.mrb[0].mxu0 %v2697
        %v2814 = vpop.f32.mrb[0].mxu0
        %v2815 = vadd.f32 0.0, %v2814
        %v2816 = vpop.f32.mrb[0].mxu0
        %v2817 = vpop.f32.mrb[0].mxu0
        %v2818 = vadd.f32 0.0, %v2817
        %v2819 = vpop.f32.mrb[0].mxu0
        %2820 = vmatprep.mubr.bf16.mxu0 0
        %2821 = vmatmul.mubr.bf16.gmra.mrb[0].mxu0 %v2698
        %v2822 = vpop.f32.mrb[0].mxu0
        %v2823 = vadd.f32 0.0, %v2822
        %v2824 = vpop.f32.mrb[0].mxu0
        %v2825 = vpop.f32.mrb[0].mxu0
        %v2826 = vadd.f32 0.0, %v2825
        %v2827 = vpop.f32.mrb[0].mxu0
        %2828 = vdwg.mxu0
        %v2829 = vadd.f32 %v2687, %v2799
        %v2830 = vadd.f32 %v2688, %v2802
        %v2831 = vadd.f32 %v2689, %v2807
        %v2832 = vadd.f32 %v2690, %v2810
        %v2833 = vadd.f32 %v2691, %v2815
        %v2834 = vadd.f32 %v2692, %v2818
        %v2835 = vadd.f32 %v2693, %v2823
        %v2836 = vadd.f32 %v2694, %v2826
        %2837 = vst [vmem:[#allocation3] sm:$0xff] %v2829
        %2838 = vst [vmem:[#allocation3 + $0x8] sm:$0xff] %v2830
        %2839 = vst [vmem:[#allocation3 + $0x10] sm:$0xff] %v2831
        %2840 = vst [vmem:[#allocation3 + $0x18] sm:$0xff] %v2832
        %2841 = vst [vmem:[#allocation3 + $0x20] sm:$0xff] %v2833
        %2842 = vst [vmem:[#allocation3 + $0x28] sm:$0xff] %v2834
        %2843 = vst [vmem:[#allocation3 + $0x30] sm:$0xff] %v2835
        %2844 = vst [vmem:[#allocation3 + $0x38] sm:$0xff] %v2836
        %v2845 = vld [vmem:[#allocation2 + $0x2] sm:$0xff]
        %v2846 = vld [vmem:[#allocation2 + $0x12] sm:$0xff]
        %v2847 = vld [vmem:[#allocation2 + $0x22] sm:$0xff]
        %v2848 = vld [vmem:[#allocation2 + $0x32] sm:$0xff]
        %v2849 = vld [vmem:[#allocation2 + $0x42] sm:$0xff]
        %v2850 = vld [vmem:[#allocation2 + $0x52] sm:$0xff]
        %v2851 = vld [vmem:[#allocation2 + $0x62] sm:$0xff]
        %v2852 = vld [vmem:[#allocation2 + $0x72] sm:$0xff]
        %v2853 = vld [vmem:[#allocation3] sm:$0xff]
        %v2854 = vld [vmem:[#allocation3 + $0x8] sm:$0xff]
        %v2855 = vld [vmem:[#allocation3 + $0x10] sm:$0xff]
        %v2856 = vld [vmem:[#allocation3 + $0x18] sm:$0xff]
        %v2857 = vld [vmem:[#allocation3 + $0x20] sm:$0xff]
        %v2858 = vld [vmem:[#allocation3 + $0x28] sm:$0xff]
        %v2859 = vld [vmem:[#allocation3 + $0x30] sm:$0xff]
        %v2860 = vld [vmem:[#allocation3 + $0x38] sm:$0xff]
        %v2861 = vpack.c.bf16 %v2846, %v2845
        %v2862 = vpack.c.bf16 %v2848, %v2847
        %v2863 = vpack.c.bf16 %v2850, %v2849
        %v2864 = vpack.c.bf16 %v2852, %v2851
        %s2865 = scalar_lea.vmem %s3, 128
        %v2866 = vld [vmem:[%s2865] sm:$0xf]
        %v2867 = vld [vmem:[%s2865 + $0x4] sm:$0xf]
        %v2868 = vld [vmem:[%s2865 + $0x8] sm:$0xf]
        %v2869 = vld [vmem:[%s2865 + $0xc] sm:$0xf]
        %v2870 = vld [vmem:[%s2865 + $0x10] sm:$0xf]
        %v2871 = vld [vmem:[%s2865 + $0x14] sm:$0xf]
        %v2872 = vld [vmem:[%s2865 + $0x18] sm:$0xf]
        %v2873 = vld [vmem:[%s2865 + $0x1c] sm:$0xf]
        %v2874 = vld [vmem:[%s2865 + $0x20] sm:$0xf]
        %v2875 = vld [vmem:[%s2865 + $0x24] sm:$0xf]
        %v2876 = vld [vmem:[%s2865 + $0x28] sm:$0xf]
        %v2877 = vld [vmem:[%s2865 + $0x2c] sm:$0xf]
        %v2878 = vld [vmem:[%s2865 + $0x30] sm:$0xf]
        %v2879 = vld [vmem:[%s2865 + $0x34] sm:$0xf]
        %v2880 = vld [vmem:[%s2865 + $0x38] sm:$0xf]
        %v2881 = vld [vmem:[%s2865 + $0x3c] sm:$0xf]
        %v2898 = vunpack.c.l.b16 %v2866
        %v2899 = vunpack.c.l.b16 %v2867
        %v2900 = vunpack.c.l.b16 %v2868
        %v2901 = vunpack.c.l.b16 %v2869
        %v2902 = vunpack.c.l.b16 %v2870
        %v2903 = vunpack.c.l.b16 %v2871
        %v2904 = vunpack.c.l.b16 %v2872
        %v2905 = vunpack.c.l.b16 %v2873
        %v2906 = vunpack.c.l.b16 %v2874
        %v2907 = vunpack.c.l.b16 %v2875
        %v2908 = vunpack.c.l.b16 %v2876
        %v2909 = vunpack.c.l.b16 %v2877
        %v2910 = vunpack.c.l.b16 %v2878
        %v2911 = vunpack.c.l.b16 %v2879
        %v2912 = vunpack.c.l.b16 %v2880
        %v2913 = vunpack.c.l.b16 %v2881
        %v2914 = vpack.c.b16 %v2899, %v2898
        %v2915 = vpack.c.b16 %v2901, %v2900
        %v2916 = vpack.c.b16 %v2903, %v2902
        %v2917 = vpack.c.b16 %v2905, %v2904
        %v2918 = vpack.c.b16 %v2907, %v2906
        %v2919 = vpack.c.b16 %v2909, %v2908
        %v2920 = vpack.c.b16 %v2911, %v2910
        %v2921 = vpack.c.b16 %v2913, %v2912
        %2930 = vmatprep.subr.bf16.mxu0 0
        %2931 = vmatpush1.bf16.msra.mxu0 %v2914
        %2932 = vmatprep.subr.bf16.mxu0 0
        %2933 = vmatpush1.bf16.msra.mxu0 %v2915
        %2934 = vmatprep.subr.bf16.mxu0 0
        %2935 = vmatpush1.bf16.msra.mxu0 %v2916
        %2936 = vmatprep.subr.bf16.mxu0 0
        %2937 = vmatpush1.bf16.msra.mxu0 %v2917
        %2938 = vmatprep.subr.bf16.mxu0 0
        %2939 = vmatpush1.bf16.msra.mxu0 %v2918
        %2940 = vmatprep.subr.bf16.mxu0 0
        %2941 = vmatpush1.bf16.msra.mxu0 %v2919
        %2942 = vmatprep.subr.bf16.mxu0 0
        %2943 = vmatpush1.bf16.msra.mxu0 %v2920
        %2944 = vmatprep.subr.bf16.mxu0 0
        %2945 = vmatpush1.bf16.msra.mxu0 %v2921
        %2946 = vmatprep.subr.bf16.mxu0 0
        %2947 = vmatpush1.bf16.msra.mxu0 0
        %2948 = vmatprep.subr.bf16.mxu0 0
        %2949 = vmatpush1.bf16.msra.mxu0 0
        %2950 = vmatprep.subr.bf16.mxu0 0
        %2951 = vmatpush1.bf16.msra.mxu0 0
        %2952 = vmatprep.subr.bf16.mxu0 0
        %2953 = vmatpush1.bf16.msra.mxu0 0
        %2954 = vmatprep.subr.bf16.mxu0 0
        %2955 = vmatpush1.bf16.msra.mxu0 0
        %2956 = vmatprep.subr.bf16.mxu0 0
        %2957 = vmatpush1.bf16.msra.mxu0 0
        %2958 = vmatprep.subr.bf16.mxu0 0
        %2959 = vmatpush1.bf16.msra.mxu0 0
        %2960 = vmatprep.subr.bf16.mxu0 0
        %2961 = vmatpush1.bf16.msra.mxu0 0
        %2962 = vmatprep.mubr.bf16.mxu0 0
        %2963 = vmatmul.mubr.bf16.gmra.mrb[0].mxu0 %v2861
        %v2964 = vpop.f32.mrb[0].mxu0
        %v2965 = vadd.f32 0.0, %v2964
        %v2966 = vpop.f32.mrb[0].mxu0
        %v2967 = vpop.f32.mrb[0].mxu0
        %v2968 = vadd.f32 0.0, %v2967
        %v2969 = vpop.f32.mrb[0].mxu0
        %2970 = vmatprep.mubr.bf16.mxu0 0
        %2971 = vmatmul.mubr.bf16.gmra.mrb[0].mxu0 %v2862
        %v2972 = vpop.f32.mrb[0].mxu0
        %v2973 = vadd.f32 0.0, %v2972
        %v2974 = vpop.f32.mrb[0].mxu0
        %v2975 = vpop.f32.mrb[0].mxu0
        %v2976 = vadd.f32 0.0, %v2975
        %v2977 = vpop.f32.mrb[0].mxu0
        %2978 = vmatprep.mubr.bf16.mxu0 0
        %2979 = vmatmul.mubr.bf16.gmra.mrb[0].mxu0 %v2863
        %v2980 = vpop.f32.mrb[0].mxu0
        %v2981 = vadd.f32 0.0, %v2980
        %v2982 = vpop.f32.mrb[0].mxu0
        %v2983 = vpop.f32.mrb[0].mxu0
        %v2984 = vadd.f32 0.0, %v2983
        %v2985 = vpop.f32.mrb[0].mxu0
        %2986 = vmatprep.mubr.bf16.mxu0 0
        %2987 = vmatmul.mubr.bf16.gmra.mrb[0].mxu0 %v2864
        %v2988 = vpop.f32.mrb[0].mxu0
        %v2989 = vadd.f32 0.0, %v2988
        %v2990 = vpop.f32.mrb[0].mxu0
        %v2991 = vpop.f32.mrb[0].mxu0
        %v2992 = vadd.f32 0.0, %v2991
        %v2993 = vpop.f32.mrb[0].mxu0
        %2994 = vdwg.mxu0
        %v2995 = vadd.f32 %v2853, %v2965
        %v2996 = vadd.f32 %v2854, %v2968
        %v2997 = vadd.f32 %v2855, %v2973
        %v2998 = vadd.f32 %v2856, %v2976
        %v2999 = vadd.f32 %v2857, %v2981
        %v3000 = vadd.f32 %v2858, %v2984
        %v3001 = vadd.f32 %v2859, %v2989
        %v3002 = vadd.f32 %v2860, %v2992
        %3003 = vst [vmem:[#allocation3] sm:$0xff] %v2995
        %3004 = vst [vmem:[#allocation3 + $0x8] sm:$0xff] %v2996
        %3005 = vst [vmem:[#allocation3 + $0x10] sm:$0xff] %v2997
        %3006 = vst [vmem:[#allocation3 + $0x18] sm:$0xff] %v2998
        %3007 = vst [vmem:[#allocation3 + $0x20] sm:$0xff] %v2999
        %3008 = vst [vmem:[#allocation3 + $0x28] sm:$0xff] %v3000
        %3009 = vst [vmem:[#allocation3 + $0x30] sm:$0xff] %v3001
        %3010 = vst [vmem:[#allocation3 + $0x38] sm:$0xff] %v3002
        %v3011 = vld [vmem:[%s1405] sm:$0xff]
        %v3012 = vld [vmem:[%s1405 + $0x10] sm:$0xff]
        %v3013 = vld [vmem:[%s1405 + $0x20] sm:$0xff]
        %v3014 = vld [vmem:[%s1405 + $0x30] sm:$0xff]
        %v3015 = vld [vmem:[%s1405 + $0x40] sm:$0xff]
        %v3016 = vld [vmem:[%s1405 + $0x50] sm:$0xff]
        %v3017 = vld [vmem:[%s1405 + $0x60] sm:$0xff]
        %v3018 = vld [vmem:[%s1405 + $0x70] sm:$0xff]
        %v3019 = vld [vmem:[#allocation3] sm:$0xff]
        %v3020 = vld [vmem:[#allocation3 + $0x8] sm:$0xff]
        %v3021 = vld [vmem:[#allocation3 + $0x10] sm:$0xff]
        %v3022 = vld [vmem:[#allocation3 + $0x18] sm:$0xff]
        %v3023 = vld [vmem:[#allocation3 + $0x20] sm:$0xff]
        %v3024 = vld [vmem:[#allocation3 + $0x28] sm:$0xff]
        %v3025 = vld [vmem:[#allocation3 + $0x30] sm:$0xff]
        %v3026 = vld [vmem:[#allocation3 + $0x38] sm:$0xff]
        %v3027 = vpack.c.bf16 %v3012, %v3011
        %v3028 = vpack.c.bf16 %v3014, %v3013
        %v3029 = vpack.c.bf16 %v3016, %v3015
        %v3030 = vpack.c.bf16 %v3018, %v3017
        %s3031 = scalar_lea.vmem %s3, 192
        %v3032 = vld [vmem:[%s3031] sm:$0xf]
        %v3033 = vld [vmem:[%s3031 + $0x4] sm:$0xf]
        %v3034 = vld [vmem:[%s3031 + $0x8] sm:$0xf]
        %v3035 = vld [vmem:[%s3031 + $0xc] sm:$0xf]
        %v3036 = vld [vmem:[%s3031 + $0x10] sm:$0xf]
        %v3037 = vld [vmem:[%s3031 + $0x14] sm:$0xf]
        %v3038 = vld [vmem:[%s3031 + $0x18] sm:$0xf]
        %v3039 = vld [vmem:[%s3031 + $0x1c] sm:$0xf]
        %v3040 = vld [vmem:[%s3031 + $0x20] sm:$0xf]
        %v3041 = vld [vmem:[%s3031 + $0x24] sm:$0xf]
        %v3042 = vld [vmem:[%s3031 + $0x28] sm:$0xf]
        %v3043 = vld [vmem:[%s3031 + $0x2c] sm:$0xf]
        %v3044 = vld [vmem:[%s3031 + $0x30] sm:$0xf]
        %v3045 = vld [vmem:[%s3031 + $0x34] sm:$0xf]
        %v3046 = vld [vmem:[%s3031 + $0x38] sm:$0xf]
        %v3047 = vld [vmem:[%s3031 + $0x3c] sm:$0xf]
        %v3064 = vunpack.c.l.b16 %v3032
        %v3065 = vunpack.c.l.b16 %v3033
        %v3066 = vunpack.c.l.b16 %v3034
        %v3067 = vunpack.c.l.b16 %v3035
        %v3068 = vunpack.c.l.b16 %v3036
        %v3069 = vunpack.c.l.b16 %v3037
        %v3070 = vunpack.c.l.b16 %v3038
        %v3071 = vunpack.c.l.b16 %v3039
        %v3072 = vunpack.c.l.b16 %v3040
        %v3073 = vunpack.c.l.b16 %v3041
        %v3074 = vunpack.c.l.b16 %v3042
        %v3075 = vunpack.c.l.b16 %v3043
        %v3076 = vunpack.c.l.b16 %v3044
        %v3077 = vunpack.c.l.b16 %v3045
        %v3078 = vunpack.c.l.b16 %v3046
        %v3079 = vunpack.c.l.b16 %v3047
        %v3080 = vpack.c.b16 %v3065, %v3064
        %v3081 = vpack.c.b16 %v3067, %v3066
        %v3082 = vpack.c.b16 %v3069, %v3068
        %v3083 = vpack.c.b16 %v3071, %v3070
        %v3084 = vpack.c.b16 %v3073, %v3072
        %v3085 = vpack.c.b16 %v3075, %v3074
        %v3086 = vpack.c.b16 %v3077, %v3076
        %v3087 = vpack.c.b16 %v3079, %v3078
        %3096 = vmatprep.subr.bf16.mxu0 0
        %3097 = vmatpush1.bf16.msra.mxu0 %v3080
        %3098 = vmatprep.subr.bf16.mxu0 0
        %3099 = vmatpush1.bf16.msra.mxu0 %v3081
        %3100 = vmatprep.subr.bf16.mxu0 0
        %3101 = vmatpush1.bf16.msra.mxu0 %v3082
        %3102 = vmatprep.subr.bf16.mxu0 0
        %3103 = vmatpush1.bf16.msra.mxu0 %v3083
        %3104 = vmatprep.subr.bf16.mxu0 0
        %3105 = vmatpush1.bf16.msra.mxu0 %v3084
        %3106 = vmatprep.subr.bf16.mxu0 0
        %3107 = vmatpush1.bf16.msra.mxu0 %v3085
        %3108 = vmatprep.subr.bf16.mxu0 0
        %3109 = vmatpush1.bf16.msra.mxu0 %v3086
        %3110 = vmatprep.subr.bf16.mxu0 0
        %3111 = vmatpush1.bf16.msra.mxu0 %v3087
        %3112 = vmatprep.subr.bf16.mxu0 0
        %3113 = vmatpush1.bf16.msra.mxu0 0
        %3114 = vmatprep.subr.bf16.mxu0 0
        %3115 = vmatpush1.bf16.msra.mxu0 0
        %3116 = vmatprep.subr.bf16.mxu0 0
        %3117 = vmatpush1.bf16.msra.mxu0 0
        %3118 = vmatprep.subr.bf16.mxu0 0
        %3119 = vmatpush1.bf16.msra.mxu0 0
        %3120 = vmatprep.subr.bf16.mxu0 0
        %3121 = vmatpush1.bf16.msra.mxu0 0
        %3122 = vmatprep.subr.bf16.mxu0 0
        %3123 = vmatpush1.bf16.msra.mxu0 0
        %3124 = vmatprep.subr.bf16.mxu0 0
        %3125 = vmatpush1.bf16.msra.mxu0 0
        %3126 = vmatprep.subr.bf16.mxu0 0
        %3127 = vmatpush1.bf16.msra.mxu0 0
        %3128 = vmatprep.mubr.bf16.mxu0 0
        %3129 = vmatmul.mubr.bf16.gmra.mrb[0].mxu0 %v3027
        %v3130 = vpop.f32.mrb[0].mxu0
        %v3131 = vadd.f32 0.0, %v3130
        %v3132 = vpop.f32.mrb[0].mxu0
        %v3133 = vpop.f32.mrb[0].mxu0
        %v3134 = vadd.f32 0.0, %v3133
        %v3135 = vpop.f32.mrb[0].mxu0
        %3136 = vmatprep.mubr.bf16.mxu0 0
        %3137 = vmatmul.mubr.bf16.gmra.mrb[0].mxu0 %v3028
        %v3138 = vpop.f32.mrb[0].mxu0
        %v3139 = vadd.f32 0.0, %v3138
        %v3140 = vpop.f32.mrb[0].mxu0
        %v3141 = vpop.f32.mrb[0].mxu0
        %v3142 = vadd.f32 0.0, %v3141
        %v3143 = vpop.f32.mrb[0].mxu0
        %3144 = vmatprep.mubr.bf16.mxu0 0
        %3145 = vmatmul.mubr.bf16.gmra.mrb[0].mxu0 %v3029
        %v3146 = vpop.f32.mrb[0].mxu0
        %v3147 = vadd.f32 0.0, %v3146
        %v3148 = vpop.f32.mrb[0].mxu0
        %v3149 = vpop.f32.mrb[0].mxu0
        %v3150 = vadd.f32 0.0, %v3149
        %v3151 = vpop.f32.mrb[0].mxu0
        %3152 = vmatprep.mubr.bf16.mxu0 0
        %3153 = vmatmul.mubr.bf16.gmra.mrb[0].mxu0 %v3030
        %v3154 = vpop.f32.mrb[0].mxu0
        %v3155 = vadd.f32 0.0, %v3154
        %v3156 = vpop.f32.mrb[0].mxu0
        %v3157 = vpop.f32.mrb[0].mxu0
        %v3158 = vadd.f32 0.0, %v3157
        %v3159 = vpop.f32.mrb[0].mxu0
        %3160 = vdwg.mxu0
        %v3161 = vadd.f32 %v3019, %v3131
        %v3162 = vadd.f32 %v3020, %v3134
        %v3163 = vadd.f32 %v3021, %v3139
        %v3164 = vadd.f32 %v3022, %v3142
        %v3165 = vadd.f32 %v3023, %v3147
        %v3166 = vadd.f32 %v3024, %v3150
        %v3167 = vadd.f32 %v3025, %v3155
        %v3168 = vadd.f32 %v3026, %v3158
        %3169 = vst [vmem:[#allocation3] sm:$0xff] %v3161
        %3170 = vst [vmem:[#allocation3 + $0x8] sm:$0xff] %v3162
        %3171 = vst [vmem:[#allocation3 + $0x10] sm:$0xff] %v3163
        %3172 = vst [vmem:[#allocation3 + $0x18] sm:$0xff] %v3164
        %3173 = vst [vmem:[#allocation3 + $0x20] sm:$0xff] %v3165
        %3174 = vst [vmem:[#allocation3 + $0x28] sm:$0xff] %v3166
        %3175 = vst [vmem:[#allocation3 + $0x30] sm:$0xff] %v3167
        %3176 = vst [vmem:[#allocation3 + $0x38] sm:$0xff] %v3168
        %v3177 = vld [vmem:[%s1405 + $0x1] sm:$0xff]
        %v3178 = vld [vmem:[%s1405 + $0x11] sm:$0xff]
        %v3179 = vld [vmem:[%s1405 + $0x21] sm:$0xff]
        %v3180 = vld [vmem:[%s1405 + $0x31] sm:$0xff]
        %v3181 = vld [vmem:[%s1405 + $0x41] sm:$0xff]
        %v3182 = vld [vmem:[%s1405 + $0x51] sm:$0xff]
        %v3183 = vld [vmem:[%s1405 + $0x61] sm:$0xff]
        %v3184 = vld [vmem:[%s1405 + $0x71] sm:$0xff]
        %v3185 = vld [vmem:[#allocation3] sm:$0xff]
        %v3186 = vld [vmem:[#allocation3 + $0x8] sm:$0xff]
        %v3187 = vld [vmem:[#allocation3 + $0x10] sm:$0xff]
        %v3188 = vld [vmem:[#allocation3 + $0x18] sm:$0xff]
        %v3189 = vld [vmem:[#allocation3 + $0x20] sm:$0xff]
        %v3190 = vld [vmem:[#allocation3 + $0x28] sm:$0xff]
        %v3191 = vld [vmem:[#allocation3 + $0x30] sm:$0xff]
        %v3192 = vld [vmem:[#allocation3 + $0x38] sm:$0xff]
        %v3193 = vpack.c.bf16 %v3178, %v3177
        %v3194 = vpack.c.bf16 %v3180, %v3179
        %v3195 = vpack.c.bf16 %v3182, %v3181
        %v3196 = vpack.c.bf16 %v3184, %v3183
        %s3197 = scalar_lea.vmem %s3, 256
        %v3198 = vld [vmem:[%s3197] sm:$0xf]
        %v3199 = vld [vmem:[%s3197 + $0x4] sm:$0xf]
        %v3200 = vld [vmem:[%s3197 + $0x8] sm:$0xf]
        %v3201 = vld [vmem:[%s3197 + $0xc] sm:$0xf]
        %v3202 = vld [vmem:[%s3197 + $0x10] sm:$0xf]
        %v3203 = vld [vmem:[%s3197 + $0x14] sm:$0xf]
        %v3204 = vld [vmem:[%s3197 + $0x18] sm:$0xf]
        %v3205 = vld [vmem:[%s3197 + $0x1c] sm:$0xf]
        %v3206 = vld [vmem:[%s3197 + $0x20] sm:$0xf]
        %v3207 = vld [vmem:[%s3197 + $0x24] sm:$0xf]
        %v3208 = vld [vmem:[%s3197 + $0x28] sm:$0xf]
        %v3209 = vld [vmem:[%s3197 + $0x2c] sm:$0xf]
        %v3210 = vld [vmem:[%s3197 + $0x30] sm:$0xf]
        %v3211 = vld [vmem:[%s3197 + $0x34] sm:$0xf]
        %v3212 = vld [vmem:[%s3197 + $0x38] sm:$0xf]
        %v3213 = vld [vmem:[%s3197 + $0x3c] sm:$0xf]
        %v3230 = vunpack.c.l.b16 %v3198
        %v3231 = vunpack.c.l.b16 %v3199
        %v3232 = vunpack.c.l.b16 %v3200
        %v3233 = vunpack.c.l.b16 %v3201
        %v3234 = vunpack.c.l.b16 %v3202
        %v3235 = vunpack.c.l.b16 %v3203
        %v3236 = vunpack.c.l.b16 %v3204
        %v3237 = vunpack.c.l.b16 %v3205
        %v3238 = vunpack.c.l.b16 %v3206
        %v3239 = vunpack.c.l.b16 %v3207
        %v3240 = vunpack.c.l.b16 %v3208
        %v3241 = vunpack.c.l.b16 %v3209
        %v3242 = vunpack.c.l.b16 %v3210
        %v3243 = vunpack.c.l.b16 %v3211
        %v3244 = vunpack.c.l.b16 %v3212
        %v3245 = vunpack.c.l.b16 %v3213
        %v3246 = vpack.c.b16 %v3231, %v3230
        %v3247 = vpack.c.b16 %v3233, %v3232
        %v3248 = vpack.c.b16 %v3235, %v3234
        %v3249 = vpack.c.b16 %v3237, %v3236
        %v3250 = vpack.c.b16 %v3239, %v3238
        %v3251 = vpack.c.b16 %v3241, %v3240
        %v3252 = vpack.c.b16 %v3243, %v3242
        %v3253 = vpack.c.b16 %v3245, %v3244
        %3262 = vmatprep.subr.bf16.mxu0 0
        %3263 = vmatpush1.bf16.msra.mxu0 %v3246
        %3264 = vmatprep.subr.bf16.mxu0 0
        %3265 = vmatpush1.bf16.msra.mxu0 %v3247
        %3266 = vmatprep.subr.bf16.mxu0 0
        %3267 = vmatpush1.bf16.msra.mxu0 %v3248
        %3268 = vmatprep.subr.bf16.mxu0 0
        %3269 = vmatpush1.bf16.msra.mxu0 %v3249
        %3270 = vmatprep.subr.bf16.mxu0 0
        %3271 = vmatpush1.bf16.msra.mxu0 %v3250
        %3272 = vmatprep.subr.bf16.mxu0 0
        %3273 = vmatpush1.bf16.msra.mxu0 %v3251
        %3274 = vmatprep.subr.bf16.mxu0 0
        %3275 = vmatpush1.bf16.msra.mxu0 %v3252
        %3276 = vmatprep.subr.bf16.mxu0 0
        %3277 = vmatpush1.bf16.msra.mxu0 %v3253
        %3278 = vmatprep.subr.bf16.mxu0 0
        %3279 = vmatpush1.bf16.msra.mxu0 0
        %3280 = vmatprep.subr.bf16.mxu0 0
        %3281 = vmatpush1.bf16.msra.mxu0 0
        %3282 = vmatprep.subr.bf16.mxu0 0
        %3283 = vmatpush1.bf16.msra.mxu0 0
        %3284 = vmatprep.subr.bf16.mxu0 0
        %3285 = vmatpush1.bf16.msra.mxu0 0
        %3286 = vmatprep.subr.bf16.mxu0 0
        %3287 = vmatpush1.bf16.msra.mxu0 0
        %3288 = vmatprep.subr.bf16.mxu0 0
        %3289 = vmatpush1.bf16.msra.mxu0 0
        %3290 = vmatprep.subr.bf16.mxu0 0
        %3291 = vmatpush1.bf16.msra.mxu0 0
        %3292 = vmatprep.subr.bf16.mxu0 0
        %3293 = vmatpush1.bf16.msra.mxu0 0
        %3294 = vmatprep.mubr.bf16.mxu0 0
        %3295 = vmatmul.mubr.bf16.gmra.mrb[0].mxu0 %v3193
        %v3296 = vpop.f32.mrb[0].mxu0
        %v3297 = vadd.f32 0.0, %v3296
        %v3298 = vpop.f32.mrb[0].mxu0
        %v3299 = vpop.f32.mrb[0].mxu0
        %v3300 = vadd.f32 0.0, %v3299
        %v3301 = vpop.f32.mrb[0].mxu0
        %3302 = vmatprep.mubr.bf16.mxu0 0
        %3303 = vmatmul.mubr.bf16.gmra.mrb[0].mxu0 %v3194
        %v3304 = vpop.f32.mrb[0].mxu0
        %v3305 = vadd.f32 0.0, %v3304
        %v3306 = vpop.f32.mrb[0].mxu0
        %v3307 = vpop.f32.mrb[0].mxu0
        %v3308 = vadd.f32 0.0, %v3307
        %v3309 = vpop.f32.mrb[0].mxu0
        %3310 = vmatprep.mubr.bf16.mxu0 0
        %3311 = vmatmul.mubr.bf16.gmra.mrb[0].mxu0 %v3195
        %v3312 = vpop.f32.mrb[0].mxu0
        %v3313 = vadd.f32 0.0, %v3312
        %v3314 = vpop.f32.mrb[0].mxu0
        %v3315 = vpop.f32.mrb[0].mxu0
        %v3316 = vadd.f32 0.0, %v3315
        %v3317 = vpop.f32.mrb[0].mxu0
        %3318 = vmatprep.mubr.bf16.mxu0 0
        %3319 = vmatmul.mubr.bf16.gmra.mrb[0].mxu0 %v3196
        %v3320 = vpop.f32.mrb[0].mxu0
        %v3321 = vadd.f32 0.0, %v3320
        %v3322 = vpop.f32.mrb[0].mxu0
        %v3323 = vpop.f32.mrb[0].mxu0
        %v3324 = vadd.f32 0.0, %v3323
        %v3325 = vpop.f32.mrb[0].mxu0
        %3326 = vdwg.mxu0
        %v3327 = vadd.f32 %v3185, %v3297
        %v3328 = vadd.f32 %v3186, %v3300
        %v3329 = vadd.f32 %v3187, %v3305
        %v3330 = vadd.f32 %v3188, %v3308
        %v3331 = vadd.f32 %v3189, %v3313
        %v3332 = vadd.f32 %v3190, %v3316
        %v3333 = vadd.f32 %v3191, %v3321
        %v3334 = vadd.f32 %v3192, %v3324
        %3335 = vst [vmem:[#allocation3] sm:$0xff] %v3327
        %3336 = vst [vmem:[#allocation3 + $0x8] sm:$0xff] %v3328
        %3337 = vst [vmem:[#allocation3 + $0x10] sm:$0xff] %v3329
        %3338 = vst [vmem:[#allocation3 + $0x18] sm:$0xff] %v3330
        %3339 = vst [vmem:[#allocation3 + $0x20] sm:$0xff] %v3331
        %3340 = vst [vmem:[#allocation3 + $0x28] sm:$0xff] %v3332
        %3341 = vst [vmem:[#allocation3 + $0x30] sm:$0xff] %v3333
        %3342 = vst [vmem:[#allocation3 + $0x38] sm:$0xff] %v3334
        %v3343 = vld [vmem:[%s1405 + $0x2] sm:$0xff]
        %v3344 = vld [vmem:[%s1405 + $0x12] sm:$0xff]
        %v3345 = vld [vmem:[%s1405 + $0x22] sm:$0xff]
        %v3346 = vld [vmem:[%s1405 + $0x32] sm:$0xff]
        %v3347 = vld [vmem:[%s1405 + $0x42] sm:$0xff]
        %v3348 = vld [vmem:[%s1405 + $0x52] sm:$0xff]
        %v3349 = vld [vmem:[%s1405 + $0x62] sm:$0xff]
        %v3350 = vld [vmem:[%s1405 + $0x72] sm:$0xff]
        %v3351 = vld [vmem:[#allocation3] sm:$0xff]
        %v3352 = vld [vmem:[#allocation3 + $0x8] sm:$0xff]
        %v3353 = vld [vmem:[#allocation3 + $0x10] sm:$0xff]
        %v3354 = vld [vmem:[#allocation3 + $0x18] sm:$0xff]
        %v3355 = vld [vmem:[#allocation3 + $0x20] sm:$0xff]
        %v3356 = vld [vmem:[#allocation3 + $0x28] sm:$0xff]
        %v3357 = vld [vmem:[#allocation3 + $0x30] sm:$0xff]
        %v3358 = vld [vmem:[#allocation3 + $0x38] sm:$0xff]
        %v3359 = vpack.c.bf16 %v3344, %v3343
        %v3360 = vpack.c.bf16 %v3346, %v3345
        %v3361 = vpack.c.bf16 %v3348, %v3347
        %v3362 = vpack.c.bf16 %v3350, %v3349
        %s3363 = scalar_lea.vmem %s3, 320
        %v3364 = vld [vmem:[%s3363] sm:$0xf]
        %v3365 = vld [vmem:[%s3363 + $0x4] sm:$0xf]
        %v3366 = vld [vmem:[%s3363 + $0x8] sm:$0xf]
        %v3367 = vld [vmem:[%s3363 + $0xc] sm:$0xf]
        %v3368 = vld [vmem:[%s3363 + $0x10] sm:$0xf]
        %v3369 = vld [vmem:[%s3363 + $0x14] sm:$0xf]
        %v3370 = vld [vmem:[%s3363 + $0x18] sm:$0xf]
        %v3371 = vld [vmem:[%s3363 + $0x1c] sm:$0xf]
        %v3372 = vld [vmem:[%s3363 + $0x20] sm:$0xf]
        %v3373 = vld [vmem:[%s3363 + $0x24] sm:$0xf]
        %v3374 = vld [vmem:[%s3363 + $0x28] sm:$0xf]
        %v3375 = vld [vmem:[%s3363 + $0x2c] sm:$0xf]
        %v3376 = vld [vmem:[%s3363 + $0x30] sm:$0xf]
        %v3377 = vld [vmem:[%s3363 + $0x34] sm:$0xf]
        %v3378 = vld [vmem:[%s3363 + $0x38] sm:$0xf]
        %v3379 = vld [vmem:[%s3363 + $0x3c] sm:$0xf]
        %v3396 = vunpack.c.l.b16 %v3364
        %v3397 = vunpack.c.l.b16 %v3365
        %v3398 = vunpack.c.l.b16 %v3366
        %v3399 = vunpack.c.l.b16 %v3367
        %v3400 = vunpack.c.l.b16 %v3368
        %v3401 = vunpack.c.l.b16 %v3369
        %v3402 = vunpack.c.l.b16 %v3370
        %v3403 = vunpack.c.l.b16 %v3371
        %v3404 = vunpack.c.l.b16 %v3372
        %v3405 = vunpack.c.l.b16 %v3373
        %v3406 = vunpack.c.l.b16 %v3374
        %v3407 = vunpack.c.l.b16 %v3375
        %v3408 = vunpack.c.l.b16 %v3376
        %v3409 = vunpack.c.l.b16 %v3377
        %v3410 = vunpack.c.l.b16 %v3378
        %v3411 = vunpack.c.l.b16 %v3379
        %v3412 = vpack.c.b16 %v3397, %v3396
        %v3413 = vpack.c.b16 %v3399, %v3398
        %v3414 = vpack.c.b16 %v3401, %v3400
        %v3415 = vpack.c.b16 %v3403, %v3402
        %v3416 = vpack.c.b16 %v3405, %v3404
        %v3417 = vpack.c.b16 %v3407, %v3406
        %v3418 = vpack.c.b16 %v3409, %v3408
        %v3419 = vpack.c.b16 %v3411, %v3410
        %3428 = vmatprep.subr.bf16.mxu0 0
        %3429 = vmatpush1.bf16.msra.mxu0 %v3412
        %3430 = vmatprep.subr.bf16.mxu0 0
        %3431 = vmatpush1.bf16.msra.mxu0 %v3413
        %3432 = vmatprep.subr.bf16.mxu0 0
        %3433 = vmatpush1.bf16.msra.mxu0 %v3414
        %3434 = vmatprep.subr.bf16.mxu0 0
        %3435 = vmatpush1.bf16.msra.mxu0 %v3415
        %3436 = vmatprep.subr.bf16.mxu0 0
        %3437 = vmatpush1.bf16.msra.mxu0 %v3416
        %3438 = vmatprep.subr.bf16.mxu0 0
        %3439 = vmatpush1.bf16.msra.mxu0 %v3417
        %3440 = vmatprep.subr.bf16.mxu0 0
        %3441 = vmatpush1.bf16.msra.mxu0 %v3418
        %3442 = vmatprep.subr.bf16.mxu0 0
        %3443 = vmatpush1.bf16.msra.mxu0 %v3419
        %3444 = vmatprep.subr.bf16.mxu0 0
        %3445 = vmatpush1.bf16.msra.mxu0 0
        %3446 = vmatprep.subr.bf16.mxu0 0
        %3447 = vmatpush1.bf16.msra.mxu0 0
        %3448 = vmatprep.subr.bf16.mxu0 0
        %3449 = vmatpush1.bf16.msra.mxu0 0
        %3450 = vmatprep.subr.bf16.mxu0 0
        %3451 = vmatpush1.bf16.msra.mxu0 0
        %3452 = vmatprep.subr.bf16.mxu0 0
        %3453 = vmatpush1.bf16.msra.mxu0 0
        %3454 = vmatprep.subr.bf16.mxu0 0
        %3455 = vmatpush1.bf16.msra.mxu0 0
        %3456 = vmatprep.subr.bf16.mxu0 0
        %3457 = vmatpush1.bf16.msra.mxu0 0
        %3458 = vmatprep.subr.bf16.mxu0 0
        %3459 = vmatpush1.bf16.msra.mxu0 0
        %3460 = vmatprep.mubr.bf16.mxu0 0
        %3461 = vmatmul.mubr.bf16.gmra.mrb[0].mxu0 %v3359
        %v3462 = vpop.f32.mrb[0].mxu0
        %v3463 = vadd.f32 0.0, %v3462
        %v3464 = vpop.f32.mrb[0].mxu0
        %v3465 = vpop.f32.mrb[0].mxu0
        %v3466 = vadd.f32 0.0, %v3465
        %v3467 = vpop.f32.mrb[0].mxu0
        %3468 = vmatprep.mubr.bf16.mxu0 0
        %3469 = vmatmul.mubr.bf16.gmra.mrb[0].mxu0 %v3360
        %v3470 = vpop.f32.mrb[0].mxu0
        %v3471 = vadd.f32 0.0, %v3470
        %v3472 = vpop.f32.mrb[0].mxu0
        %v3473 = vpop.f32.mrb[0].mxu0
        %v3474 = vadd.f32 0.0, %v3473
        %v3475 = vpop.f32.mrb[0].mxu0
        %3476 = vmatprep.mubr.bf16.mxu0 0
        %3477 = vmatmul.mubr.bf16.gmra.mrb[0].mxu0 %v3361
        %v3478 = vpop.f32.mrb[0].mxu0
        %v3479 = vadd.f32 0.0, %v3478
        %v3480 = vpop.f32.mrb[0].mxu0
        %v3481 = vpop.f32.mrb[0].mxu0
        %v3482 = vadd.f32 0.0, %v3481
        %v3483 = vpop.f32.mrb[0].mxu0
        %3484 = vmatprep.mubr.bf16.mxu0 0
        %3485 = vmatmul.mubr.bf16.gmra.mrb[0].mxu0 %v3362
        %v3486 = vpop.f32.mrb[0].mxu0
        %v3487 = vadd.f32 0.0, %v3486
        %v3488 = vpop.f32.mrb[0].mxu0
        %v3489 = vpop.f32.mrb[0].mxu0
        %v3490 = vadd.f32 0.0, %v3489
        %v3491 = vpop.f32.mrb[0].mxu0
        %3492 = vdwg.mxu0
        %v3493 = vadd.f32 %v3351, %v3463
        %v3494 = vadd.f32 %v3352, %v3466
        %v3495 = vadd.f32 %v3353, %v3471
        %v3496 = vadd.f32 %v3354, %v3474
        %v3497 = vadd.f32 %v3355, %v3479
        %v3498 = vadd.f32 %v3356, %v3482
        %v3499 = vadd.f32 %v3357, %v3487
        %v3500 = vadd.f32 %v3358, %v3490
        %3501 = vst [vmem:[#allocation3] sm:$0xff] %v3493
        %3502 = vst [vmem:[#allocation3 + $0x8] sm:$0xff] %v3494
        %3503 = vst [vmem:[#allocation3 + $0x10] sm:$0xff] %v3495
        %3504 = vst [vmem:[#allocation3 + $0x18] sm:$0xff] %v3496
        %3505 = vst [vmem:[#allocation3 + $0x20] sm:$0xff] %v3497
        %3506 = vst [vmem:[#allocation3 + $0x28] sm:$0xff] %v3498
        %3507 = vst [vmem:[#allocation3 + $0x30] sm:$0xff] %v3499
        %3508 = vst [vmem:[#allocation3 + $0x38] sm:$0xff] %v3500
        %s3509 = scalar_lea.vmem [#allocation2], 32
        %v3510 = vld [vmem:[%s3509] sm:$0xff]
        %v3511 = vld [vmem:[%s3509 + $0x10] sm:$0xff]
        %v3512 = vld [vmem:[%s3509 + $0x20] sm:$0xff]
        %v3513 = vld [vmem:[%s3509 + $0x30] sm:$0xff]
        %v3514 = vld [vmem:[%s3509 + $0x40] sm:$0xff]
        %v3515 = vld [vmem:[%s3509 + $0x50] sm:$0xff]
        %v3516 = vld [vmem:[%s3509 + $0x60] sm:$0xff]
        %v3517 = vld [vmem:[%s3509 + $0x70] sm:$0xff]
        %v3518 = vld [vmem:[#allocation3] sm:$0xff]
        %v3519 = vld [vmem:[#allocation3 + $0x8] sm:$0xff]
        %v3520 = vld [vmem:[#allocation3 + $0x10] sm:$0xff]
        %v3521 = vld [vmem:[#allocation3 + $0x18] sm:$0xff]
        %v3522 = vld [vmem:[#allocation3 + $0x20] sm:$0xff]
        %v3523 = vld [vmem:[#allocation3 + $0x28] sm:$0xff]
        %v3524 = vld [vmem:[#allocation3 + $0x30] sm:$0xff]
        %v3525 = vld [vmem:[#allocation3 + $0x38] sm:$0xff]
        %v3526 = vpack.c.bf16 %v3511, %v3510
        %v3527 = vpack.c.bf16 %v3513, %v3512
        %v3528 = vpack.c.bf16 %v3515, %v3514
        %v3529 = vpack.c.bf16 %v3517, %v3516
        %s3530 = scalar_lea.vmem %s3, 384
        %v3531 = vld [vmem:[%s3530] sm:$0xf]
        %v3532 = vld [vmem:[%s3530 + $0x4] sm:$0xf]
        %v3533 = vld [vmem:[%s3530 + $0x8] sm:$0xf]
        %v3534 = vld [vmem:[%s3530 + $0xc] sm:$0xf]
        %v3535 = vld [vmem:[%s3530 + $0x10] sm:$0xf]
        %v3536 = vld [vmem:[%s3530 + $0x14] sm:$0xf]
        %v3537 = vld [vmem:[%s3530 + $0x18] sm:$0xf]
        %v3538 = vld [vmem:[%s3530 + $0x1c] sm:$0xf]
        %v3539 = vld [vmem:[%s3530 + $0x20] sm:$0xf]
        %v3540 = vld [vmem:[%s3530 + $0x24] sm:$0xf]
        %v3541 = vld [vmem:[%s3530 + $0x28] sm:$0xf]
        %v3542 = vld [vmem:[%s3530 + $0x2c] sm:$0xf]
        %v3543 = vld [vmem:[%s3530 + $0x30] sm:$0xf]
        %v3544 = vld [vmem:[%s3530 + $0x34] sm:$0xf]
        %v3545 = vld [vmem:[%s3530 + $0x38] sm:$0xf]
        %v3546 = vld [vmem:[%s3530 + $0x3c] sm:$0xf]
        %v3563 = vunpack.c.l.b16 %v3531
        %v3564 = vunpack.c.l.b16 %v3532
        %v3565 = vunpack.c.l.b16 %v3533
        %v3566 = vunpack.c.l.b16 %v3534
        %v3567 = vunpack.c.l.b16 %v3535
        %v3568 = vunpack.c.l.b16 %v3536
        %v3569 = vunpack.c.l.b16 %v3537
        %v3570 = vunpack.c.l.b16 %v3538
        %v3571 = vunpack.c.l.b16 %v3539
        %v3572 = vunpack.c.l.b16 %v3540
        %v3573 = vunpack.c.l.b16 %v3541
        %v3574 = vunpack.c.l.b16 %v3542
        %v3575 = vunpack.c.l.b16 %v3543
        %v3576 = vunpack.c.l.b16 %v3544
        %v3577 = vunpack.c.l.b16 %v3545
        %v3578 = vunpack.c.l.b16 %v3546
        %v3579 = vpack.c.b16 %v3564, %v3563
        %v3580 = vpack.c.b16 %v3566, %v3565
        %v3581 = vpack.c.b16 %v3568, %v3567
        %v3582 = vpack.c.b16 %v3570, %v3569
        %v3583 = vpack.c.b16 %v3572, %v3571
        %v3584 = vpack.c.b16 %v3574, %v3573
        %v3585 = vpack.c.b16 %v3576, %v3575
        %v3586 = vpack.c.b16 %v3578, %v3577
        %3595 = vmatprep.subr.bf16.mxu0 0
        %3596 = vmatpush1.bf16.msra.mxu0 %v3579
        %3597 = vmatprep.subr.bf16.mxu0 0
        %3598 = vmatpush1.bf16.msra.mxu0 %v3580
        %3599 = vmatprep.subr.bf16.mxu0 0
        %3600 = vmatpush1.bf16.msra.mxu0 %v3581
        %3601 = vmatprep.subr.bf16.mxu0 0
        %3602 = vmatpush1.bf16.msra.mxu0 %v3582
        %3603 = vmatprep.subr.bf16.mxu0 0
        %3604 = vmatpush1.bf16.msra.mxu0 %v3583
        %3605 = vmatprep.subr.bf16.mxu0 0
        %3606 = vmatpush1.bf16.msra.mxu0 %v3584
        %3607 = vmatprep.subr.bf16.mxu0 0
        %3608 = vmatpush1.bf16.msra.mxu0 %v3585
        %3609 = vmatprep.subr.bf16.mxu0 0
        %3610 = vmatpush1.bf16.msra.mxu0 %v3586
        %3611 = vmatprep.subr.bf16.mxu0 0
        %3612 = vmatpush1.bf16.msra.mxu0 0
        %3613 = vmatprep.subr.bf16.mxu0 0
        %3614 = vmatpush1.bf16.msra.mxu0 0
        %3615 = vmatprep.subr.bf16.mxu0 0
        %3616 = vmatpush1.bf16.msra.mxu0 0
        %3617 = vmatprep.subr.bf16.mxu0 0
        %3618 = vmatpush1.bf16.msra.mxu0 0
        %3619 = vmatprep.subr.bf16.mxu0 0
        %3620 = vmatpush1.bf16.msra.mxu0 0
        %3621 = vmatprep.subr.bf16.mxu0 0
        %3622 = vmatpush1.bf16.msra.mxu0 0
        %3623 = vmatprep.subr.bf16.mxu0 0
        %3624 = vmatpush1.bf16.msra.mxu0 0
        %3625 = vmatprep.subr.bf16.mxu0 0
        %3626 = vmatpush1.bf16.msra.mxu0 0
        %3627 = vmatprep.mubr.bf16.mxu0 0
        %3628 = vmatmul.mubr.bf16.gmra.mrb[0].mxu0 %v3526
        %v3629 = vpop.f32.mrb[0].mxu0
        %v3630 = vadd.f32 0.0, %v3629
        %v3631 = vpop.f32.mrb[0].mxu0
        %v3632 = vpop.f32.mrb[0].mxu0
        %v3633 = vadd.f32 0.0, %v3632
        %v3634 = vpop.f32.mrb[0].mxu0
        %3635 = vmatprep.mubr.bf16.mxu0 0
        %3636 = vmatmul.mubr.bf16.gmra.mrb[0].mxu0 %v3527
        %v3637 = vpop.f32.mrb[0].mxu0
        %v3638 = vadd.f32 0.0, %v3637
        %v3639 = vpop.f32.mrb[0].mxu0
        %v3640 = vpop.f32.mrb[0].mxu0
        %v3641 = vadd.f32 0.0, %v3640
        %v3642 = vpop.f32.mrb[0].mxu0
        %3643 = vmatprep.mubr.bf16.mxu0 0
        %3644 = vmatmul.mubr.bf16.gmra.mrb[0].mxu0 %v3528
        %v3645 = vpop.f32.mrb[0].mxu0
        %v3646 = vadd.f32 0.0, %v3645
        %v3647 = vpop.f32.mrb[0].mxu0
        %v3648 = vpop.f32.mrb[0].mxu0
        %v3649 = vadd.f32 0.0, %v3648
        %v3650 = vpop.f32.mrb[0].mxu0
        %3651 = vmatprep.mubr.bf16.mxu0 0
        %3652 = vmatmul.mubr.bf16.gmra.mrb[0].mxu0 %v3529
        %v3653 = vpop.f32.mrb[0].mxu0
        %v3654 = vadd.f32 0.0, %v3653
        %v3655 = vpop.f32.mrb[0].mxu0
        %v3656 = vpop.f32.mrb[0].mxu0
        %v3657 = vadd.f32 0.0, %v3656
        %v3658 = vpop.f32.mrb[0].mxu0
        %3659 = vdwg.mxu0
        %v3660 = vadd.f32 %v3518, %v3630
        %v3661 = vadd.f32 %v3519, %v3633
        %v3662 = vadd.f32 %v3520, %v3638
        %v3663 = vadd.f32 %v3521, %v3641
        %v3664 = vadd.f32 %v3522, %v3646
        %v3665 = vadd.f32 %v3523, %v3649
        %v3666 = vadd.f32 %v3524, %v3654
        %v3667 = vadd.f32 %v3525, %v3657
        %3668 = vst [vmem:[#allocation3] sm:$0xff] %v3660
        %3669 = vst [vmem:[#allocation3 + $0x8] sm:$0xff] %v3661
        %3670 = vst [vmem:[#allocation3 + $0x10] sm:$0xff] %v3662
        %3671 = vst [vmem:[#allocation3 + $0x18] sm:$0xff] %v3663
        %3672 = vst [vmem:[#allocation3 + $0x20] sm:$0xff] %v3664
        %3673 = vst [vmem:[#allocation3 + $0x28] sm:$0xff] %v3665
        %3674 = vst [vmem:[#allocation3 + $0x30] sm:$0xff] %v3666
        %3675 = vst [vmem:[#allocation3 + $0x38] sm:$0xff] %v3667
        %v3676 = vld [vmem:[%s3509 + $0x1] sm:$0xff]
        %v3677 = vld [vmem:[%s3509 + $0x11] sm:$0xff]
        %v3678 = vld [vmem:[%s3509 + $0x21] sm:$0xff]
        %v3679 = vld [vmem:[%s3509 + $0x31] sm:$0xff]
        %v3680 = vld [vmem:[%s3509 + $0x41] sm:$0xff]
        %v3681 = vld [vmem:[%s3509 + $0x51] sm:$0xff]
        %v3682 = vld [vmem:[%s3509 + $0x61] sm:$0xff]
        %v3683 = vld [vmem:[%s3509 + $0x71] sm:$0xff]
        %v3684 = vld [vmem:[#allocation3] sm:$0xff]
        %v3685 = vld [vmem:[#allocation3 + $0x8] sm:$0xff]
        %v3686 = vld [vmem:[#allocation3 + $0x10] sm:$0xff]
        %v3687 = vld [vmem:[#allocation3 + $0x18] sm:$0xff]
        %v3688 = vld [vmem:[#allocation3 + $0x20] sm:$0xff]
        %v3689 = vld [vmem:[#allocation3 + $0x28] sm:$0xff]
        %v3690 = vld [vmem:[#allocation3 + $0x30] sm:$0xff]
        %v3691 = vld [vmem:[#allocation3 + $0x38] sm:$0xff]
        %v3692 = vpack.c.bf16 %v3677, %v3676
        %v3693 = vpack.c.bf16 %v3679, %v3678
        %v3694 = vpack.c.bf16 %v3681, %v3680
        %v3695 = vpack.c.bf16 %v3683, %v3682
        %s3696 = scalar_lea.vmem %s3, 448
        %v3697 = vld [vmem:[%s3696] sm:$0xf]
        %v3698 = vld [vmem:[%s3696 + $0x4] sm:$0xf]
        %v3699 = vld [vmem:[%s3696 + $0x8] sm:$0xf]
        %v3700 = vld [vmem:[%s3696 + $0xc] sm:$0xf]
        %v3701 = vld [vmem:[%s3696 + $0x10] sm:$0xf]
        %v3702 = vld [vmem:[%s3696 + $0x14] sm:$0xf]
        %v3703 = vld [vmem:[%s3696 + $0x18] sm:$0xf]
        %v3704 = vld [vmem:[%s3696 + $0x1c] sm:$0xf]
        %v3705 = vld [vmem:[%s3696 + $0x20] sm:$0xf]
        %v3706 = vld [vmem:[%s3696 + $0x24] sm:$0xf]
        %v3707 = vld [vmem:[%s3696 + $0x28] sm:$0xf]
        %v3708 = vld [vmem:[%s3696 + $0x2c] sm:$0xf]
        %v3709 = vld [vmem:[%s3696 + $0x30] sm:$0xf]
        %v3710 = vld [vmem:[%s3696 + $0x34] sm:$0xf]
        %v3711 = vld [vmem:[%s3696 + $0x38] sm:$0xf]
        %v3712 = vld [vmem:[%s3696 + $0x3c] sm:$0xf]
        %v3729 = vunpack.c.l.b16 %v3697
        %v3730 = vunpack.c.l.b16 %v3698
        %v3731 = vunpack.c.l.b16 %v3699
        %v3732 = vunpack.c.l.b16 %v3700
        %v3733 = vunpack.c.l.b16 %v3701
        %v3734 = vunpack.c.l.b16 %v3702
        %v3735 = vunpack.c.l.b16 %v3703
        %v3736 = vunpack.c.l.b16 %v3704
        %v3737 = vunpack.c.l.b16 %v3705
        %v3738 = vunpack.c.l.b16 %v3706
        %v3739 = vunpack.c.l.b16 %v3707
        %v3740 = vunpack.c.l.b16 %v3708
        %v3741 = vunpack.c.l.b16 %v3709
        %v3742 = vunpack.c.l.b16 %v3710
        %v3743 = vunpack.c.l.b16 %v3711
        %v3744 = vunpack.c.l.b16 %v3712
        %v3745 = vpack.c.b16 %v3730, %v3729
        %v3746 = vpack.c.b16 %v3732, %v3731
        %v3747 = vpack.c.b16 %v3734, %v3733
        %v3748 = vpack.c.b16 %v3736, %v3735
        %v3749 = vpack.c.b16 %v3738, %v3737
        %v3750 = vpack.c.b16 %v3740, %v3739
        %v3751 = vpack.c.b16 %v3742, %v3741
        %v3752 = vpack.c.b16 %v3744, %v3743
        %3761 = vmatprep.subr.bf16.mxu0 0
        %3762 = vmatpush1.bf16.msra.mxu0 %v3745
        %3763 = vmatprep.subr.bf16.mxu0 0
        %3764 = vmatpush1.bf16.msra.mxu0 %v3746
        %3765 = vmatprep.subr.bf16.mxu0 0
        %3766 = vmatpush1.bf16.msra.mxu0 %v3747
        %3767 = vmatprep.subr.bf16.mxu0 0
        %3768 = vmatpush1.bf16.msra.mxu0 %v3748
        %3769 = vmatprep.subr.bf16.mxu0 0
        %3770 = vmatpush1.bf16.msra.mxu0 %v3749
        %3771 = vmatprep.subr.bf16.mxu0 0
        %3772 = vmatpush1.bf16.msra.mxu0 %v3750
        %3773 = vmatprep.subr.bf16.mxu0 0
        %3774 = vmatpush1.bf16.msra.mxu0 %v3751
        %3775 = vmatprep.subr.bf16.mxu0 0
        %3776 = vmatpush1.bf16.msra.mxu0 %v3752
        %3777 = vmatprep.subr.bf16.mxu0 0
        %3778 = vmatpush1.bf16.msra.mxu0 0
        %3779 = vmatprep.subr.bf16.mxu0 0
        %3780 = vmatpush1.bf16.msra.mxu0 0
        %3781 = vmatprep.subr.bf16.mxu0 0
        %3782 = vmatpush1.bf16.msra.mxu0 0
        %3783 = vmatprep.subr.bf16.mxu0 0
        %3784 = vmatpush1.bf16.msra.mxu0 0
        %3785 = vmatprep.subr.bf16.mxu0 0
        %3786 = vmatpush1.bf16.msra.mxu0 0
        %3787 = vmatprep.subr.bf16.mxu0 0
        %3788 = vmatpush1.bf16.msra.mxu0 0
        %3789 = vmatprep.subr.bf16.mxu0 0
        %3790 = vmatpush1.bf16.msra.mxu0 0
        %3791 = vmatprep.subr.bf16.mxu0 0
        %3792 = vmatpush1.bf16.msra.mxu0 0
        %3793 = vmatprep.mubr.bf16.mxu0 0
        %3794 = vmatmul.mubr.bf16.gmra.mrb[0].mxu0 %v3692
        %v3795 = vpop.f32.mrb[0].mxu0
        %v3796 = vadd.f32 0.0, %v3795
        %v3797 = vpop.f32.mrb[0].mxu0
        %v3798 = vpop.f32.mrb[0].mxu0
        %v3799 = vadd.f32 0.0, %v3798
        %v3800 = vpop.f32.mrb[0].mxu0
        %3801 = vmatprep.mubr.bf16.mxu0 0
        %3802 = vmatmul.mubr.bf16.gmra.mrb[0].mxu0 %v3693
        %v3803 = vpop.f32.mrb[0].mxu0
        %v3804 = vadd.f32 0.0, %v3803
        %v3805 = vpop.f32.mrb[0].mxu0
        %v3806 = vpop.f32.mrb[0].mxu0
        %v3807 = vadd.f32 0.0, %v3806
        %v3808 = vpop.f32.mrb[0].mxu0
        %3809 = vmatprep.mubr.bf16.mxu0 0
        %3810 = vmatmul.mubr.bf16.gmra.mrb[0].mxu0 %v3694
        %v3811 = vpop.f32.mrb[0].mxu0
        %v3812 = vadd.f32 0.0, %v3811
        %v3813 = vpop.f32.mrb[0].mxu0
        %v3814 = vpop.f32.mrb[0].mxu0
        %v3815 = vadd.f32 0.0, %v3814
        %v3816 = vpop.f32.mrb[0].mxu0
        %3817 = vmatprep.mubr.bf16.mxu0 0
        %3818 = vmatmul.mubr.bf16.gmra.mrb[0].mxu0 %v3695
        %v3819 = vpop.f32.mrb[0].mxu0
        %v3820 = vadd.f32 0.0, %v3819
        %v3821 = vpop.f32.mrb[0].mxu0
        %v3822 = vpop.f32.mrb[0].mxu0
        %v3823 = vadd.f32 0.0, %v3822
        %v3824 = vpop.f32.mrb[0].mxu0
        %3825 = vdwg.mxu0
        %v3826 = vadd.f32 %v3684, %v3796
        %v3827 = vadd.f32 %v3685, %v3799
        %v3828 = vadd.f32 %v3686, %v3804
        %v3829 = vadd.f32 %v3687, %v3807
        %v3830 = vadd.f32 %v3688, %v3812
        %v3831 = vadd.f32 %v3689, %v3815
        %v3832 = vadd.f32 %v3690, %v3820
        %v3833 = vadd.f32 %v3691, %v3823
        %3834 = vst [vmem:[#allocation3] sm:$0xff] %v3826
        %3835 = vst [vmem:[#allocation3 + $0x8] sm:$0xff] %v3827
        %3836 = vst [vmem:[#allocation3 + $0x10] sm:$0xff] %v3828
        %3837 = vst [vmem:[#allocation3 + $0x18] sm:$0xff] %v3829
        %3838 = vst [vmem:[#allocation3 + $0x20] sm:$0xff] %v3830
        %3839 = vst [vmem:[#allocation3 + $0x28] sm:$0xff] %v3831
        %3840 = vst [vmem:[#allocation3 + $0x30] sm:$0xff] %v3832
        %3841 = vst [vmem:[#allocation3 + $0x38] sm:$0xff] %v3833
        %v3842 = vld [vmem:[%s3509 + $0x2] sm:$0xff]
        %v3843 = vld [vmem:[%s3509 + $0x12] sm:$0xff]
        %v3844 = vld [vmem:[%s3509 + $0x22] sm:$0xff]
        %v3845 = vld [vmem:[%s3509 + $0x32] sm:$0xff]
        %v3846 = vld [vmem:[%s3509 + $0x42] sm:$0xff]
        %v3847 = vld [vmem:[%s3509 + $0x52] sm:$0xff]
        %v3848 = vld [vmem:[%s3509 + $0x62] sm:$0xff]
        %v3849 = vld [vmem:[%s3509 + $0x72] sm:$0xff]
        %v3850 = vld [vmem:[#allocation3] sm:$0xff]
        %v3851 = vld [vmem:[#allocation3 + $0x8] sm:$0xff]
        %v3852 = vld [vmem:[#allocation3 + $0x10] sm:$0xff]
        %v3853 = vld [vmem:[#allocation3 + $0x18] sm:$0xff]
        %v3854 = vld [vmem:[#allocation3 + $0x20] sm:$0xff]
        %v3855 = vld [vmem:[#allocation3 + $0x28] sm:$0xff]
        %v3856 = vld [vmem:[#allocation3 + $0x30] sm:$0xff]
        %v3857 = vld [vmem:[#allocation3 + $0x38] sm:$0xff]
        %v3858 = vpack.c.bf16 %v3843, %v3842
        %v3859 = vpack.c.bf16 %v3845, %v3844
        %v3860 = vpack.c.bf16 %v3847, %v3846
        %v3861 = vpack.c.bf16 %v3849, %v3848
        %s3862 = scalar_lea.vmem %s3, 512
        %v3863 = vld [vmem:[%s3862] sm:$0xf]
        %v3864 = vld [vmem:[%s3862 + $0x4] sm:$0xf]
        %v3865 = vld [vmem:[%s3862 + $0x8] sm:$0xf]
        %v3866 = vld [vmem:[%s3862 + $0xc] sm:$0xf]
        %v3867 = vld [vmem:[%s3862 + $0x10] sm:$0xf]
        %v3868 = vld [vmem:[%s3862 + $0x14] sm:$0xf]
        %v3869 = vld [vmem:[%s3862 + $0x18] sm:$0xf]
        %v3870 = vld [vmem:[%s3862 + $0x1c] sm:$0xf]
        %v3871 = vld [vmem:[%s3862 + $0x20] sm:$0xf]
        %v3872 = vld [vmem:[%s3862 + $0x24] sm:$0xf]
        %v3873 = vld [vmem:[%s3862 + $0x28] sm:$0xf]
        %v3874 = vld [vmem:[%s3862 + $0x2c] sm:$0xf]
        %v3875 = vld [vmem:[%s3862 + $0x30] sm:$0xf]
        %v3876 = vld [vmem:[%s3862 + $0x34] sm:$0xf]
        %v3877 = vld [vmem:[%s3862 + $0x38] sm:$0xf]
        %v3878 = vld [vmem:[%s3862 + $0x3c] sm:$0xf]
        %v3895 = vunpack.c.l.b16 %v3863
        %v3896 = vunpack.c.l.b16 %v3864
        %v3897 = vunpack.c.l.b16 %v3865
        %v3898 = vunpack.c.l.b16 %v3866
        %v3899 = vunpack.c.l.b16 %v3867
        %v3900 = vunpack.c.l.b16 %v3868
        %v3901 = vunpack.c.l.b16 %v3869
        %v3902 = vunpack.c.l.b16 %v3870
        %v3903 = vunpack.c.l.b16 %v3871
        %v3904 = vunpack.c.l.b16 %v3872
        %v3905 = vunpack.c.l.b16 %v3873
        %v3906 = vunpack.c.l.b16 %v3874
        %v3907 = vunpack.c.l.b16 %v3875
        %v3908 = vunpack.c.l.b16 %v3876
        %v3909 = vunpack.c.l.b16 %v3877
        %v3910 = vunpack.c.l.b16 %v3878
        %v3911 = vpack.c.b16 %v3896, %v3895
        %v3912 = vpack.c.b16 %v3898, %v3897
        %v3913 = vpack.c.b16 %v3900, %v3899
        %v3914 = vpack.c.b16 %v3902, %v3901
        %v3915 = vpack.c.b16 %v3904, %v3903
        %v3916 = vpack.c.b16 %v3906, %v3905
        %v3917 = vpack.c.b16 %v3908, %v3907
        %v3918 = vpack.c.b16 %v3910, %v3909
        %3927 = vmatprep.subr.bf16.mxu0 0
        %3928 = vmatpush1.bf16.msra.mxu0 %v3911
        %3929 = vmatprep.subr.bf16.mxu0 0
        %3930 = vmatpush1.bf16.msra.mxu0 %v3912
        %3931 = vmatprep.subr.bf16.mxu0 0
        %3932 = vmatpush1.bf16.msra.mxu0 %v3913
        %3933 = vmatprep.subr.bf16.mxu0 0
        %3934 = vmatpush1.bf16.msra.mxu0 %v3914
        %3935 = vmatprep.subr.bf16.mxu0 0
        %3936 = vmatpush1.bf16.msra.mxu0 %v3915
        %3937 = vmatprep.subr.bf16.mxu0 0
        %3938 = vmatpush1.bf16.msra.mxu0 %v3916
        %3939 = vmatprep.subr.bf16.mxu0 0
        %3940 = vmatpush1.bf16.msra.mxu0 %v3917
        %3941 = vmatprep.subr.bf16.mxu0 0
        %3942 = vmatpush1.bf16.msra.mxu0 %v3918
        %3943 = vmatprep.subr.bf16.mxu0 0
        %3944 = vmatpush1.bf16.msra.mxu0 0
        %3945 = vmatprep.subr.bf16.mxu0 0
        %3946 = vmatpush1.bf16.msra.mxu0 0
        %3947 = vmatprep.subr.bf16.mxu0 0
        %3948 = vmatpush1.bf16.msra.mxu0 0
        %3949 = vmatprep.subr.bf16.mxu0 0
        %3950 = vmatpush1.bf16.msra.mxu0 0
        %3951 = vmatprep.subr.bf16.mxu0 0
        %3952 = vmatpush1.bf16.msra.mxu0 0
        %3953 = vmatprep.subr.bf16.mxu0 0
        %3954 = vmatpush1.bf16.msra.mxu0 0
        %3955 = vmatprep.subr.bf16.mxu0 0
        %3956 = vmatpush1.bf16.msra.mxu0 0
        %3957 = vmatprep.subr.bf16.mxu0 0
        %3958 = vmatpush1.bf16.msra.mxu0 0
        %3959 = vmatprep.mubr.bf16.mxu0 0
        %3960 = vmatmul.mubr.bf16.gmra.mrb[0].mxu0 %v3858
        %v3961 = vpop.f32.mrb[0].mxu0
        %v3962 = vadd.f32 0.0, %v3961
        %v3963 = vpop.f32.mrb[0].mxu0
        %v3964 = vpop.f32.mrb[0].mxu0
        %v3965 = vadd.f32 0.0, %v3964
        %v3966 = vpop.f32.mrb[0].mxu0
        %3967 = vmatprep.mubr.bf16.mxu0 0
        %3968 = vmatmul.mubr.bf16.gmra.mrb[0].mxu0 %v3859
        %v3969 = vpop.f32.mrb[0].mxu0
        %v3970 = vadd.f32 0.0, %v3969
        %v3971 = vpop.f32.mrb[0].mxu0
        %v3972 = vpop.f32.mrb[0].mxu0
        %v3973 = vadd.f32 0.0, %v3972
        %v3974 = vpop.f32.mrb[0].mxu0
        %3975 = vmatprep.mubr.bf16.mxu0 0
        %3976 = vmatmul.mubr.bf16.gmra.mrb[0].mxu0 %v3860
        %v3977 = vpop.f32.mrb[0].mxu0
        %v3978 = vadd.f32 0.0, %v3977
        %v3979 = vpop.f32.mrb[0].mxu0
        %v3980 = vpop.f32.mrb[0].mxu0
        %v3981 = vadd.f32 0.0, %v3980
        %v3982 = vpop.f32.mrb[0].mxu0
        %3983 = vmatprep.mubr.bf16.mxu0 0
        %3984 = vmatmul.mubr.bf16.gmra.mrb[0].mxu0 %v3861
        %v3985 = vpop.f32.mrb[0].mxu0
        %v3986 = vadd.f32 0.0, %v3985
        %v3987 = vpop.f32.mrb[0].mxu0
        %v3988 = vpop.f32.mrb[0].mxu0
        %v3989 = vadd.f32 0.0, %v3988
        %v3990 = vpop.f32.mrb[0].mxu0
        %3991 = vdwg.mxu0
        %v3992 = vadd.f32 %v3850, %v3962
        %v3993 = vadd.f32 %v3851, %v3965
        %v3994 = vadd.f32 %v3852, %v3970
        %v3995 = vadd.f32 %v3853, %v3973
        %v3996 = vadd.f32 %v3854, %v3978
        %v3997 = vadd.f32 %v3855, %v3981
        %v3998 = vadd.f32 %v3856, %v3986
        %v3999 = vadd.f32 %v3857, %v3989
        %4000 = vst [vmem:[#allocation3] sm:$0xff] %v3992
        %4001 = vst [vmem:[#allocation3 + $0x8] sm:$0xff] %v3993
        %4002 = vst [vmem:[#allocation3 + $0x10] sm:$0xff] %v3994
        %4003 = vst [vmem:[#allocation3 + $0x18] sm:$0xff] %v3995
        %4004 = vst [vmem:[#allocation3 + $0x20] sm:$0xff] %v3996
        %4005 = vst [vmem:[#allocation3 + $0x28] sm:$0xff] %v3997
        %4006 = vst [vmem:[#allocation3 + $0x30] sm:$0xff] %v3998
        %4007 = vst [vmem:[#allocation3 + $0x38] sm:$0xff] %v3999
        %v4008 = vld [vmem:[#allocation3] sm:$0xff]
        %v4009 = vld [vmem:[#allocation3 + $0x8] sm:$0xff]
        %v4010 = vld [vmem:[#allocation3 + $0x10] sm:$0xff]
        %v4011 = vld [vmem:[#allocation3 + $0x18] sm:$0xff]
        %v4012 = vld [vmem:[#allocation3 + $0x20] sm:$0xff]
        %v4013 = vld [vmem:[#allocation3 + $0x28] sm:$0xff]
        %v4014 = vld [vmem:[#allocation3 + $0x30] sm:$0xff]
        %v4015 = vld [vmem:[#allocation3 + $0x38] sm:$0xff]
        %v4016 = vld [vmem:[%s4] sm:$0x1]
        %v4018 = vlaneseq
        %v4019 = vshrl.u32 %v4018, 7
        %v4020 = vsub.s32 0, %v4019
        %v4021 = vrot.slane %v4016, %v4020
        %v4023 = vadd.f32 %v4008, %v4021
        %v4024 = vadd.f32 %v4009, %v4021
        %v4025 = vadd.f32 %v4010, %v4021
        %v4026 = vadd.f32 %v4011, %v4021
        %v4027 = vadd.f32 %v4012, %v4021
        %v4028 = vadd.f32 %v4013, %v4021
        %v4029 = vadd.f32 %v4014, %v4021
        %v4030 = vadd.f32 %v4015, %v4021
        %v4031 = vmax.f32 %v4023, 0.0
        %v4032 = vmax.f32 %v4024, 0.0
        %v4033 = vmax.f32 %v4025, 0.0
        %v4034 = vmax.f32 %v4026, 0.0
        %v4035 = vmax.f32 %v4027, 0.0
        %v4036 = vmax.f32 %v4028, 0.0
        %v4037 = vmax.f32 %v4029, 0.0
        %v4038 = vmax.f32 %v4030, 0.0
        %4039 = vst [vmem:[%s271] sm:$0xff] %v4031
        %4040 = vst [vmem:[%s271 + $0x8] sm:$0xff] %v4032
        %4041 = vst [vmem:[%s271 + $0x10] sm:$0xff] %v4033
        %4042 = vst [vmem:[%s271 + $0x18] sm:$0xff] %v4034
        %4043 = vst [vmem:[%s271 + $0x20] sm:$0xff] %v4035
        %4044 = vst [vmem:[%s271 + $0x28] sm:$0xff] %v4036
        %4045 = vst [vmem:[%s271 + $0x30] sm:$0xff] %v4037
        %4046 = vst [vmem:[%s271 + $0x38] sm:$0xff] %v4038
        %s4047 = sand.u32 %s181, 1
        %s4048 = scalar_lea.sflag [#allocation5], %s4047
        %s4049 = sand.u32 %s181, 1
        %s4050 = smul.addr %s4049, 64
        %s4051 = scalar_lea.vmem [#allocation4], %s4050
        // Predicated region
        $region49: #{tpu_custom_call.1} parent=47 // pred_check
          %p4052 = pneg %p191
        $region50: #{tpu_custom_call.1} parent=47 // pred_check_branch
          %4054 = sbr.rel (%p4052) target = $region52
        $region51: #{tpu_custom_call.1} parent=47 // pred_region
          %s4056 = ssub.s32 1024, 1024
          %4057 = vsyncadd %s4048, %s4056
          %s4058 = smul.addr %s21, 8
          %s4059 = smul.addr %s4058, 128
          %s4060 = scalar_lea.hbm %s7, %s4059
          %s4061 = sshll.u32 %s4051, 4
          %s4062 = int_to_ptr.vmem [resolvable:$true] %s4061
          %4067 = dma.vmem_to_hbm [thread:$0]  %s4062, 1024, %s4060, %s4048, 128, 128, 8
        $region52: #{tpu_custom_call.1} parent=47 // pred_fallthru
          _
      $region48: #{tpu_custom_call.1} parent=5 // pred_fallthru
        _
      %p4068 = scmp.le.s32.totalorder 2, %s16
      // Predicated region
      $region53: #{tpu_custom_call.1} parent=5 // pred_check
        %p4069 = pneg %p4068
      $region54: #{tpu_custom_call.1} parent=5 // pred_check_branch
        %4071 = sbr.rel (%p4069) target = $region56
      $region55: #{tpu_custom_call.1} parent=5 // pred_region
        %s4072 = ssub.s32 %s16, 2
        // Predicated region
        $region57: #{tpu_custom_call.1} parent=55 // pred_check
          %p4073 = pneg %p197
        $region58: #{tpu_custom_call.1} parent=55 // pred_check_branch
          %4075 = sbr.rel (%p4073) target = $region60
        $region59: #{tpu_custom_call.1} parent=55 // pred_region
          %s4076 = sand.u32 %s182, 1
          %s4077 = scalar_lea.sflag [#allocation5], %s4076
          %s4078 = sand.u32 %s182, 1
          %s4079 = smul.addr %s4078, 64
          %s4080 = scalar_lea.vmem [#allocation4], %s4079
          %4081 = dma.done %s4077, 1024
        $region60: #{tpu_custom_call.1} parent=55 // pred_fallthru
          _
      $region56: #{tpu_custom_call.1} parent=5 // pred_fallthru
        _
    $region6: #{tpu_custom_call.1} parent=1 // loop_footer
      %s20 = sadd.s32 1, %s16
    $region7: #{tpu_custom_call.1} parent=1 // loop_footer_branch
      %15 = sbr.rel target = $region3
    $region8: #{tpu_custom_call.1} parent=1 // loop_exit
      _
    %4082 = vsyncpa [#allocation5], 1
    %s4083 = scalar_lea.sflag [#allocation5], 1
    %4084 = vsyncpa %s4083, 1

</llo_original>
